<compile_context>
chip_gen: v5e
topology: v5e:2x2
jax: 0.10.0
libtpu: 0.0.40
codegen_flags: <defaults>
</compile_context>

<pallas_src>
import functools

import jax
import jax.numpy as jnp
from jax.experimental import pallas as pl
from jax.experimental.pallas import tpu as pltpu


def _round_up(n: int, m: int) -> int:
    return ((n + m - 1) // m) * m


def _choose_tb(batch: int, tb_req: int) -> int:
    """Batch tile: lane-aligned (128), MXU-aligned (256) when possible, and
    small enough to keep >= 2 grid steps for the dual-TensorCore v7x."""
    if batch <= 128:
        # Single full-extent block (full-dim last axis is always legal).
        return _round_up(batch, 8)
    tb_req = max(128, (tb_req // 128) * 128)
    half = _round_up(-(-batch // 2), 128)      # ceil(B/2) rounded to 128
    tb = min(tb_req, half)
    if tb >= 256:                              # 256-wide MXU on v6e/v7x
        tb = (tb // 256) * 256
    return tb


def _t_forward_kernel(
    xt_ref, zt_ref,
    w1x_ref, w1z_ref, b1_ref,
    w2_ref, b2_ref,
    w3_ref, b3_ref,
    w4_ref, b4_ref,
    o_ref,
):
    # Layer 1 (fused concat): cat(x,z) @ W1 == W1x^T @ x^T + W1z^T @ z^T.
    # Batch stays on lanes for the whole kernel.
    h = jnp.dot(w1x_ref[...], xt_ref[...], preferred_element_type=jnp.float32)
    h = h + jnp.dot(w1z_ref[...], zt_ref[...], preferred_element_type=jnp.float32)
    h = jnp.maximum(h + b1_ref[...], 0.0)

    # Layers 2 & 3 on the MXU, f32 accumulation.
    h = jnp.dot(w2_ref[...], h.astype(w2_ref.dtype),
                preferred_element_type=jnp.float32) + b2_ref[...]
    h = jnp.maximum(h, 0.0)
    h = jnp.dot(w3_ref[...], h.astype(w3_ref.dtype),
                preferred_element_type=jnp.float32) + b3_ref[...]
    h = jnp.maximum(h, 0.0)

    # Layer 4 (N=1 matvec): off the MXU — VPU multiply + sublane reduction.
    # Result is (1, TB): naturally lane-dense along the batch axis.
    out = jnp.sum(h * w4_ref[...], axis=0, keepdims=True) + b4_ref[...]
    o_ref[...] = out.astype(o_ref.dtype)


def prepare_params(x_dim, w1, b1, w2, b2, w3, b3, w4, b4,
                   compute_dtype=jnp.float32):
    """One-time parameter prep (hoisted out of the jitted forward).

    Weights arrive in (in_features, out_features) layout; biases 1-D.
    Returns kernel-ready (transposed / split / reshaped) parameters.
    """
    H = w1.shape[1]
    w1xt = jnp.asarray(w1[:x_dim, :].T, dtype=compute_dtype)   # (H, Dx)
    w1zt = jnp.asarray(w1[x_dim:, :].T, dtype=compute_dtype)   # (H, Dz)
    w2t = jnp.asarray(w2.T, dtype=compute_dtype)               # (H, H)
    w3t = jnp.asarray(w3.T, dtype=compute_dtype)               # (H, H)
    b1c = b1.reshape(H, 1).astype(jnp.float32)
    b2c = b2.reshape(H, 1).astype(jnp.float32)
    b3c = b3.reshape(H, 1).astype(jnp.float32)
    w4c = w4.reshape(H, 1).astype(jnp.float32)   # final layer stays f32 (VPU)
    b4s = b4.reshape(1, 1).astype(jnp.float32)
    return (w1xt, w1zt, b1c, w2t, b2c, w3t, b3c, w4c, b4s)


@functools.partial(jax.jit, static_argnames=("tb",))
def t_forward(x, z, params, *, tb: int = 512):
    """Pallas equivalent of T.forward(x, z) using prepare_params() output."""
    w1xt, w1zt, b1c, w2t, b2c, w3t, b3c, w4c, b4s = params
    B, Dx = x.shape
    Bz, Dz = z.shape
    assert Bz == B
    H = w1xt.shape[0]
    cdt = w1xt.dtype

    TB = _choose_tb(B, tb)
    Bp = _round_up(B, TB)

    # Batch along lanes: transpose inputs (layout plumbing, cheap vs. matmuls).
    xt = x.astype(cdt).T                      # (Dx, B)
    zt = z.astype(cdt).T                      # (Dz, B)
    if Bp != B:
        pad = Bp - B
        xt = jnp.pad(xt, ((0, 0), (0, pad)))
        zt = jnp.pad(zt, ((0, 0), (0, pad)))
    grid = (Bp // TB,)

    const = lambda i: (0, 0)                  # weights/biases: VMEM-resident
    batch = lambda i: (0, i)                  # x^T / z^T / out: tile on lanes

    out_row = pl.pallas_call(
        _t_forward_kernel,
        out_shape=jax.ShapeDtypeStruct((1, Bp), jnp.float32),
        grid=grid,
        in_specs=[
            pl.BlockSpec((Dx, TB), batch),
            pl.BlockSpec((Dz, TB), batch),
            pl.BlockSpec((H, Dx), const),
            pl.BlockSpec((H, Dz), const),
            pl.BlockSpec((H, 1), const),
            pl.BlockSpec((H, H), const),
            pl.BlockSpec((H, 1), const),
            pl.BlockSpec((H, H), const),
            pl.BlockSpec((H, 1), const),
            pl.BlockSpec((H, 1), const),
            pl.BlockSpec((1, 1), const),
        ],
        out_specs=pl.BlockSpec((1, TB), batch),
        compiler_params=pltpu.CompilerParams(
            dimension_semantics=("parallel",),
        ),
    )(xt, zt, w1xt, w1zt, b1c, w2t, b2c, w3t, b3c, w4c, b4s)

    return out_row[0, :B].reshape(B, 1).astype(x.dtype)


def _reference(x, z, w1, b1, w2, b2, w3, b3, w4, b4):
    h = jnp.concatenate((x, z), axis=1)
    h = jnp.maximum(h @ w1 + b1, 0.0)
    h = jnp.maximum(h @ w2 + b2, 0.0)
    h = jnp.maximum(h @ w3 + b3, 0.0)
    return h @ w4 + b4


if __name__ == "__main__":
    key = jax.random.PRNGKey(0)
    ks = jax.random.split(key, 12)

    Dx, Dz, H = 32, 32, 400
    scale = 0.05
    w1 = scale * jax.random.normal(ks[2], (Dx + Dz, H), dtype=jnp.float32)
    b1 = scale * jax.random.normal(ks[3], (H,), dtype=jnp.float32)
    w2 = scale * jax.random.normal(ks[4], (H, H), dtype=jnp.float32)
    b2 = scale * jax.random.normal(ks[5], (H,), dtype=jnp.float32)
    w3 = scale * jax.random.normal(ks[6], (H, H), dtype=jnp.float32)
    b3 = scale * jax.random.normal(ks[7], (H,), dtype=jnp.float32)
    w4 = scale * jax.random.normal(ks[8], (H, 1), dtype=jnp.float32)
    b4 = scale * jax.random.normal(ks[9], (1,), dtype=jnp.float32)

    params_f32 = prepare_params(Dx, w1, b1, w2, b2, w3, b3, w4, b4)

    # Case 1: tiny batch (single full-extent block).
    B = 8
    x = jax.random.normal(ks[0], (B, Dx), dtype=jnp.float32)
    z = jax.random.normal(ks[1], (B, Dz), dtype=jnp.float32)
    out = jax.block_until_ready(t_forward(x, z, params_f32))
    ref = _reference(x, z, w1, b1, w2, b2, w3, b3, w4, b4)
    assert out.shape == (B, 1)
    assert jnp.allclose(out, ref, rtol=1e-5, atol=1e-5), (
        f"max abs diff {jnp.max(jnp.abs(out - ref))}")

    # Case 2: multi-step grid with batch padding (2 grid steps, TB=256).
    B2 = 384
    x2 = jax.random.normal(ks[10], (B2, Dx), dtype=jnp.float32)
    z2 = jax.random.normal(ks[11], (B2, Dz), dtype=jnp.float32)
    out2 = jax.block_until_ready(t_forward(x2, z2, params_f32))
    ref2 = _reference(x2, z2, w1, b1, w2, b2, w3, b3, w4, b4)
    assert out2.shape == (B2, 1)
    assert jnp.allclose(out2, ref2, rtol=1e-5, atol=1e-5), (
        f"max abs diff {jnp.max(jnp.abs(out2 - ref2))}")

    # Case 3: bf16 MXU operands, f32 accumulation (looser tolerance).
    params_bf16 = prepare_params(Dx, w1, b1, w2, b2, w3, b3, w4, b4,
                                 compute_dtype=jnp.bfloat16)
    out3 = jax.block_until_ready(t_forward(x2, z2, params_bf16))
    assert out3.shape == (B2, 1)
    assert jnp.allclose(out3, ref2, rtol=5e-2, atol=5e-2), (
        f"max abs diff (bf16) {jnp.max(jnp.abs(out3 - ref2))}")

    print("KERNEL_OK")
</pallas_src>

<mosaic_0001>
module attributes {stable_mosaic.version = 11 : i64} {
  func.func @_t_forward_kernel(%arg0: i32, %arg1: memref<32x8xf32, #tpu.memory_space<vmem>>, %arg2: memref<32x8xf32, #tpu.memory_space<vmem>>, %arg3: memref<400x32xf32, #tpu.memory_space<vmem>>, %arg4: memref<400x32xf32, #tpu.memory_space<vmem>>, %arg5: memref<400x1xf32, #tpu.memory_space<vmem>>, %arg6: memref<400x400xf32, #tpu.memory_space<vmem>>, %arg7: memref<400x1xf32, #tpu.memory_space<vmem>>, %arg8: memref<400x400xf32, #tpu.memory_space<vmem>>, %arg9: memref<400x1xf32, #tpu.memory_space<vmem>>, %arg10: memref<400x1xf32, #tpu.memory_space<vmem>>, %arg11: memref<1x1xf32, #tpu.memory_space<vmem>>, %arg12: memref<1x8xf32, #tpu.memory_space<vmem>>) attributes {dimension_semantics = [#tpu.dimension_semantics<parallel>], iteration_bounds = array<i64: 1>, scalar_prefetch = 0 : i64, scratch_operands = 0 : i64, tpu.core_type = #tpu.core_type<tc>, window_params = [{transform_indices = @transform_0, window_bounds = array<i64: 32, 8>}, {transform_indices = @transform_1, window_bounds = array<i64: 32, 8>}, {pipeline_mode = #tpu.pipeline_mode<synchronous>, transform_indices = @transform_2, window_bounds = array<i64: 400, 32>}, {pipeline_mode = #tpu.pipeline_mode<synchronous>, transform_indices = @transform_3, window_bounds = array<i64: 400, 32>}, {pipeline_mode = #tpu.pipeline_mode<synchronous>, transform_indices = @transform_4, window_bounds = array<i64: 400, 1>}, {pipeline_mode = #tpu.pipeline_mode<synchronous>, transform_indices = @transform_5, window_bounds = array<i64: 400, 400>}, {pipeline_mode = #tpu.pipeline_mode<synchronous>, transform_indices = @transform_6, window_bounds = array<i64: 400, 1>}, {pipeline_mode = #tpu.pipeline_mode<synchronous>, transform_indices = @transform_7, window_bounds = array<i64: 400, 400>}, {pipeline_mode = #tpu.pipeline_mode<synchronous>, transform_indices = @transform_8, window_bounds = array<i64: 400, 1>}, {pipeline_mode = #tpu.pipeline_mode<synchronous>, transform_indices = @transform_9, window_bounds = array<i64: 400, 1>}, {pipeline_mode = #tpu.pipeline_mode<synchronous>, transform_indices = @transform_10, window_bounds = array<i64: 1, 1>}, {transform_indices = @transform_11, window_bounds = array<i64: 1, 8>}]} {
    %c0 = arith.constant 0 : index
    %c0_0 = arith.constant 0 : index
    %0 = vector.load %arg3[%c0, %c0_0] : memref<400x32xf32, #tpu.memory_space<vmem>>, vector<400x32xf32>
    %c0_1 = arith.constant 0 : index
    %c0_2 = arith.constant 0 : index
    %1 = vector.load %arg1[%c0_1, %c0_2] : memref<32x8xf32, #tpu.memory_space<vmem>>, vector<32x8xf32>
    %cst = arith.constant dense<0.000000e+00> : vector<400x8xf32>
    %2 = tpu.matmul %0, %1, %cst {dimension_numbers = #tpu.dot_dimension_numbers<[1], [0], [0], [1], [0, 0, 1, 1], [], []>} : vector<400x32xf32>, vector<32x8xf32>, vector<400x8xf32> -> vector<400x8xf32>
    %c0_3 = arith.constant 0 : index
    %c0_4 = arith.constant 0 : index
    %3 = vector.load %arg4[%c0_3, %c0_4] : memref<400x32xf32, #tpu.memory_space<vmem>>, vector<400x32xf32>
    %c0_5 = arith.constant 0 : index
    %c0_6 = arith.constant 0 : index
    %4 = vector.load %arg2[%c0_5, %c0_6] : memref<32x8xf32, #tpu.memory_space<vmem>>, vector<32x8xf32>
    %cst_7 = arith.constant dense<0.000000e+00> : vector<400x8xf32>
    %5 = tpu.matmul %3, %4, %cst_7 {dimension_numbers = #tpu.dot_dimension_numbers<[1], [0], [0], [1], [0, 0, 1, 1], [], []>} : vector<400x32xf32>, vector<32x8xf32>, vector<400x8xf32> -> vector<400x8xf32>
    %6 = arith.addf %2, %5 : vector<400x8xf32>
    %c0_8 = arith.constant 0 : index
    %c0_9 = arith.constant 0 : index
    %7 = vector.load %arg5[%c0_8, %c0_9] : memref<400x1xf32, #tpu.memory_space<vmem>>, vector<400x1xf32>
    %8 = vector.broadcast %7 : vector<400x1xf32> to vector<400x8xf32>
    %9 = arith.addf %6, %8 : vector<400x8xf32>
    %cst_10 = arith.constant 0.000000e+00 : f32
    %10 = vector.broadcast %cst_10 : f32 to vector<400x8xf32>
    %11 = arith.maximumf %9, %10 : vector<400x8xf32>
    %c0_11 = arith.constant 0 : index
    %c0_12 = arith.constant 0 : index
    %12 = vector.load %arg6[%c0_11, %c0_12] : memref<400x400xf32, #tpu.memory_space<vmem>>, vector<400x400xf32>
    %cst_13 = arith.constant dense<0.000000e+00> : vector<400x8xf32>
    %13 = tpu.matmul %12, %11, %cst_13 {dimension_numbers = #tpu.dot_dimension_numbers<[1], [0], [0], [1], [0, 0, 1, 1], [], []>} : vector<400x400xf32>, vector<400x8xf32>, vector<400x8xf32> -> vector<400x8xf32>
    %c0_14 = arith.constant 0 : index
    %c0_15 = arith.constant 0 : index
    %14 = vector.load %arg7[%c0_14, %c0_15] : memref<400x1xf32, #tpu.memory_space<vmem>>, vector<400x1xf32>
    %15 = vector.broadcast %14 : vector<400x1xf32> to vector<400x8xf32>
    %16 = arith.addf %13, %15 : vector<400x8xf32>
    %cst_16 = arith.constant 0.000000e+00 : f32
    %17 = vector.broadcast %cst_16 : f32 to vector<400x8xf32>
    %18 = arith.maximumf %16, %17 : vector<400x8xf32>
    %c0_17 = arith.constant 0 : index
    %c0_18 = arith.constant 0 : index
    %19 = vector.load %arg8[%c0_17, %c0_18] : memref<400x400xf32, #tpu.memory_space<vmem>>, vector<400x400xf32>
    %cst_19 = arith.constant dense<0.000000e+00> : vector<400x8xf32>
    %20 = tpu.matmul %19, %18, %cst_19 {dimension_numbers = #tpu.dot_dimension_numbers<[1], [0], [0], [1], [0, 0, 1, 1], [], []>} : vector<400x400xf32>, vector<400x8xf32>, vector<400x8xf32> -> vector<400x8xf32>
    %c0_20 = arith.constant 0 : index
    %c0_21 = arith.constant 0 : index
    %21 = vector.load %arg9[%c0_20, %c0_21] : memref<400x1xf32, #tpu.memory_space<vmem>>, vector<400x1xf32>
    %22 = vector.broadcast %21 : vector<400x1xf32> to vector<400x8xf32>
    %23 = arith.addf %20, %22 : vector<400x8xf32>
    %cst_22 = arith.constant 0.000000e+00 : f32
    %24 = vector.broadcast %cst_22 : f32 to vector<400x8xf32>
    %25 = arith.maximumf %23, %24 : vector<400x8xf32>
    %c0_23 = arith.constant 0 : index
    %c0_24 = arith.constant 0 : index
    %26 = vector.load %arg10[%c0_23, %c0_24] : memref<400x1xf32, #tpu.memory_space<vmem>>, vector<400x1xf32>
    %27 = vector.broadcast %26 : vector<400x1xf32> to vector<400x8xf32>
    %28 = arith.mulf %25, %27 : vector<400x8xf32>
    %cst_25 = arith.constant dense<0.000000e+00> : vector<8xf32>
    %29 = vector.multi_reduction <add>, %28, %cst_25 [0] : vector<400x8xf32> to vector<8xf32>
    %30 = vector.shape_cast %29 : vector<8xf32> to vector<1x8xf32>
    %c0_26 = arith.constant 0 : index
    %c0_27 = arith.constant 0 : index
    %31 = vector.load %arg11[%c0_26, %c0_27] : memref<1x1xf32, #tpu.memory_space<vmem>>, vector<1x1xf32>
    %32 = vector.broadcast %31 : vector<1x1xf32> to vector<1x8xf32>
    %33 = arith.addf %30, %32 : vector<1x8xf32>
    %c0_28 = arith.constant 0 : index
    %c0_29 = arith.constant 0 : index
    %34 = vector.load %arg12[%c0_28, %c0_29] : memref<1x8xf32, #tpu.memory_space<vmem>>, vector<1x8xf32>
    tpu.vector_store %arg12[%c0_28, %c0_29], %33 {strides = array<i32>} : memref<1x8xf32, #tpu.memory_space<vmem>>, vector<1x8xf32>,
    return
  }
  func.func @transform_0(%arg0: i32) -> (i32, i32) {
    %c0_i32 = arith.constant 0 : i32
    %c0_i32_0 = arith.constant 0 : i32
    return %c0_i32, %arg0 : i32, i32
  }
  func.func @transform_1(%arg0: i32) -> (i32, i32) {
    %c0_i32 = arith.constant 0 : i32
    %c0_i32_0 = arith.constant 0 : i32
    return %c0_i32, %arg0 : i32, i32
  }
  func.func @transform_2(%arg0: i32) -> (i32, i32) {
    %c0_i32 = arith.constant 0 : i32
    %c0_i32_0 = arith.constant 0 : i32
    %c0_i32_1 = arith.constant 0 : i32
    return %c0_i32, %c0_i32_0 : i32, i32
  }
  func.func @transform_3(%arg0: i32) -> (i32, i32) {
    %c0_i32 = arith.constant 0 : i32
    %c0_i32_0 = arith.constant 0 : i32
    %c0_i32_1 = arith.constant 0 : i32
    return %c0_i32, %c0_i32_0 : i32, i32
  }
  func.func @transform_4(%arg0: i32) -> (i32, i32) {
    %c0_i32 = arith.constant 0 : i32
    %c0_i32_0 = arith.constant 0 : i32
    %c0_i32_1 = arith.constant 0 : i32
    return %c0_i32, %c0_i32_0 : i32, i32
  }
  func.func @transform_5(%arg0: i32) -> (i32, i32) {
    %c0_i32 = arith.constant 0 : i32
    %c0_i32_0 = arith.constant 0 : i32
    %c0_i32_1 = arith.constant 0 : i32
    return %c0_i32, %c0_i32_0 : i32, i32
  }
  func.func @transform_6(%arg0: i32) -> (i32, i32) {
    %c0_i32 = arith.constant 0 : i32
    %c0_i32_0 = arith.constant 0 : i32
    %c0_i32_1 = arith.constant 0 : i32
    return %c0_i32, %c0_i32_0 : i32, i32
  }
  func.func @transform_7(%arg0: i32) -> (i32, i32) {
    %c0_i32 = arith.constant 0 : i32
    %c0_i32_0 = arith.constant 0 : i32
    %c0_i32_1 = arith.constant 0 : i32
    return %c0_i32, %c0_i32_0 : i32, i32
  }
  func.func @transform_8(%arg0: i32) -> (i32, i32) {
    %c0_i32 = arith.constant 0 : i32
    %c0_i32_0 = arith.constant 0 : i32
    %c0_i32_1 = arith.constant 0 : i32
    return %c0_i32, %c0_i32_0 : i32, i32
  }
  func.func @transform_9(%arg0: i32) -> (i32, i32) {
    %c0_i32 = arith.constant 0 : i32
    %c0_i32_0 = arith.constant 0 : i32
    %c0_i32_1 = arith.constant 0 : i32
    return %c0_i32, %c0_i32_0 : i32, i32
  }
  func.func @transform_10(%arg0: i32) -> (i32, i32) {
    %c0_i32 = arith.constant 0 : i32
    %c0_i32_0 = arith.constant 0 : i32
    %c0_i32_1 = arith.constant 0 : i32
    return %c0_i32, %c0_i32_0 : i32, i32
  }
  func.func @transform_11(%arg0: i32) -> (i32, i32) {
    %c0_i32 = arith.constant 0 : i32
    %c0_i32_0 = arith.constant 0 : i32
    return %c0_i32, %arg0 : i32, i32
  }
}

</mosaic_0001>

<llo_original>
// kernel: t_forward.1
$region0: #{t_forward.1}
  #allocation0 [shape = 'u32[]', space=smem, size = 0x4, offset = 0x4, fixed_abs, tag = 'smem constant byte address 0x4 - core index']
  #allocation1 [shape = 'u32[72,128]{1,0:T(1,128)}', space=vmem, size = 0x9000, scoped, tag = 'internal scratch']
  #allocation2 [shape = 'f32[1,1]{1,0:T(1,128)S(1)}', space=vmem, size = 0x200, scoped, tag = 'scoped memory for t_forward.1']
  %s0 = inlined_call_operand.vmem [shape: f32[32,8], index: 0, kind: input, shape index: {}]
  %s1 = inlined_call_operand.vmem [shape: f32[32,8], index: 1, kind: input, shape index: {}]
  %s2 = inlined_call_operand.vmem [shape: f32[400,32], index: 2, kind: input, shape index: {}]
  %s3 = inlined_call_operand.vmem [shape: f32[400,32], index: 3, kind: input, shape index: {}]
  %s4 = inlined_call_operand.vmem [shape: f32[400,1], index: 4, kind: input, shape index: {}]
  %s5 = inlined_call_operand.hbm [shape: f32[400,400], index: 5, kind: input, shape index: {}]
  %s6 = inlined_call_operand.vmem [shape: f32[400,1], index: 6, kind: input, shape index: {}]
  %s7 = inlined_call_operand.hbm [shape: f32[400,400], index: 7, kind: input, shape index: {}]
  %s8 = inlined_call_operand.vmem [shape: f32[400,1], index: 8, kind: input, shape index: {}]
  %s9 = inlined_call_operand.vmem [shape: f32[400,1], index: 9, kind: input, shape index: {}]
  %s10 = inlined_call_operand.<no memory space> [shape: f32[1,1], index: 10, kind: input, shape index: {}]
  %s11 = inlined_call_operand.hbm [shape: f32[1,8], index: 11, kind: output, shape index: {}]
  %s12 = sld [smem:[#allocation0]]
  $region62: #{t_forward.1} parent=0
    _
  %s14 = ssub.s32 1, %s12
  %s15 = scalar_select 0, %s14, %s12
  %v16 = vstv %s10
  %17 = vst [vmem:[#allocation2] sm:$0x1] %v16
  $region1: #{t_forward.1} parent=0
    #allocation3 [shape = 'u8[819200]{0}', space=vmem, size = 0xc8000, scoped, tag = 'input window, operand 5, single buffered']
    #allocation4 [shape = 's32[1]{0}', space=sflag, size = 0x4, scoped, tag = 'scoped memory for t_forward.1']
    #allocation5 [shape = 's32[1]{0}', space=sflag, size = 0x4, scoped, tag = 'scoped memory for t_forward.1']
    #allocation6 [shape = 'u8[819200]{0}', space=vmem, size = 0xc8000, scoped, tag = 'input window, operand 7, single buffered']
    #allocation7 [shape = 's32[1]{0}', space=sflag, size = 0x4, scoped, tag = 'scoped memory for t_forward.1']
    #allocation8 [shape = 'u8[512]{0}', space=vmem, size = 0x400, scoped, tag = 'output window, operand 0, single buffered']
    %18 = vsyncpa [#allocation4], 0
    %19 = vsyncpa [#allocation7], 0
    %20 = vsyncpa [#allocation5], 0
    // Predicated region
    $region2: #{t_forward.1} parent=1 // pred_check
      _
    $region3: #{t_forward.1} parent=1 // pred_check_branch
      %22 = sbr.rel (0) target = $region5
    $region4: #{t_forward.1} parent=1 // pred_region
      _
    $region5: #{t_forward.1} parent=1 // pred_fallthru
      _
    // Predicated region
    $region6: #{t_forward.1} parent=1 // pred_check
      _
    $region7: #{t_forward.1} parent=1 // pred_check_branch
      %24 = sbr.rel (0) target = $region9
    $region8: #{t_forward.1} parent=1 // pred_region
      _
    $region9: #{t_forward.1} parent=1 // pred_fallthru
      _
    // Predicated region
    $region10: #{t_forward.1} parent=1 // pred_check
      _
    $region11: #{t_forward.1} parent=1 // pred_check_branch
      %26 = sbr.rel (0) target = $region13
    $region12: #{t_forward.1} parent=1 // pred_region
      _
    $region13: #{t_forward.1} parent=1 // pred_fallthru
      _
    // Predicated region
    $region14: #{t_forward.1} parent=1 // pred_check
      _
    $region15: #{t_forward.1} parent=1 // pred_check_branch
      %28 = sbr.rel (0) target = $region17
    $region16: #{t_forward.1} parent=1 // pred_region
      _
    $region17: #{t_forward.1} parent=1 // pred_fallthru
      _
    // Predicated region
    $region18: #{t_forward.1} parent=1 // pred_check
      _
    $region19: #{t_forward.1} parent=1 // pred_check_branch
      %30 = sbr.rel (0) target = $region21
    $region20: #{t_forward.1} parent=1 // pred_region
      _
    $region21: #{t_forward.1} parent=1 // pred_fallthru
      _
    // Predicated region
    $region22: #{t_forward.1} parent=1 // pred_check
      _
    $region23: #{t_forward.1} parent=1 // pred_check_branch
      %32 = sbr.rel (0) target = $region25
    $region24: #{t_forward.1} parent=1 // pred_region
      %34 = vsyncadd [#allocation4], 0
      %s35 = sshll.u32 %s5, 4
      %s36 = int_to_ptr.hbm [resolvable:$true] %s35
      %s37 = sshll.u32 [#allocation3], 4
      %s38 = int_to_ptr.vmem [resolvable:$true] %s37
      %43 = dma.hbm_to_vmem [thread:$0]  %s36, 25600, %s38, [#allocation4], 512, 512, 32
    $region25: #{t_forward.1} parent=1 // pred_fallthru
      _
    // Predicated region
    $region26: #{t_forward.1} parent=1 // pred_check
      _
    $region27: #{t_forward.1} parent=1 // pred_check_branch
      %45 = sbr.rel (0) target = $region29
    $region28: #{t_forward.1} parent=1 // pred_region
      _
    $region29: #{t_forward.1} parent=1 // pred_fallthru
      _
    // Predicated region
    $region30: #{t_forward.1} parent=1 // pred_check
      _
    $region31: #{t_forward.1} parent=1 // pred_check_branch
      %47 = sbr.rel (0) target = $region33
    $region32: #{t_forward.1} parent=1 // pred_region
      %49 = vsyncadd [#allocation7], 0
      %s50 = sshll.u32 %s7, 4
      %s51 = int_to_ptr.hbm [resolvable:$true] %s50
      %s52 = sshll.u32 [#allocation6], 4
      %s53 = int_to_ptr.vmem [resolvable:$true] %s52
      %58 = dma.hbm_to_vmem [thread:$0]  %s51, 25600, %s53, [#allocation7], 512, 512, 32
    $region33: #{t_forward.1} parent=1 // pred_fallthru
      _
    // Predicated region
    $region34: #{t_forward.1} parent=1 // pred_check
      _
    $region35: #{t_forward.1} parent=1 // pred_check_branch
      %60 = sbr.rel (0) target = $region37
    $region36: #{t_forward.1} parent=1 // pred_region
      _
    $region37: #{t_forward.1} parent=1 // pred_fallthru
      _
    // Predicated region
    $region38: #{t_forward.1} parent=1 // pred_check
      _
    $region39: #{t_forward.1} parent=1 // pred_check_branch
      %62 = sbr.rel (0) target = $region41
    $region40: #{t_forward.1} parent=1 // pred_region
      _
    $region41: #{t_forward.1} parent=1 // pred_fallthru
      _
    // Predicated region
    $region42: #{t_forward.1} parent=1 // pred_check
      _
    $region43: #{t_forward.1} parent=1 // pred_check_branch
      %64 = sbr.rel (0) target = $region45
    $region44: #{t_forward.1} parent=1 // pred_region
      _
    $region45: #{t_forward.1} parent=1 // pred_fallthru
      _
    // Predicated region
    $region46: #{t_forward.1} parent=1 // pred_check
      _
    $region47: #{t_forward.1} parent=1 // pred_check_branch
      %66 = sbr.rel (0) target = $region49
    $region48: #{t_forward.1} parent=1 // pred_region
      %68 = dma.done [#allocation4], 25600
    $region49: #{t_forward.1} parent=1 // pred_fallthru
      _
    // Predicated region
    $region50: #{t_forward.1} parent=1 // pred_check
      _
    $region51: #{t_forward.1} parent=1 // pred_check_branch
      %70 = sbr.rel (0) target = $region53
    $region52: #{t_forward.1} parent=1 // pred_region
      %72 = dma.done [#allocation7], 25600
    $region53: #{t_forward.1} parent=1 // pred_fallthru
      _
    %v73 = vld [vmem:[%s2] sm:$0xff]
    %v74 = vld [vmem:[%s2 + $0x8] sm:$0xff]
    %v75 = vld [vmem:[%s2 + $0x10] sm:$0xff]
    %v76 = vld [vmem:[%s2 + $0x18] sm:$0xff]
    %v77 = vld [vmem:[%s2 + $0x20] sm:$0xff]
    %v78 = vld [vmem:[%s2 + $0x28] sm:$0xff]
    %v79 = vld [vmem:[%s2 + $0x30] sm:$0xff]
    %v80 = vld [vmem:[%s2 + $0x38] sm:$0xff]
    %v81 = vld [vmem:[%s2 + $0x40] sm:$0xff]
    %v82 = vld [vmem:[%s2 + $0x48] sm:$0xff]
    %v83 = vld [vmem:[%s2 + $0x50] sm:$0xff]
    %v84 = vld [vmem:[%s2 + $0x58] sm:$0xff]
    %v85 = vld [vmem:[%s2 + $0x60] sm:$0xff]
    %v86 = vld [vmem:[%s2 + $0x68] sm:$0xff]
    %v87 = vld [vmem:[%s2 + $0x70] sm:$0xff]
    %v88 = vld [vmem:[%s2 + $0x78] sm:$0xff]
    %v89 = vld [vmem:[%s2 + $0x80] sm:$0xff]
    %v90 = vld [vmem:[%s2 + $0x88] sm:$0xff]
    %v91 = vld [vmem:[%s2 + $0x90] sm:$0xff]
    %v92 = vld [vmem:[%s2 + $0x98] sm:$0xff]
    %v93 = vld [vmem:[%s2 + $0xa0] sm:$0xff]
    %v94 = vld [vmem:[%s2 + $0xa8] sm:$0xff]
    %v95 = vld [vmem:[%s2 + $0xb0] sm:$0xff]
    %v96 = vld [vmem:[%s2 + $0xb8] sm:$0xff]
    %v97 = vld [vmem:[%s2 + $0xc0] sm:$0xff]
    %v98 = vld [vmem:[%s2 + $0xc8] sm:$0xff]
    %v99 = vld [vmem:[%s2 + $0xd0] sm:$0xff]
    %v100 = vld [vmem:[%s2 + $0xd8] sm:$0xff]
    %v101 = vld [vmem:[%s2 + $0xe0] sm:$0xff]
    %v102 = vld [vmem:[%s2 + $0xe8] sm:$0xff]
    %v103 = vld [vmem:[%s2 + $0xf0] sm:$0xff]
    %v104 = vld [vmem:[%s2 + $0xf8] sm:$0xff]
    %v105 = vld [vmem:[%s2 + $0x100] sm:$0xff]
    %v106 = vld [vmem:[%s2 + $0x108] sm:$0xff]
    %v107 = vld [vmem:[%s2 + $0x110] sm:$0xff]
    %v108 = vld [vmem:[%s2 + $0x118] sm:$0xff]
    %v109 = vld [vmem:[%s2 + $0x120] sm:$0xff]
    %v110 = vld [vmem:[%s2 + $0x128] sm:$0xff]
    %v111 = vld [vmem:[%s2 + $0x130] sm:$0xff]
    %v112 = vld [vmem:[%s2 + $0x138] sm:$0xff]
    %v113 = vld [vmem:[%s2 + $0x140] sm:$0xff]
    %v114 = vld [vmem:[%s2 + $0x148] sm:$0xff]
    %v115 = vld [vmem:[%s2 + $0x150] sm:$0xff]
    %v116 = vld [vmem:[%s2 + $0x158] sm:$0xff]
    %v117 = vld [vmem:[%s2 + $0x160] sm:$0xff]
    %v118 = vld [vmem:[%s2 + $0x168] sm:$0xff]
    %v119 = vld [vmem:[%s2 + $0x170] sm:$0xff]
    %v120 = vld [vmem:[%s2 + $0x178] sm:$0xff]
    %v121 = vld [vmem:[%s2 + $0x180] sm:$0xff]
    %v122 = vld [vmem:[%s2 + $0x188] sm:$0xff]
    %v123 = vld [vmem:[%s0] sm:$0xff]
    %v124 = vld [vmem:[%s0 + $0x8] sm:$0xff]
    %v125 = vld [vmem:[%s0 + $0x10] sm:$0xff]
    %v126 = vld [vmem:[%s0 + $0x18] sm:$0xff]
    %v127 = vld [vmem:[%s3] sm:$0xff]
    %v128 = vld [vmem:[%s3 + $0x8] sm:$0xff]
    %v129 = vld [vmem:[%s3 + $0x10] sm:$0xff]
    %v130 = vld [vmem:[%s3 + $0x18] sm:$0xff]
    %v131 = vld [vmem:[%s3 + $0x20] sm:$0xff]
    %v132 = vld [vmem:[%s3 + $0x28] sm:$0xff]
    %v133 = vld [vmem:[%s3 + $0x30] sm:$0xff]
    %v134 = vld [vmem:[%s3 + $0x38] sm:$0xff]
    %v135 = vld [vmem:[%s3 + $0x40] sm:$0xff]
    %v136 = vld [vmem:[%s3 + $0x48] sm:$0xff]
    %v137 = vld [vmem:[%s3 + $0x50] sm:$0xff]
    %v138 = vld [vmem:[%s3 + $0x58] sm:$0xff]
    %v139 = vld [vmem:[%s3 + $0x60] sm:$0xff]
    %v140 = vld [vmem:[%s3 + $0x68] sm:$0xff]
    %v141 = vld [vmem:[%s3 + $0x70] sm:$0xff]
    %v142 = vld [vmem:[%s3 + $0x78] sm:$0xff]
    %v143 = vld [vmem:[%s3 + $0x80] sm:$0xff]
    %v144 = vld [vmem:[%s3 + $0x88] sm:$0xff]
    %v145 = vld [vmem:[%s3 + $0x90] sm:$0xff]
    %v146 = vld [vmem:[%s3 + $0x98] sm:$0xff]
    %v147 = vld [vmem:[%s3 + $0xa0] sm:$0xff]
    %v148 = vld [vmem:[%s3 + $0xa8] sm:$0xff]
    %v149 = vld [vmem:[%s3 + $0xb0] sm:$0xff]
    %v150 = vld [vmem:[%s3 + $0xb8] sm:$0xff]
    %v151 = vld [vmem:[%s3 + $0xc0] sm:$0xff]
    %v152 = vld [vmem:[%s3 + $0xc8] sm:$0xff]
    %v153 = vld [vmem:[%s3 + $0xd0] sm:$0xff]
    %v154 = vld [vmem:[%s3 + $0xd8] sm:$0xff]
    %v155 = vld [vmem:[%s3 + $0xe0] sm:$0xff]
    %v156 = vld [vmem:[%s3 + $0xe8] sm:$0xff]
    %v157 = vld [vmem:[%s3 + $0xf0] sm:$0xff]
    %v158 = vld [vmem:[%s3 + $0xf8] sm:$0xff]
    %v159 = vld [vmem:[%s3 + $0x100] sm:$0xff]
    %v160 = vld [vmem:[%s3 + $0x108] sm:$0xff]
    %v161 = vld [vmem:[%s3 + $0x110] sm:$0xff]
    %v162 = vld [vmem:[%s3 + $0x118] sm:$0xff]
    %v163 = vld [vmem:[%s3 + $0x120] sm:$0xff]
    %v164 = vld [vmem:[%s3 + $0x128] sm:$0xff]
    %v165 = vld [vmem:[%s3 + $0x130] sm:$0xff]
    %v166 = vld [vmem:[%s3 + $0x138] sm:$0xff]
    %v167 = vld [vmem:[%s3 + $0x140] sm:$0xff]
    %v168 = vld [vmem:[%s3 + $0x148] sm:$0xff]
    %v169 = vld [vmem:[%s3 + $0x150] sm:$0xff]
    %v170 = vld [vmem:[%s3 + $0x158] sm:$0xff]
    %v171 = vld [vmem:[%s3 + $0x160] sm:$0xff]
    %v172 = vld [vmem:[%s3 + $0x168] sm:$0xff]
    %v173 = vld [vmem:[%s3 + $0x170] sm:$0xff]
    %v174 = vld [vmem:[%s3 + $0x178] sm:$0xff]
    %v175 = vld [vmem:[%s3 + $0x180] sm:$0xff]
    %v176 = vld [vmem:[%s3 + $0x188] sm:$0xff]
    %v177 = vld [vmem:[%s1] sm:$0xff]
    %v178 = vld [vmem:[%s1 + $0x8] sm:$0xff]
    %v179 = vld [vmem:[%s1 + $0x10] sm:$0xff]
    %v180 = vld [vmem:[%s1 + $0x18] sm:$0xff]
    %vm181 = vcmask 261120
    %v183 = vsel %vm181, %v127, 0
    %v186 = vsel %vm181, %v128, 0
    %v189 = vsel %vm181, %v129, 0
    %v192 = vsel %vm181, %v130, 0
    %v195 = vsel %vm181, %v131, 0
    %v198 = vsel %vm181, %v132, 0
    %v201 = vsel %vm181, %v133, 0
    %v204 = vsel %vm181, %v134, 0
    %v207 = vsel %vm181, %v135, 0
    %v210 = vsel %vm181, %v136, 0
    %v213 = vsel %vm181, %v137, 0
    %v216 = vsel %vm181, %v138, 0
    %v219 = vsel %vm181, %v139, 0
    %v222 = vsel %vm181, %v140, 0
    %v225 = vsel %vm181, %v141, 0
    %v228 = vsel %vm181, %v142, 0
    %v231 = vsel %vm181, %v143, 0
    %v234 = vsel %vm181, %v144, 0
    %v237 = vsel %vm181, %v145, 0
    %v240 = vsel %vm181, %v146, 0
    %v243 = vsel %vm181, %v147, 0
    %v246 = vsel %vm181, %v148, 0
    %v249 = vsel %vm181, %v149, 0
    %v252 = vsel %vm181, %v150, 0
    %v255 = vsel %vm181, %v151, 0
    %v258 = vsel %vm181, %v152, 0
    %v261 = vsel %vm181, %v153, 0
    %v264 = vsel %vm181, %v154, 0
    %v267 = vsel %vm181, %v155, 0
    %v270 = vsel %vm181, %v156, 0
    %v273 = vsel %vm181, %v157, 0
    %v276 = vsel %vm181, %v158, 0
    %v279 = vsel %vm181, %v159, 0
    %v282 = vsel %vm181, %v160, 0
    %v285 = vsel %vm181, %v161, 0
    %v288 = vsel %vm181, %v162, 0
    %v291 = vsel %vm181, %v163, 0
    %v294 = vsel %vm181, %v164, 0
    %v297 = vsel %vm181, %v165, 0
    %v300 = vsel %vm181, %v166, 0
    %v303 = vsel %vm181, %v167, 0
    %v306 = vsel %vm181, %v168, 0
    %v309 = vsel %vm181, %v169, 0
    %v312 = vsel %vm181, %v170, 0
    %v315 = vsel %vm181, %v171, 0
    %v318 = vsel %vm181, %v172, 0
    %v321 = vsel %vm181, %v173, 0
    %v324 = vsel %vm181, %v174, 0
    %v327 = vsel %vm181, %v175, 0
    %v330 = vsel %vm181, %v176, 0
    %332 = vmatpush.msra.mxu0 0.0
    %333 = vmatpush.msra.mxu0 0.0
    %334 = vmatpush.msra.mxu0 0.0
    %335 = vmatpush.msra.mxu0 0.0
    %336 = vmatpush.msra.mxu0 0.0
    %337 = vmatpush.msra.mxu0 0.0
    %338 = vmatpush.msra.mxu0 0.0
    %339 = vmatpush.msra.mxu0 0.0
    %340 = vmatpush.msra.mxu0 0.0
    %341 = vmatpush.msra.mxu0 0.0
    %342 = vmatpush.msra.mxu0 0.0
    %343 = vmatpush.msra.mxu0 0.0
    %344 = vmatpush.msra.mxu0 %v180
    %345 = vmatpush.msra.mxu0 %v179
    %346 = vmatpush.msra.mxu0 %v178
    %347 = vmatpush.msra.mxu0 %v177
    %348 = vmatmul.f32.gmra.mxu0 %v183
    %v349 = vpop.f32.mrf.mxu0
    %v350 = vadd.f32 0.0, %v349
    %351 = vmatmul.f32.gmra.mxu0 %v186
    %v352 = vpop.f32.mrf.mxu0
    %v353 = vadd.f32 0.0, %v352
    %354 = vmatmul.f32.gmra.mxu0 %v189
    %v355 = vpop.f32.mrf.mxu0
    %v356 = vadd.f32 0.0, %v355
    %357 = vmatmul.f32.gmra.mxu0 %v192
    %v358 = vpop.f32.mrf.mxu0
    %v359 = vadd.f32 0.0, %v358
    %360 = vmatmul.f32.gmra.mxu0 %v195
    %v361 = vpop.f32.mrf.mxu0
    %v362 = vadd.f32 0.0, %v361
    %363 = vmatmul.f32.gmra.mxu0 %v198
    %v364 = vpop.f32.mrf.mxu0
    %v365 = vadd.f32 0.0, %v364
    %366 = vmatmul.f32.gmra.mxu0 %v201
    %v367 = vpop.f32.mrf.mxu0
    %v368 = vadd.f32 0.0, %v367
    %369 = vmatmul.f32.gmra.mxu0 %v204
    %v370 = vpop.f32.mrf.mxu0
    %v371 = vadd.f32 0.0, %v370
    %372 = vmatmul.f32.gmra.mxu0 %v207
    %v373 = vpop.f32.mrf.mxu0
    %v374 = vadd.f32 0.0, %v373
    %375 = vmatmul.f32.gmra.mxu0 %v210
    %v376 = vpop.f32.mrf.mxu0
    %v377 = vadd.f32 0.0, %v376
    %378 = vmatmul.f32.gmra.mxu0 %v213
    %v379 = vpop.f32.mrf.mxu0
    %v380 = vadd.f32 0.0, %v379
    %381 = vmatmul.f32.gmra.mxu0 %v216
    %v382 = vpop.f32.mrf.mxu0
    %v383 = vadd.f32 0.0, %v382
    %384 = vmatmul.f32.gmra.mxu0 %v219
    %v385 = vpop.f32.mrf.mxu0
    %v386 = vadd.f32 0.0, %v385
    %387 = vmatmul.f32.gmra.mxu0 %v222
    %v388 = vpop.f32.mrf.mxu0
    %v389 = vadd.f32 0.0, %v388
    %390 = vmatmul.f32.gmra.mxu0 %v225
    %v391 = vpop.f32.mrf.mxu0
    %v392 = vadd.f32 0.0, %v391
    %393 = vmatmul.f32.gmra.mxu0 %v228
    %v394 = vpop.f32.mrf.mxu0
    %v395 = vadd.f32 0.0, %v394
    %396 = vmatmul.f32.gmra.mxu0 %v231
    %v397 = vpop.f32.mrf.mxu0
    %v398 = vadd.f32 0.0, %v397
    %399 = vmatmul.f32.gmra.mxu0 %v234
    %v400 = vpop.f32.mrf.mxu0
    %v401 = vadd.f32 0.0, %v400
    %402 = vmatmul.f32.gmra.mxu0 %v237
    %v403 = vpop.f32.mrf.mxu0
    %v404 = vadd.f32 0.0, %v403
    %405 = vmatmul.f32.gmra.mxu0 %v240
    %v406 = vpop.f32.mrf.mxu0
    %v407 = vadd.f32 0.0, %v406
    %408 = vmatmul.f32.gmra.mxu0 %v243
    %v409 = vpop.f32.mrf.mxu0
    %v410 = vadd.f32 0.0, %v409
    %411 = vmatmul.f32.gmra.mxu0 %v246
    %v412 = vpop.f32.mrf.mxu0
    %v413 = vadd.f32 0.0, %v412
    %414 = vmatmul.f32.gmra.mxu0 %v249
    %v415 = vpop.f32.mrf.mxu0
    %v416 = vadd.f32 0.0, %v415
    %417 = vmatmul.f32.gmra.mxu0 %v252
    %v418 = vpop.f32.mrf.mxu0
    %v419 = vadd.f32 0.0, %v418
    %420 = vmatmul.f32.gmra.mxu0 %v255
    %v421 = vpop.f32.mrf.mxu0
    %v422 = vadd.f32 0.0, %v421
    %423 = vmatmul.f32.gmra.mxu0 %v258
    %v424 = vpop.f32.mrf.mxu0
    %v425 = vadd.f32 0.0, %v424
    %426 = vmatmul.f32.gmra.mxu0 %v261
    %v427 = vpop.f32.mrf.mxu0
    %v428 = vadd.f32 0.0, %v427
    %429 = vmatmul.f32.gmra.mxu0 %v264
    %v430 = vpop.f32.mrf.mxu0
    %v431 = vadd.f32 0.0, %v430
    %432 = vmatmul.f32.gmra.mxu0 %v267
    %v433 = vpop.f32.mrf.mxu0
    %v434 = vadd.f32 0.0, %v433
    %435 = vmatmul.f32.gmra.mxu0 %v270
    %v436 = vpop.f32.mrf.mxu0
    %v437 = vadd.f32 0.0, %v436
    %438 = vmatmul.f32.gmra.mxu0 %v273
    %v439 = vpop.f32.mrf.mxu0
    %v440 = vadd.f32 0.0, %v439
    %441 = vmatmul.f32.gmra.mxu0 %v276
    %v442 = vpop.f32.mrf.mxu0
    %v443 = vadd.f32 0.0, %v442
    %444 = vmatmul.f32.gmra.mxu0 %v279
    %v445 = vpop.f32.mrf.mxu0
    %v446 = vadd.f32 0.0, %v445
    %447 = vmatmul.f32.gmra.mxu0 %v282
    %v448 = vpop.f32.mrf.mxu0
    %v449 = vadd.f32 0.0, %v448
    %450 = vmatmul.f32.gmra.mxu0 %v285
    %v451 = vpop.f32.mrf.mxu0
    %v452 = vadd.f32 0.0, %v451
    %453 = vmatmul.f32.gmra.mxu0 %v288
    %v454 = vpop.f32.mrf.mxu0
    %v455 = vadd.f32 0.0, %v454
    %456 = vmatmul.f32.gmra.mxu0 %v291
    %v457 = vpop.f32.mrf.mxu0
    %v458 = vadd.f32 0.0, %v457
    %459 = vmatmul.f32.gmra.mxu0 %v294
    %v460 = vpop.f32.mrf.mxu0
    %v461 = vadd.f32 0.0, %v460
    %462 = vmatmul.f32.gmra.mxu0 %v297
    %v463 = vpop.f32.mrf.mxu0
    %v464 = vadd.f32 0.0, %v463
    %465 = vmatmul.f32.gmra.mxu0 %v300
    %v466 = vpop.f32.mrf.mxu0
    %v467 = vadd.f32 0.0, %v466
    %468 = vmatmul.f32.gmra.mxu0 %v303
    %v469 = vpop.f32.mrf.mxu0
    %v470 = vadd.f32 0.0, %v469
    %471 = vmatmul.f32.gmra.mxu0 %v306
    %v472 = vpop.f32.mrf.mxu0
    %v473 = vadd.f32 0.0, %v472
    %474 = vmatmul.f32.gmra.mxu0 %v309
    %v475 = vpop.f32.mrf.mxu0
    %v476 = vadd.f32 0.0, %v475
    %477 = vmatmul.f32.gmra.mxu0 %v312
    %v478 = vpop.f32.mrf.mxu0
    %v479 = vadd.f32 0.0, %v478
    %480 = vmatmul.f32.gmra.mxu0 %v315
    %v481 = vpop.f32.mrf.mxu0
    %v482 = vadd.f32 0.0, %v481
    %483 = vmatmul.f32.gmra.mxu0 %v318
    %v484 = vpop.f32.mrf.mxu0
    %v485 = vadd.f32 0.0, %v484
    %486 = vmatmul.f32.gmra.mxu0 %v321
    %v487 = vpop.f32.mrf.mxu0
    %v488 = vadd.f32 0.0, %v487
    %489 = vmatmul.f32.gmra.mxu0 %v324
    %v490 = vpop.f32.mrf.mxu0
    %v491 = vadd.f32 0.0, %v490
    %492 = vmatmul.f32.gmra.mxu0 %v327
    %v493 = vpop.f32.mrf.mxu0
    %v494 = vadd.f32 0.0, %v493
    %495 = vmatmul.f32.gmra.mxu0 %v330
    %v496 = vpop.f32.mrf.mxu0
    %v497 = vadd.f32 0.0, %v496
    %498 = vdwg.mxu0
    %v500 = vsel %vm181, %v73, 0
    %v503 = vsel %vm181, %v74, 0
    %v506 = vsel %vm181, %v75, 0
    %v509 = vsel %vm181, %v76, 0
    %v512 = vsel %vm181, %v77, 0
    %v515 = vsel %vm181, %v78, 0
    %v518 = vsel %vm181, %v79, 0
    %v521 = vsel %vm181, %v80, 0
    %v524 = vsel %vm181, %v81, 0
    %v527 = vsel %vm181, %v82, 0
    %v530 = vsel %vm181, %v83, 0
    %v533 = vsel %vm181, %v84, 0
    %v536 = vsel %vm181, %v85, 0
    %v539 = vsel %vm181, %v86, 0
    %v542 = vsel %vm181, %v87, 0
    %v545 = vsel %vm181, %v88, 0
    %v548 = vsel %vm181, %v89, 0
    %v551 = vsel %vm181, %v90, 0
    %v554 = vsel %vm181, %v91, 0
    %v557 = vsel %vm181, %v92, 0
    %v560 = vsel %vm181, %v93, 0
    %v563 = vsel %vm181, %v94, 0
    %v566 = vsel %vm181, %v95, 0
    %v569 = vsel %vm181, %v96, 0
    %v572 = vsel %vm181, %v97, 0
    %v575 = vsel %vm181, %v98, 0
    %v578 = vsel %vm181, %v99, 0
    %v581 = vsel %vm181, %v100, 0
    %v584 = vsel %vm181, %v101, 0
    %v587 = vsel %vm181, %v102, 0
    %v590 = vsel %vm181, %v103, 0
    %v593 = vsel %vm181, %v104, 0
    %v596 = vsel %vm181, %v105, 0
    %v599 = vsel %vm181, %v106, 0
    %v602 = vsel %vm181, %v107, 0
    %v605 = vsel %vm181, %v108, 0
    %v608 = vsel %vm181, %v109, 0
    %v611 = vsel %vm181, %v110, 0
    %v614 = vsel %vm181, %v111, 0
    %v617 = vsel %vm181, %v112, 0
    %v620 = vsel %vm181, %v113, 0
    %v623 = vsel %vm181, %v114, 0
    %v626 = vsel %vm181, %v115, 0
    %v629 = vsel %vm181, %v116, 0
    %v632 = vsel %vm181, %v117, 0
    %v635 = vsel %vm181, %v118, 0
    %v638 = vsel %vm181, %v119, 0
    %v641 = vsel %vm181, %v120, 0
    %v644 = vsel %vm181, %v121, 0
    %v647 = vsel %vm181, %v122, 0
    %649 = vmatpush.msra.mxu0 0.0
    %650 = vmatpush.msra.mxu0 0.0
    %651 = vmatpush.msra.mxu0 0.0
    %652 = vmatpush.msra.mxu0 0.0
    %653 = vmatpush.msra.mxu0 0.0
    %654 = vmatpush.msra.mxu0 0.0
    %655 = vmatpush.msra.mxu0 0.0
    %656 = vmatpush.msra.mxu0 0.0
    %657 = vmatpush.msra.mxu0 0.0
    %658 = vmatpush.msra.mxu0 0.0
    %659 = vmatpush.msra.mxu0 0.0
    %660 = vmatpush.msra.mxu0 0.0
    %661 = vmatpush.msra.mxu0 %v126
    %662 = vmatpush.msra.mxu0 %v125
    %663 = vmatpush.msra.mxu0 %v124
    %664 = vmatpush.msra.mxu0 %v123
    %665 = vmatmul.f32.gmra.mxu0 %v500
    %v666 = vpop.f32.mrf.mxu0
    %v667 = vadd.f32 %v350, %v666
    %668 = vmatmul.f32.gmra.mxu0 %v503
    %v669 = vpop.f32.mrf.mxu0
    %v670 = vadd.f32 %v353, %v669
    %671 = vmatmul.f32.gmra.mxu0 %v506
    %v672 = vpop.f32.mrf.mxu0
    %v673 = vadd.f32 %v356, %v672
    %674 = vmatmul.f32.gmra.mxu0 %v509
    %v675 = vpop.f32.mrf.mxu0
    %v676 = vadd.f32 %v359, %v675
    %677 = vmatmul.f32.gmra.mxu0 %v512
    %v678 = vpop.f32.mrf.mxu0
    %v679 = vadd.f32 %v362, %v678
    %680 = vmatmul.f32.gmra.mxu0 %v515
    %v681 = vpop.f32.mrf.mxu0
    %v682 = vadd.f32 %v365, %v681
    %683 = vmatmul.f32.gmra.mxu0 %v518
    %v684 = vpop.f32.mrf.mxu0
    %v685 = vadd.f32 %v368, %v684
    %686 = vmatmul.f32.gmra.mxu0 %v521
    %v687 = vpop.f32.mrf.mxu0
    %v688 = vadd.f32 %v371, %v687
    %689 = vmatmul.f32.gmra.mxu0 %v524
    %v690 = vpop.f32.mrf.mxu0
    %v691 = vadd.f32 %v374, %v690
    %692 = vmatmul.f32.gmra.mxu0 %v527
    %v693 = vpop.f32.mrf.mxu0
    %v694 = vadd.f32 %v377, %v693
    %695 = vmatmul.f32.gmra.mxu0 %v530
    %v696 = vpop.f32.mrf.mxu0
    %v697 = vadd.f32 %v380, %v696
    %698 = vmatmul.f32.gmra.mxu0 %v533
    %v699 = vpop.f32.mrf.mxu0
    %v700 = vadd.f32 %v383, %v699
    %701 = vmatmul.f32.gmra.mxu0 %v536
    %v702 = vpop.f32.mrf.mxu0
    %v703 = vadd.f32 %v386, %v702
    %704 = vmatmul.f32.gmra.mxu0 %v539
    %v705 = vpop.f32.mrf.mxu0
    %v706 = vadd.f32 %v389, %v705
    %707 = vmatmul.f32.gmra.mxu0 %v542
    %v708 = vpop.f32.mrf.mxu0
    %v709 = vadd.f32 %v392, %v708
    %710 = vmatmul.f32.gmra.mxu0 %v545
    %v711 = vpop.f32.mrf.mxu0
    %v712 = vadd.f32 %v395, %v711
    %713 = vmatmul.f32.gmra.mxu0 %v548
    %v714 = vpop.f32.mrf.mxu0
    %v715 = vadd.f32 %v398, %v714
    %716 = vmatmul.f32.gmra.mxu0 %v551
    %v717 = vpop.f32.mrf.mxu0
    %v718 = vadd.f32 %v401, %v717
    %719 = vmatmul.f32.gmra.mxu0 %v554
    %v720 = vpop.f32.mrf.mxu0
    %v721 = vadd.f32 %v404, %v720
    %722 = vmatmul.f32.gmra.mxu0 %v557
    %v723 = vpop.f32.mrf.mxu0
    %v724 = vadd.f32 %v407, %v723
    %725 = vmatmul.f32.gmra.mxu0 %v560
    %v726 = vpop.f32.mrf.mxu0
    %v727 = vadd.f32 %v410, %v726
    %728 = vmatmul.f32.gmra.mxu0 %v563
    %v729 = vpop.f32.mrf.mxu0
    %v730 = vadd.f32 %v413, %v729
    %731 = vmatmul.f32.gmra.mxu0 %v566
    %v732 = vpop.f32.mrf.mxu0
    %v733 = vadd.f32 %v416, %v732
    %734 = vmatmul.f32.gmra.mxu0 %v569
    %v735 = vpop.f32.mrf.mxu0
    %v736 = vadd.f32 %v419, %v735
    %737 = vmatmul.f32.gmra.mxu0 %v572
    %v738 = vpop.f32.mrf.mxu0
    %v739 = vadd.f32 %v422, %v738
    %740 = vmatmul.f32.gmra.mxu0 %v575
    %v741 = vpop.f32.mrf.mxu0
    %v742 = vadd.f32 %v425, %v741
    %743 = vmatmul.f32.gmra.mxu0 %v578
    %v744 = vpop.f32.mrf.mxu0
    %v745 = vadd.f32 %v428, %v744
    %746 = vmatmul.f32.gmra.mxu0 %v581
    %v747 = vpop.f32.mrf.mxu0
    %v748 = vadd.f32 %v431, %v747
    %749 = vmatmul.f32.gmra.mxu0 %v584
    %v750 = vpop.f32.mrf.mxu0
    %v751 = vadd.f32 %v434, %v750
    %752 = vmatmul.f32.gmra.mxu0 %v587
    %v753 = vpop.f32.mrf.mxu0
    %v754 = vadd.f32 %v437, %v753
    %755 = vmatmul.f32.gmra.mxu0 %v590
    %v756 = vpop.f32.mrf.mxu0
    %v757 = vadd.f32 %v440, %v756
    %758 = vmatmul.f32.gmra.mxu0 %v593
    %v759 = vpop.f32.mrf.mxu0
    %v760 = vadd.f32 %v443, %v759
    %761 = vmatmul.f32.gmra.mxu0 %v596
    %v762 = vpop.f32.mrf.mxu0
    %v763 = vadd.f32 %v446, %v762
    %764 = vmatmul.f32.gmra.mxu0 %v599
    %v765 = vpop.f32.mrf.mxu0
    %v766 = vadd.f32 %v449, %v765
    %767 = vmatmul.f32.gmra.mxu0 %v602
    %v768 = vpop.f32.mrf.mxu0
    %v769 = vadd.f32 %v452, %v768
    %770 = vmatmul.f32.gmra.mxu0 %v605
    %v771 = vpop.f32.mrf.mxu0
    %v772 = vadd.f32 %v455, %v771
    %773 = vmatmul.f32.gmra.mxu0 %v608
    %v774 = vpop.f32.mrf.mxu0
    %v775 = vadd.f32 %v458, %v774
    %776 = vmatmul.f32.gmra.mxu0 %v611
    %v777 = vpop.f32.mrf.mxu0
    %v778 = vadd.f32 %v461, %v777
    %779 = vmatmul.f32.gmra.mxu0 %v614
    %v780 = vpop.f32.mrf.mxu0
    %v781 = vadd.f32 %v464, %v780
    %782 = vmatmul.f32.gmra.mxu0 %v617
    %v783 = vpop.f32.mrf.mxu0
    %v784 = vadd.f32 %v467, %v783
    %785 = vmatmul.f32.gmra.mxu0 %v620
    %v786 = vpop.f32.mrf.mxu0
    %v787 = vadd.f32 %v470, %v786
    %788 = vmatmul.f32.gmra.mxu0 %v623
    %v789 = vpop.f32.mrf.mxu0
    %v790 = vadd.f32 %v473, %v789
    %791 = vmatmul.f32.gmra.mxu0 %v626
    %v792 = vpop.f32.mrf.mxu0
    %v793 = vadd.f32 %v476, %v792
    %794 = vmatmul.f32.gmra.mxu0 %v629
    %v795 = vpop.f32.mrf.mxu0
    %v796 = vadd.f32 %v479, %v795
    %797 = vmatmul.f32.gmra.mxu0 %v632
    %v798 = vpop.f32.mrf.mxu0
    %v799 = vadd.f32 %v482, %v798
    %800 = vmatmul.f32.gmra.mxu0 %v635
    %v801 = vpop.f32.mrf.mxu0
    %v802 = vadd.f32 %v485, %v801
    %803 = vmatmul.f32.gmra.mxu0 %v638
    %v804 = vpop.f32.mrf.mxu0
    %v805 = vadd.f32 %v488, %v804
    %806 = vmatmul.f32.gmra.mxu0 %v641
    %v807 = vpop.f32.mrf.mxu0
    %v808 = vadd.f32 %v491, %v807
    %809 = vmatmul.f32.gmra.mxu0 %v644
    %v810 = vpop.f32.mrf.mxu0
    %v811 = vadd.f32 %v494, %v810
    %812 = vmatmul.f32.gmra.mxu0 %v647
    %v813 = vpop.f32.mrf.mxu0
    %v814 = vadd.f32 %v497, %v813
    %815 = vdwg.mxu0
    %v816 = vld [vmem:[%s4] sm:$0xff]
    %v817 = vld [vmem:[%s4 + $0x8] sm:$0xff]
    %v818 = vld [vmem:[%s4 + $0x10] sm:$0xff]
    %v819 = vld [vmem:[%s4 + $0x18] sm:$0xff]
    %v820 = vld [vmem:[%s4 + $0x20] sm:$0xff]
    %v821 = vld [vmem:[%s4 + $0x28] sm:$0xff]
    %v822 = vld [vmem:[%s4 + $0x30] sm:$0xff]
    %v823 = vld [vmem:[%s4 + $0x38] sm:$0xff]
    %v824 = vld [vmem:[%s4 + $0x40] sm:$0xff]
    %v825 = vld [vmem:[%s4 + $0x48] sm:$0xff]
    %v826 = vld [vmem:[%s4 + $0x50] sm:$0xff]
    %v827 = vld [vmem:[%s4 + $0x58] sm:$0xff]
    %v828 = vld [vmem:[%s4 + $0x60] sm:$0xff]
    %v829 = vld [vmem:[%s4 + $0x68] sm:$0xff]
    %v830 = vld [vmem:[%s4 + $0x70] sm:$0xff]
    %v831 = vld [vmem:[%s4 + $0x78] sm:$0xff]
    %v832 = vld [vmem:[%s4 + $0x80] sm:$0xff]
    %v833 = vld [vmem:[%s4 + $0x88] sm:$0xff]
    %v834 = vld [vmem:[%s4 + $0x90] sm:$0xff]
    %v835 = vld [vmem:[%s4 + $0x98] sm:$0xff]
    %v836 = vld [vmem:[%s4 + $0xa0] sm:$0xff]
    %v837 = vld [vmem:[%s4 + $0xa8] sm:$0xff]
    %v838 = vld [vmem:[%s4 + $0xb0] sm:$0xff]
    %v839 = vld [vmem:[%s4 + $0xb8] sm:$0xff]
    %v840 = vld [vmem:[%s4 + $0xc0] sm:$0xff]
    %v841 = vld [vmem:[%s4 + $0xc8] sm:$0xff]
    %v842 = vld [vmem:[%s4 + $0xd0] sm:$0xff]
    %v843 = vld [vmem:[%s4 + $0xd8] sm:$0xff]
    %v844 = vld [vmem:[%s4 + $0xe0] sm:$0xff]
    %v845 = vld [vmem:[%s4 + $0xe8] sm:$0xff]
    %v846 = vld [vmem:[%s4 + $0xf0] sm:$0xff]
    %v847 = vld [vmem:[%s4 + $0xf8] sm:$0xff]
    %v848 = vld [vmem:[%s4 + $0x100] sm:$0xff]
    %v849 = vld [vmem:[%s4 + $0x108] sm:$0xff]
    %v850 = vld [vmem:[%s4 + $0x110] sm:$0xff]
    %v851 = vld [vmem:[%s4 + $0x118] sm:$0xff]
    %v852 = vld [vmem:[%s4 + $0x120] sm:$0xff]
    %v853 = vld [vmem:[%s4 + $0x128] sm:$0xff]
    %v854 = vld [vmem:[%s4 + $0x130] sm:$0xff]
    %v855 = vld [vmem:[%s4 + $0x138] sm:$0xff]
    %v856 = vld [vmem:[%s4 + $0x140] sm:$0xff]
    %v857 = vld [vmem:[%s4 + $0x148] sm:$0xff]
    %v858 = vld [vmem:[%s4 + $0x150] sm:$0xff]
    %v859 = vld [vmem:[%s4 + $0x158] sm:$0xff]
    %v860 = vld [vmem:[%s4 + $0x160] sm:$0xff]
    %v861 = vld [vmem:[%s4 + $0x168] sm:$0xff]
    %v862 = vld [vmem:[%s4 + $0x170] sm:$0xff]
    %v863 = vld [vmem:[%s4 + $0x178] sm:$0xff]
    %v864 = vld [vmem:[%s4 + $0x180] sm:$0xff]
    %v865 = vld [vmem:[%s4 + $0x188] sm:$0xff]
    %867 = vset.pattern.permute.xlu0 0
    %868 = vperm.xlu0 %867, %v816
    %v869 = vpop.permute.xlu0 %868
    %872 = vset.pattern.permute.xlu0 0
    %873 = vperm.xlu0 %872, %v817
    %v874 = vpop.permute.xlu0 %873
    %877 = vset.pattern.permute.xlu0 0
    %878 = vperm.xlu0 %877, %v818
    %v879 = vpop.permute.xlu0 %878
    %882 = vset.pattern.permute.xlu0 0
    %883 = vperm.xlu0 %882, %v819
    %v884 = vpop.permute.xlu0 %883
    %887 = vset.pattern.permute.xlu0 0
    %888 = vperm.xlu0 %887, %v820
    %v889 = vpop.permute.xlu0 %888
    %892 = vset.pattern.permute.xlu0 0
    %893 = vperm.xlu0 %892, %v821
    %v894 = vpop.permute.xlu0 %893
    %897 = vset.pattern.permute.xlu0 0
    %898 = vperm.xlu0 %897, %v822
    %v899 = vpop.permute.xlu0 %898
    %902 = vset.pattern.permute.xlu0 0
    %903 = vperm.xlu0 %902, %v823
    %v904 = vpop.permute.xlu0 %903
    %907 = vset.pattern.permute.xlu0 0
    %908 = vperm.xlu0 %907, %v824
    %v909 = vpop.permute.xlu0 %908
    %912 = vset.pattern.permute.xlu0 0
    %913 = vperm.xlu0 %912, %v825
    %v914 = vpop.permute.xlu0 %913
    %917 = vset.pattern.permute.xlu0 0
    %918 = vperm.xlu0 %917, %v826
    %v919 = vpop.permute.xlu0 %918
    %922 = vset.pattern.permute.xlu0 0
    %923 = vperm.xlu0 %922, %v827
    %v924 = vpop.permute.xlu0 %923
    %927 = vset.pattern.permute.xlu0 0
    %928 = vperm.xlu0 %927, %v828
    %v929 = vpop.permute.xlu0 %928
    %932 = vset.pattern.permute.xlu0 0
    %933 = vperm.xlu0 %932, %v829
    %v934 = vpop.permute.xlu0 %933
    %937 = vset.pattern.permute.xlu0 0
    %938 = vperm.xlu0 %937, %v830
    %v939 = vpop.permute.xlu0 %938
    %942 = vset.pattern.permute.xlu0 0
    %943 = vperm.xlu0 %942, %v831
    %v944 = vpop.permute.xlu0 %943
    %947 = vset.pattern.permute.xlu0 0
    %948 = vperm.xlu0 %947, %v832
    %v949 = vpop.permute.xlu0 %948
    %952 = vset.pattern.permute.xlu0 0
    %953 = vperm.xlu0 %952, %v833
    %v954 = vpop.permute.xlu0 %953
    %957 = vset.pattern.permute.xlu0 0
    %958 = vperm.xlu0 %957, %v834
    %v959 = vpop.permute.xlu0 %958
    %962 = vset.pattern.permute.xlu0 0
    %963 = vperm.xlu0 %962, %v835
    %v964 = vpop.permute.xlu0 %963
    %967 = vset.pattern.permute.xlu0 0
    %968 = vperm.xlu0 %967, %v836
    %v969 = vpop.permute.xlu0 %968
    %972 = vset.pattern.permute.xlu0 0
    %973 = vperm.xlu0 %972, %v837
    %v974 = vpop.permute.xlu0 %973
    %977 = vset.pattern.permute.xlu0 0
    %978 = vperm.xlu0 %977, %v838
    %v979 = vpop.permute.xlu0 %978
    %982 = vset.pattern.permute.xlu0 0
    %983 = vperm.xlu0 %982, %v839
    %v984 = vpop.permute.xlu0 %983
    %987 = vset.pattern.permute.xlu0 0
    %988 = vperm.xlu0 %987, %v840
    %v989 = vpop.permute.xlu0 %988
    %992 = vset.pattern.permute.xlu0 0
    %993 = vperm.xlu0 %992, %v841
    %v994 = vpop.permute.xlu0 %993
    %997 = vset.pattern.permute.xlu0 0
    %998 = vperm.xlu0 %997, %v842
    %v999 = vpop.permute.xlu0 %998
    %1002 = vset.pattern.permute.xlu0 0
    %1003 = vperm.xlu0 %1002, %v843
    %v1004 = vpop.permute.xlu0 %1003
    %1007 = vset.pattern.permute.xlu0 0
    %1008 = vperm.xlu0 %1007, %v844
    %v1009 = vpop.permute.xlu0 %1008
    %1012 = vset.pattern.permute.xlu0 0
    %1013 = vperm.xlu0 %1012, %v845
    %v1014 = vpop.permute.xlu0 %1013
    %1017 = vset.pattern.permute.xlu0 0
    %1018 = vperm.xlu0 %1017, %v846
    %v1019 = vpop.permute.xlu0 %1018
    %1022 = vset.pattern.permute.xlu0 0
    %1023 = vperm.xlu0 %1022, %v847
    %v1024 = vpop.permute.xlu0 %1023
    %1027 = vset.pattern.permute.xlu0 0
    %1028 = vperm.xlu0 %1027, %v848
    %v1029 = vpop.permute.xlu0 %1028
    %1032 = vset.pattern.permute.xlu0 0
    %1033 = vperm.xlu0 %1032, %v849
    %v1034 = vpop.permute.xlu0 %1033
    %1037 = vset.pattern.permute.xlu0 0
    %1038 = vperm.xlu0 %1037, %v850
    %v1039 = vpop.permute.xlu0 %1038
    %1042 = vset.pattern.permute.xlu0 0
    %1043 = vperm.xlu0 %1042, %v851
    %v1044 = vpop.permute.xlu0 %1043
    %1047 = vset.pattern.permute.xlu0 0
    %1048 = vperm.xlu0 %1047, %v852
    %v1049 = vpop.permute.xlu0 %1048
    %1052 = vset.pattern.permute.xlu0 0
    %1053 = vperm.xlu0 %1052, %v853
    %v1054 = vpop.permute.xlu0 %1053
    %1057 = vset.pattern.permute.xlu0 0
    %1058 = vperm.xlu0 %1057, %v854
    %v1059 = vpop.permute.xlu0 %1058
    %1062 = vset.pattern.permute.xlu0 0
    %1063 = vperm.xlu0 %1062, %v855
    %v1064 = vpop.permute.xlu0 %1063
    %1067 = vset.pattern.permute.xlu0 0
    %1068 = vperm.xlu0 %1067, %v856
    %v1069 = vpop.permute.xlu0 %1068
    %1072 = vset.pattern.permute.xlu0 0
    %1073 = vperm.xlu0 %1072, %v857
    %v1074 = vpop.permute.xlu0 %1073
    %1077 = vset.pattern.permute.xlu0 0
    %1078 = vperm.xlu0 %1077, %v858
    %v1079 = vpop.permute.xlu0 %1078
    %1082 = vset.pattern.permute.xlu0 0
    %1083 = vperm.xlu0 %1082, %v859
    %v1084 = vpop.permute.xlu0 %1083
    %1087 = vset.pattern.permute.xlu0 0
    %1088 = vperm.xlu0 %1087, %v860
    %v1089 = vpop.permute.xlu0 %1088
    %1092 = vset.pattern.permute.xlu0 0
    %1093 = vperm.xlu0 %1092, %v861
    %v1094 = vpop.permute.xlu0 %1093
    %1097 = vset.pattern.permute.xlu0 0
    %1098 = vperm.xlu0 %1097, %v862
    %v1099 = vpop.permute.xlu0 %1098
    %1102 = vset.pattern.permute.xlu0 0
    %1103 = vperm.xlu0 %1102, %v863
    %v1104 = vpop.permute.xlu0 %1103
    %1107 = vset.pattern.permute.xlu0 0
    %1108 = vperm.xlu0 %1107, %v864
    %v1109 = vpop.permute.xlu0 %1108
    %1112 = vset.pattern.permute.xlu0 0
    %1113 = vperm.xlu0 %1112, %v865
    %v1114 = vpop.permute.xlu0 %1113
    %v1116 = vadd.f32 %v667, %v869
    %v1117 = vadd.f32 %v670, %v874
    %v1118 = vadd.f32 %v673, %v879
    %v1119 = vadd.f32 %v676, %v884
    %v1120 = vadd.f32 %v679, %v889
    %v1121 = vadd.f32 %v682, %v894
    %v1122 = vadd.f32 %v685, %v899
    %v1123 = vadd.f32 %v688, %v904
    %v1124 = vadd.f32 %v691, %v909
    %v1125 = vadd.f32 %v694, %v914
    %v1126 = vadd.f32 %v697, %v919
    %v1127 = vadd.f32 %v700, %v924
    %v1128 = vadd.f32 %v703, %v929
    %v1129 = vadd.f32 %v706, %v934
    %v1130 = vadd.f32 %v709, %v939
    %v1131 = vadd.f32 %v712, %v944
    %v1132 = vadd.f32 %v715, %v949
    %v1133 = vadd.f32 %v718, %v954
    %v1134 = vadd.f32 %v721, %v959
    %v1135 = vadd.f32 %v724, %v964
    %v1136 = vadd.f32 %v727, %v969
    %v1137 = vadd.f32 %v730, %v974
    %v1138 = vadd.f32 %v733, %v979
    %v1139 = vadd.f32 %v736, %v984
    %v1140 = vadd.f32 %v739, %v989
    %v1141 = vadd.f32 %v742, %v994
    %v1142 = vadd.f32 %v745, %v999
    %v1143 = vadd.f32 %v748, %v1004
    %v1144 = vadd.f32 %v751, %v1009
    %v1145 = vadd.f32 %v754, %v1014
    %v1146 = vadd.f32 %v757, %v1019
    %v1147 = vadd.f32 %v760, %v1024
    %v1148 = vadd.f32 %v763, %v1029
    %v1149 = vadd.f32 %v766, %v1034
    %v1150 = vadd.f32 %v769, %v1039
    %v1151 = vadd.f32 %v772, %v1044
    %v1152 = vadd.f32 %v775, %v1049
    %v1153 = vadd.f32 %v778, %v1054
    %v1154 = vadd.f32 %v781, %v1059
    %v1155 = vadd.f32 %v784, %v1064
    %v1156 = vadd.f32 %v787, %v1069
    %v1157 = vadd.f32 %v790, %v1074
    %v1158 = vadd.f32 %v793, %v1079
    %v1159 = vadd.f32 %v796, %v1084
    %v1160 = vadd.f32 %v799, %v1089
    %v1161 = vadd.f32 %v802, %v1094
    %v1162 = vadd.f32 %v805, %v1099
    %v1163 = vadd.f32 %v808, %v1104
    %v1164 = vadd.f32 %v811, %v1109
    %v1165 = vadd.f32 %v814, %v1114
    %v1166 = vmax.f32 %v1116, 0.0
    %v1167 = vmax.f32 %v1117, 0.0
    %v1168 = vmax.f32 %v1118, 0.0
    %v1169 = vmax.f32 %v1119, 0.0
    %v1170 = vmax.f32 %v1120, 0.0
    %v1171 = vmax.f32 %v1121, 0.0
    %v1172 = vmax.f32 %v1122, 0.0
    %v1173 = vmax.f32 %v1123, 0.0
    %v1174 = vmax.f32 %v1124, 0.0
    %v1175 = vmax.f32 %v1125, 0.0
    %v1176 = vmax.f32 %v1126, 0.0
    %v1177 = vmax.f32 %v1127, 0.0
    %v1178 = vmax.f32 %v1128, 0.0
    %v1179 = vmax.f32 %v1129, 0.0
    %v1180 = vmax.f32 %v1130, 0.0
    %v1181 = vmax.f32 %v1131, 0.0
    %v1182 = vmax.f32 %v1132, 0.0
    %v1183 = vmax.f32 %v1133, 0.0
    %v1184 = vmax.f32 %v1134, 0.0
    %v1185 = vmax.f32 %v1135, 0.0
    %v1186 = vmax.f32 %v1136, 0.0
    %v1187 = vmax.f32 %v1137, 0.0
    %v1188 = vmax.f32 %v1138, 0.0
    %v1189 = vmax.f32 %v1139, 0.0
    %v1190 = vmax.f32 %v1140, 0.0
    %v1191 = vmax.f32 %v1141, 0.0
    %v1192 = vmax.f32 %v1142, 0.0
    %v1193 = vmax.f32 %v1143, 0.0
    %v1194 = vmax.f32 %v1144, 0.0
    %v1195 = vmax.f32 %v1145, 0.0
    %v1196 = vmax.f32 %v1146, 0.0
    %v1197 = vmax.f32 %v1147, 0.0
    %v1198 = vmax.f32 %v1148, 0.0
    %v1199 = vmax.f32 %v1149, 0.0
    %v1200 = vmax.f32 %v1150, 0.0
    %v1201 = vmax.f32 %v1151, 0.0
    %v1202 = vmax.f32 %v1152, 0.0
    %v1203 = vmax.f32 %v1153, 0.0
    %v1204 = vmax.f32 %v1154, 0.0
    %v1205 = vmax.f32 %v1155, 0.0
    %v1206 = vmax.f32 %v1156, 0.0
    %v1207 = vmax.f32 %v1157, 0.0
    %v1208 = vmax.f32 %v1158, 0.0
    %v1209 = vmax.f32 %v1159, 0.0
    %v1210 = vmax.f32 %v1160, 0.0
    %v1211 = vmax.f32 %v1161, 0.0
    %v1212 = vmax.f32 %v1162, 0.0
    %v1213 = vmax.f32 %v1163, 0.0
    %v1214 = vmax.f32 %v1164, 0.0
    %v1215 = vmax.f32 %v1165, 0.0
    %v1216 = vld [vmem:[#allocation3] sm:$0xff]
    %v1217 = vld [vmem:[#allocation3 + $0x8] sm:$0xff]
    %v1218 = vld [vmem:[#allocation3 + $0x10] sm:$0xff]
    %v1219 = vld [vmem:[#allocation3 + $0x18] sm:$0xff]
    %v1220 = vld [vmem:[#allocation3 + $0x20] sm:$0xff]
    %v1221 = vld [vmem:[#allocation3 + $0x28] sm:$0xff]
    %v1222 = vld [vmem:[#allocation3 + $0x30] sm:$0xff]
    %v1223 = vld [vmem:[#allocation3 + $0x38] sm:$0xff]
    %v1224 = vld [vmem:[#allocation3 + $0x40] sm:$0xff]
    %v1225 = vld [vmem:[#allocation3 + $0x48] sm:$0xff]
    %v1226 = vld [vmem:[#allocation3 + $0x50] sm:$0xff]
    %v1227 = vld [vmem:[#allocation3 + $0x58] sm:$0xff]
    %v1228 = vld [vmem:[#allocation3 + $0x60] sm:$0xff]
    %v1229 = vld [vmem:[#allocation3 + $0x68] sm:$0xff]
    %v1230 = vld [vmem:[#allocation3 + $0x70] sm:$0xff]
    %v1231 = vld [vmem:[#allocation3 + $0x78] sm:$0xff]
    %v1232 = vld [vmem:[#allocation3 + $0x80] sm:$0xff]
    %v1233 = vld [vmem:[#allocation3 + $0x88] sm:$0xff]
    %v1234 = vld [vmem:[#allocation3 + $0x90] sm:$0xff]
    %v1235 = vld [vmem:[#allocation3 + $0x98] sm:$0xff]
    %v1236 = vld [vmem:[#allocation3 + $0xa0] sm:$0xff]
    %v1237 = vld [vmem:[#allocation3 + $0xa8] sm:$0xff]
    %v1238 = vld [vmem:[#allocation3 + $0xb0] sm:$0xff]
    %v1239 = vld [vmem:[#allocation3 + $0xb8] sm:$0xff]
    %v1240 = vld [vmem:[#allocation3 + $0xc0] sm:$0xff]
    %v1241 = vld [vmem:[#allocation3 + $0xc8] sm:$0xff]
    %v1242 = vld [vmem:[#allocation3 + $0xd0] sm:$0xff]
    %v1243 = vld [vmem:[#allocation3 + $0xd8] sm:$0xff]
    %v1244 = vld [vmem:[#allocation3 + $0xe0] sm:$0xff]
    %v1245 = vld [vmem:[#allocation3 + $0xe8] sm:$0xff]
    %v1246 = vld [vmem:[#allocation3 + $0xf0] sm:$0xff]
    %v1247 = vld [vmem:[#allocation3 + $0xf8] sm:$0xff]
    %v1248 = vld [vmem:[#allocation3 + $0x100] sm:$0xff]
    %v1249 = vld [vmem:[#allocation3 + $0x108] sm:$0xff]
    %v1250 = vld [vmem:[#allocation3 + $0x110] sm:$0xff]
    %v1251 = vld [vmem:[#allocation3 + $0x118] sm:$0xff]
    %v1252 = vld [vmem:[#allocation3 + $0x120] sm:$0xff]
    %v1253 = vld [vmem:[#allocation3 + $0x128] sm:$0xff]
    %v1254 = vld [vmem:[#allocation3 + $0x130] sm:$0xff]
    %v1255 = vld [vmem:[#allocation3 + $0x138] sm:$0xff]
    %v1256 = vld [vmem:[#allocation3 + $0x140] sm:$0xff]
    %v1257 = vld [vmem:[#allocation3 + $0x148] sm:$0xff]
    %v1258 = vld [vmem:[#allocation3 + $0x150] sm:$0xff]
    %v1259 = vld [vmem:[#allocation3 + $0x158] sm:$0xff]
    %v1260 = vld [vmem:[#allocation3 + $0x160] sm:$0xff]
    %v1261 = vld [vmem:[#allocation3 + $0x168] sm:$0xff]
    %v1262 = vld [vmem:[#allocation3 + $0x170] sm:$0xff]
    %v1263 = vld [vmem:[#allocation3 + $0x178] sm:$0xff]
    %v1264 = vld [vmem:[#allocation3 + $0x180] sm:$0xff]
    %v1265 = vld [vmem:[#allocation3 + $0x188] sm:$0xff]
    %v1266 = vld [vmem:[#allocation3 + $0x190] sm:$0xff]
    %v1267 = vld [vmem:[#allocation3 + $0x198] sm:$0xff]
    %v1268 = vld [vmem:[#allocation3 + $0x1a0] sm:$0xff]
    %v1269 = vld [vmem:[#allocation3 + $0x1a8] sm:$0xff]
    %v1270 = vld [vmem:[#allocation3 + $0x1b0] sm:$0xff]
    %v1271 = vld [vmem:[#allocation3 + $0x1b8] sm:$0xff]
    %v1272 = vld [vmem:[#allocation3 + $0x1c0] sm:$0xff]
    %v1273 = vld [vmem:[#allocation3 + $0x1c8] sm:$0xff]
    %v1274 = vld [vmem:[#allocation3 + $0x1d0] sm:$0xff]
    %v1275 = vld [vmem:[#allocation3 + $0x1d8] sm:$0xff]
    %v1276 = vld [vmem:[#allocation3 + $0x1e0] sm:$0xff]
    %v1277 = vld [vmem:[#allocation3 + $0x1e8] sm:$0xff]
    %v1278 = vld [vmem:[#allocation3 + $0x1f0] sm:$0xff]
    %v1279 = vld [vmem:[#allocation3 + $0x1f8] sm:$0xff]
    %v1280 = vld [vmem:[#allocation3 + $0x200] sm:$0xff]
    %v1281 = vld [vmem:[#allocation3 + $0x208] sm:$0xff]
    %v1282 = vld [vmem:[#allocation3 + $0x210] sm:$0xff]
    %v1283 = vld [vmem:[#allocation3 + $0x218] sm:$0xff]
    %v1284 = vld [vmem:[#allocation3 + $0x220] sm:$0xff]
    %v1285 = vld [vmem:[#allocation3 + $0x228] sm:$0xff]
    %v1286 = vld [vmem:[#allocation3 + $0x230] sm:$0xff]
    %v1287 = vld [vmem:[#allocation3 + $0x238] sm:$0xff]
    %v1288 = vld [vmem:[#allocation3 + $0x240] sm:$0xff]
    %v1289 = vld [vmem:[#allocation3 + $0x248] sm:$0xff]
    %v1290 = vld [vmem:[#allocation3 + $0x250] sm:$0xff]
    %v1291 = vld [vmem:[#allocation3 + $0x258] sm:$0xff]
    %v1292 = vld [vmem:[#allocation3 + $0x260] sm:$0xff]
    %v1293 = vld [vmem:[#allocation3 + $0x268] sm:$0xff]
    %v1294 = vld [vmem:[#allocation3 + $0x270] sm:$0xff]
    %v1295 = vld [vmem:[#allocation3 + $0x278] sm:$0xff]
    %v1296 = vld [vmem:[#allocation3 + $0x280] sm:$0xff]
    %v1297 = vld [vmem:[#allocation3 + $0x288] sm:$0xff]
    %v1298 = vld [vmem:[#allocation3 + $0x290] sm:$0xff]
    %v1299 = vld [vmem:[#allocation3 + $0x298] sm:$0xff]
    %v1300 = vld [vmem:[#allocation3 + $0x2a0] sm:$0xff]
    %v1301 = vld [vmem:[#allocation3 + $0x2a8] sm:$0xff]
    %v1302 = vld [vmem:[#allocation3 + $0x2b0] sm:$0xff]
    %v1303 = vld [vmem:[#allocation3 + $0x2b8] sm:$0xff]
    %v1304 = vld [vmem:[#allocation3 + $0x2c0] sm:$0xff]
    %v1305 = vld [vmem:[#allocation3 + $0x2c8] sm:$0xff]
    %v1306 = vld [vmem:[#allocation3 + $0x2d0] sm:$0xff]
    %v1307 = vld [vmem:[#allocation3 + $0x2d8] sm:$0xff]
    %v1308 = vld [vmem:[#allocation3 + $0x2e0] sm:$0xff]
    %v1309 = vld [vmem:[#allocation3 + $0x2e8] sm:$0xff]
    %v1310 = vld [vmem:[#allocation3 + $0x2f0] sm:$0xff]
    %v1311 = vld [vmem:[#allocation3 + $0x2f8] sm:$0xff]
    %v1312 = vld [vmem:[#allocation3 + $0x300] sm:$0xff]
    %v1313 = vld [vmem:[#allocation3 + $0x308] sm:$0xff]
    %v1314 = vld [vmem:[#allocation3 + $0x310] sm:$0xff]
    %v1315 = vld [vmem:[#allocation3 + $0x318] sm:$0xff]
    %v1316 = vld [vmem:[#allocation3 + $0x320] sm:$0xff]
    %v1317 = vld [vmem:[#allocation3 + $0x328] sm:$0xff]
    %v1318 = vld [vmem:[#allocation3 + $0x330] sm:$0xff]
    %v1319 = vld [vmem:[#allocation3 + $0x338] sm:$0xff]
    %v1320 = vld [vmem:[#allocation3 + $0x340] sm:$0xff]
    %v1321 = vld [vmem:[#allocation3 + $0x348] sm:$0xff]
    %v1322 = vld [vmem:[#allocation3 + $0x350] sm:$0xff]
    %v1323 = vld [vmem:[#allocation3 + $0x358] sm:$0xff]
    %v1324 = vld [vmem:[#allocation3 + $0x360] sm:$0xff]
    %v1325 = vld [vmem:[#allocation3 + $0x368] sm:$0xff]
    %v1326 = vld [vmem:[#allocation3 + $0x370] sm:$0xff]
    %v1327 = vld [vmem:[#allocation3 + $0x378] sm:$0xff]
    %v1328 = vld [vmem:[#allocation3 + $0x380] sm:$0xff]
    %v1329 = vld [vmem:[#allocation3 + $0x388] sm:$0xff]
    %v1330 = vld [vmem:[#allocation3 + $0x390] sm:$0xff]
    %v1331 = vld [vmem:[#allocation3 + $0x398] sm:$0xff]
    %v1332 = vld [vmem:[#allocation3 + $0x3a0] sm:$0xff]
    %v1333 = vld [vmem:[#allocation3 + $0x3a8] sm:$0xff]
    %v1334 = vld [vmem:[#allocation3 + $0x3b0] sm:$0xff]
    %v1335 = vld [vmem:[#allocation3 + $0x3b8] sm:$0xff]
    %v1336 = vld [vmem:[#allocation3 + $0x3c0] sm:$0xff]
    %v1337 = vld [vmem:[#allocation3 + $0x3c8] sm:$0xff]
    %v1338 = vld [vmem:[#allocation3 + $0x3d0] sm:$0xff]
    %v1339 = vld [vmem:[#allocation3 + $0x3d8] sm:$0xff]
    %v1340 = vld [vmem:[#allocation3 + $0x3e0] sm:$0xff]
    %v1341 = vld [vmem:[#allocation3 + $0x3e8] sm:$0xff]
    %v1342 = vld [vmem:[#allocation3 + $0x3f0] sm:$0xff]
    %v1343 = vld [vmem:[#allocation3 + $0x3f8] sm:$0xff]
    %v1344 = vld [vmem:[#allocation3 + $0x400] sm:$0xff]
    %v1345 = vld [vmem:[#allocation3 + $0x408] sm:$0xff]
    %v1346 = vld [vmem:[#allocation3 + $0x410] sm:$0xff]
    %v1347 = vld [vmem:[#allocation3 + $0x418] sm:$0xff]
    %v1348 = vld [vmem:[#allocation3 + $0x420] sm:$0xff]
    %v1349 = vld [vmem:[#allocation3 + $0x428] sm:$0xff]
    %v1350 = vld [vmem:[#allocation3 + $0x430] sm:$0xff]
    %v1351 = vld [vmem:[#allocation3 + $0x438] sm:$0xff]
    %v1352 = vld [vmem:[#allocation3 + $0x440] sm:$0xff]
    %v1353 = vld [vmem:[#allocation3 + $0x448] sm:$0xff]
    %v1354 = vld [vmem:[#allocation3 + $0x450] sm:$0xff]
    %v1355 = vld [vmem:[#allocation3 + $0x458] sm:$0xff]
    %v1356 = vld [vmem:[#allocation3 + $0x460] sm:$0xff]
    %v1357 = vld [vmem:[#allocation3 + $0x468] sm:$0xff]
    %v1358 = vld [vmem:[#allocation3 + $0x470] sm:$0xff]
    %v1359 = vld [vmem:[#allocation3 + $0x478] sm:$0xff]
    %v1360 = vld [vmem:[#allocation3 + $0x480] sm:$0xff]
    %v1361 = vld [vmem:[#allocation3 + $0x488] sm:$0xff]
    %v1362 = vld [vmem:[#allocation3 + $0x490] sm:$0xff]
    %v1363 = vld [vmem:[#allocation3 + $0x498] sm:$0xff]
    %v1364 = vld [vmem:[#allocation3 + $0x4a0] sm:$0xff]
    %v1365 = vld [vmem:[#allocation3 + $0x4a8] sm:$0xff]
    %v1366 = vld [vmem:[#allocation3 + $0x4b0] sm:$0xff]
    %v1367 = vld [vmem:[#allocation3 + $0x4b8] sm:$0xff]
    %v1368 = vld [vmem:[#allocation3 + $0x4c0] sm:$0xff]
    %v1369 = vld [vmem:[#allocation3 + $0x4c8] sm:$0xff]
    %v1370 = vld [vmem:[#allocation3 + $0x4d0] sm:$0xff]
    %v1371 = vld [vmem:[#allocation3 + $0x4d8] sm:$0xff]
    %v1372 = vld [vmem:[#allocation3 + $0x4e0] sm:$0xff]
    %v1373 = vld [vmem:[#allocation3 + $0x4e8] sm:$0xff]
    %v1374 = vld [vmem:[#allocation3 + $0x4f0] sm:$0xff]
    %v1375 = vld [vmem:[#allocation3 + $0x4f8] sm:$0xff]
    %v1376 = vld [vmem:[#allocation3 + $0x500] sm:$0xff]
    %v1377 = vld [vmem:[#allocation3 + $0x508] sm:$0xff]
    %v1378 = vld [vmem:[#allocation3 + $0x510] sm:$0xff]
    %v1379 = vld [vmem:[#allocation3 + $0x518] sm:$0xff]
    %v1380 = vld [vmem:[#allocation3 + $0x520] sm:$0xff]
    %v1381 = vld [vmem:[#allocation3 + $0x528] sm:$0xff]
    %v1382 = vld [vmem:[#allocation3 + $0x530] sm:$0xff]
    %v1383 = vld [vmem:[#allocation3 + $0x538] sm:$0xff]
    %v1384 = vld [vmem:[#allocation3 + $0x540] sm:$0xff]
    %v1385 = vld [vmem:[#allocation3 + $0x548] sm:$0xff]
    %v1386 = vld [vmem:[#allocation3 + $0x550] sm:$0xff]
    %v1387 = vld [vmem:[#allocation3 + $0x558] sm:$0xff]
    %v1388 = vld [vmem:[#allocation3 + $0x560] sm:$0xff]
    %v1389 = vld [vmem:[#allocation3 + $0x568] sm:$0xff]
    %v1390 = vld [vmem:[#allocation3 + $0x570] sm:$0xff]
    %v1391 = vld [vmem:[#allocation3 + $0x578] sm:$0xff]
    %v1392 = vld [vmem:[#allocation3 + $0x580] sm:$0xff]
    %v1393 = vld [vmem:[#allocation3 + $0x588] sm:$0xff]
    %v1394 = vld [vmem:[#allocation3 + $0x590] sm:$0xff]
    %v1395 = vld [vmem:[#allocation3 + $0x598] sm:$0xff]
    %v1396 = vld [vmem:[#allocation3 + $0x5a0] sm:$0xff]
    %v1397 = vld [vmem:[#allocation3 + $0x5a8] sm:$0xff]
    %v1398 = vld [vmem:[#allocation3 + $0x5b0] sm:$0xff]
    %v1399 = vld [vmem:[#allocation3 + $0x5b8] sm:$0xff]
    %v1400 = vld [vmem:[#allocation3 + $0x5c0] sm:$0xff]
    %v1401 = vld [vmem:[#allocation3 + $0x5c8] sm:$0xff]
    %v1402 = vld [vmem:[#allocation3 + $0x5d0] sm:$0xff]
    %v1403 = vld [vmem:[#allocation3 + $0x5d8] sm:$0xff]
    %v1404 = vld [vmem:[#allocation3 + $0x5e0] sm:$0xff]
    %v1405 = vld [vmem:[#allocation3 + $0x5e8] sm:$0xff]
    %v1406 = vld [vmem:[#allocation3 + $0x5f0] sm:$0xff]
    %v1407 = vld [vmem:[#allocation3 + $0x5f8] sm:$0xff]
    %v1408 = vld [vmem:[#allocation3 + $0x600] sm:$0xff]
    %v1409 = vld [vmem:[#allocation3 + $0x608] sm:$0xff]
    %v1410 = vld [vmem:[#allocation3 + $0x610] sm:$0xff]
    %v1411 = vld [vmem:[#allocation3 + $0x618] sm:$0xff]
    %v1412 = vld [vmem:[#allocation3 + $0x620] sm:$0xff]
    %v1413 = vld [vmem:[#allocation3 + $0x628] sm:$0xff]
    %v1414 = vld [vmem:[#allocation3 + $0x630] sm:$0xff]
    %v1415 = vld [vmem:[#allocation3 + $0x638] sm:$0xff]
    %v1416 = vld [vmem:[%s6] sm:$0xff]
    %v1417 = vld [vmem:[%s6 + $0x8] sm:$0xff]
    %v1418 = vld [vmem:[%s6 + $0x10] sm:$0xff]
    %v1419 = vld [vmem:[%s6 + $0x18] sm:$0xff]
    %v1420 = vld [vmem:[%s6 + $0x20] sm:$0xff]
    %v1421 = vld [vmem:[%s6 + $0x28] sm:$0xff]
    %v1422 = vld [vmem:[%s6 + $0x30] sm:$0xff]
    %v1423 = vld [vmem:[%s6 + $0x38] sm:$0xff]
    %v1424 = vld [vmem:[%s6 + $0x40] sm:$0xff]
    %v1425 = vld [vmem:[%s6 + $0x48] sm:$0xff]
    %v1426 = vld [vmem:[%s6 + $0x50] sm:$0xff]
    %v1427 = vld [vmem:[%s6 + $0x58] sm:$0xff]
    %v1428 = vld [vmem:[%s6 + $0x60] sm:$0xff]
    %v1429 = vld [vmem:[%s6 + $0x68] sm:$0xff]
    %v1430 = vld [vmem:[%s6 + $0x70] sm:$0xff]
    %v1431 = vld [vmem:[%s6 + $0x78] sm:$0xff]
    %v1432 = vld [vmem:[%s6 + $0x80] sm:$0xff]
    %v1433 = vld [vmem:[%s6 + $0x88] sm:$0xff]
    %v1434 = vld [vmem:[%s6 + $0x90] sm:$0xff]
    %v1435 = vld [vmem:[%s6 + $0x98] sm:$0xff]
    %v1436 = vld [vmem:[%s6 + $0xa0] sm:$0xff]
    %v1437 = vld [vmem:[%s6 + $0xa8] sm:$0xff]
    %v1438 = vld [vmem:[%s6 + $0xb0] sm:$0xff]
    %v1439 = vld [vmem:[%s6 + $0xb8] sm:$0xff]
    %v1440 = vld [vmem:[%s6 + $0xc0] sm:$0xff]
    %v1441 = vld [vmem:[%s6 + $0xc8] sm:$0xff]
    %v1442 = vld [vmem:[%s6 + $0xd0] sm:$0xff]
    %v1443 = vld [vmem:[%s6 + $0xd8] sm:$0xff]
    %v1444 = vld [vmem:[%s6 + $0xe0] sm:$0xff]
    %v1445 = vld [vmem:[%s6 + $0xe8] sm:$0xff]
    %v1446 = vld [vmem:[%s6 + $0xf0] sm:$0xff]
    %v1447 = vld [vmem:[%s6 + $0xf8] sm:$0xff]
    %v1448 = vld [vmem:[%s6 + $0x100] sm:$0xff]
    %v1449 = vld [vmem:[%s6 + $0x108] sm:$0xff]
    %v1450 = vld [vmem:[%s6 + $0x110] sm:$0xff]
    %v1451 = vld [vmem:[%s6 + $0x118] sm:$0xff]
    %v1452 = vld [vmem:[%s6 + $0x120] sm:$0xff]
    %v1453 = vld [vmem:[%s6 + $0x128] sm:$0xff]
    %v1454 = vld [vmem:[%s6 + $0x130] sm:$0xff]
    %v1455 = vld [vmem:[%s6 + $0x138] sm:$0xff]
    %v1456 = vld [vmem:[%s6 + $0x140] sm:$0xff]
    %v1457 = vld [vmem:[%s6 + $0x148] sm:$0xff]
    %v1458 = vld [vmem:[%s6 + $0x150] sm:$0xff]
    %v1459 = vld [vmem:[%s6 + $0x158] sm:$0xff]
    %v1460 = vld [vmem:[%s6 + $0x160] sm:$0xff]
    %v1461 = vld [vmem:[%s6 + $0x168] sm:$0xff]
    %v1462 = vld [vmem:[%s6 + $0x170] sm:$0xff]
    %v1463 = vld [vmem:[%s6 + $0x178] sm:$0xff]
    %v1464 = vld [vmem:[%s6 + $0x180] sm:$0xff]
    %v1465 = vld [vmem:[%s6 + $0x188] sm:$0xff]
    %1467 = vset.pattern.permute.xlu0 0
    %1468 = vperm.xlu0 %1467, %v1416
    %v1469 = vpop.permute.xlu0 %1468
    %1472 = vset.pattern.permute.xlu0 0
    %1473 = vperm.xlu0 %1472, %v1417
    %v1474 = vpop.permute.xlu0 %1473
    %1477 = vset.pattern.permute.xlu0 0
    %1478 = vperm.xlu0 %1477, %v1418
    %v1479 = vpop.permute.xlu0 %1478
    %1482 = vset.pattern.permute.xlu0 0
    %1483 = vperm.xlu0 %1482, %v1419
    %v1484 = vpop.permute.xlu0 %1483
    %1487 = vset.pattern.permute.xlu0 0
    %1488 = vperm.xlu0 %1487, %v1420
    %v1489 = vpop.permute.xlu0 %1488
    %1492 = vset.pattern.permute.xlu0 0
    %1493 = vperm.xlu0 %1492, %v1421
    %v1494 = vpop.permute.xlu0 %1493
    %1497 = vset.pattern.permute.xlu0 0
    %1498 = vperm.xlu0 %1497, %v1422
    %v1499 = vpop.permute.xlu0 %1498
    %1502 = vset.pattern.permute.xlu0 0
    %1503 = vperm.xlu0 %1502, %v1423
    %v1504 = vpop.permute.xlu0 %1503
    %1507 = vset.pattern.permute.xlu0 0
    %1508 = vperm.xlu0 %1507, %v1424
    %v1509 = vpop.permute.xlu0 %1508
    %1512 = vset.pattern.permute.xlu0 0
    %1513 = vperm.xlu0 %1512, %v1425
    %v1514 = vpop.permute.xlu0 %1513
    %1517 = vset.pattern.permute.xlu0 0
    %1518 = vperm.xlu0 %1517, %v1426
    %v1519 = vpop.permute.xlu0 %1518
    %1522 = vset.pattern.permute.xlu0 0
    %1523 = vperm.xlu0 %1522, %v1427
    %v1524 = vpop.permute.xlu0 %1523
    %1527 = vset.pattern.permute.xlu0 0
    %1528 = vperm.xlu0 %1527, %v1428
    %v1529 = vpop.permute.xlu0 %1528
    %1532 = vset.pattern.permute.xlu0 0
    %1533 = vperm.xlu0 %1532, %v1429
    %v1534 = vpop.permute.xlu0 %1533
    %1537 = vset.pattern.permute.xlu0 0
    %1538 = vperm.xlu0 %1537, %v1430
    %v1539 = vpop.permute.xlu0 %1538
    %1542 = vset.pattern.permute.xlu0 0
    %1543 = vperm.xlu0 %1542, %v1431
    %v1544 = vpop.permute.xlu0 %1543
    %1547 = vset.pattern.permute.xlu0 0
    %1548 = vperm.xlu0 %1547, %v1432
    %v1549 = vpop.permute.xlu0 %1548
    %1552 = vset.pattern.permute.xlu0 0
    %1553 = vperm.xlu0 %1552, %v1433
    %v1554 = vpop.permute.xlu0 %1553
    %1557 = vset.pattern.permute.xlu0 0
    %1558 = vperm.xlu0 %1557, %v1434
    %v1559 = vpop.permute.xlu0 %1558
    %1562 = vset.pattern.permute.xlu0 0
    %1563 = vperm.xlu0 %1562, %v1435
    %v1564 = vpop.permute.xlu0 %1563
    %1567 = vset.pattern.permute.xlu0 0
    %1568 = vperm.xlu0 %1567, %v1436
    %v1569 = vpop.permute.xlu0 %1568
    %1572 = vset.pattern.permute.xlu0 0
    %1573 = vperm.xlu0 %1572, %v1437
    %v1574 = vpop.permute.xlu0 %1573
    %1577 = vset.pattern.permute.xlu0 0
    %1578 = vperm.xlu0 %1577, %v1438
    %v1579 = vpop.permute.xlu0 %1578
    %1582 = vset.pattern.permute.xlu0 0
    %1583 = vperm.xlu0 %1582, %v1439
    %v1584 = vpop.permute.xlu0 %1583
    %1587 = vset.pattern.permute.xlu0 0
    %1588 = vperm.xlu0 %1587, %v1440
    %v1589 = vpop.permute.xlu0 %1588
    %1592 = vset.pattern.permute.xlu0 0
    %1593 = vperm.xlu0 %1592, %v1441
    %v1594 = vpop.permute.xlu0 %1593
    %1597 = vset.pattern.permute.xlu0 0
    %1598 = vperm.xlu0 %1597, %v1442
    %v1599 = vpop.permute.xlu0 %1598
    %1602 = vset.pattern.permute.xlu0 0
    %1603 = vperm.xlu0 %1602, %v1443
    %v1604 = vpop.permute.xlu0 %1603
    %1607 = vset.pattern.permute.xlu0 0
    %1608 = vperm.xlu0 %1607, %v1444
    %v1609 = vpop.permute.xlu0 %1608
    %1612 = vset.pattern.permute.xlu0 0
    %1613 = vperm.xlu0 %1612, %v1445
    %v1614 = vpop.permute.xlu0 %1613
    %1617 = vset.pattern.permute.xlu0 0
    %1618 = vperm.xlu0 %1617, %v1446
    %v1619 = vpop.permute.xlu0 %1618
    %1622 = vset.pattern.permute.xlu0 0
    %1623 = vperm.xlu0 %1622, %v1447
    %v1624 = vpop.permute.xlu0 %1623
    %1627 = vset.pattern.permute.xlu0 0
    %1628 = vperm.xlu0 %1627, %v1448
    %v1629 = vpop.permute.xlu0 %1628
    %1632 = vset.pattern.permute.xlu0 0
    %1633 = vperm.xlu0 %1632, %v1449
    %v1634 = vpop.permute.xlu0 %1633
    %1637 = vset.pattern.permute.xlu0 0
    %1638 = vperm.xlu0 %1637, %v1450
    %v1639 = vpop.permute.xlu0 %1638
    %1642 = vset.pattern.permute.xlu0 0
    %1643 = vperm.xlu0 %1642, %v1451
    %v1644 = vpop.permute.xlu0 %1643
    %1647 = vset.pattern.permute.xlu0 0
    %1648 = vperm.xlu0 %1647, %v1452
    %v1649 = vpop.permute.xlu0 %1648
    %1652 = vset.pattern.permute.xlu0 0
    %1653 = vperm.xlu0 %1652, %v1453
    %v1654 = vpop.permute.xlu0 %1653
    %1657 = vset.pattern.permute.xlu0 0
    %1658 = vperm.xlu0 %1657, %v1454
    %v1659 = vpop.permute.xlu0 %1658
    %1662 = vset.pattern.permute.xlu0 0
    %1663 = vperm.xlu0 %1662, %v1455
    %v1664 = vpop.permute.xlu0 %1663
    %1667 = vset.pattern.permute.xlu0 0
    %1668 = vperm.xlu0 %1667, %v1456
    %v1669 = vpop.permute.xlu0 %1668
    %1672 = vset.pattern.permute.xlu0 0
    %1673 = vperm.xlu0 %1672, %v1457
    %v1674 = vpop.permute.xlu0 %1673
    %1677 = vset.pattern.permute.xlu0 0
    %1678 = vperm.xlu0 %1677, %v1458
    %v1679 = vpop.permute.xlu0 %1678
    %1682 = vset.pattern.permute.xlu0 0
    %1683 = vperm.xlu0 %1682, %v1459
    %v1684 = vpop.permute.xlu0 %1683
    %1687 = vset.pattern.permute.xlu0 0
    %1688 = vperm.xlu0 %1687, %v1460
    %v1689 = vpop.permute.xlu0 %1688
    %1692 = vset.pattern.permute.xlu0 0
    %1693 = vperm.xlu0 %1692, %v1461
    %v1694 = vpop.permute.xlu0 %1693
    %1697 = vset.pattern.permute.xlu0 0
    %1698 = vperm.xlu0 %1697, %v1462
    %v1699 = vpop.permute.xlu0 %1698
    %1702 = vset.pattern.permute.xlu0 0
    %1703 = vperm.xlu0 %1702, %v1463
    %v1704 = vpop.permute.xlu0 %1703
    %1707 = vset.pattern.permute.xlu0 0
    %1708 = vperm.xlu0 %1707, %v1464
    %v1709 = vpop.permute.xlu0 %1708
    %1712 = vset.pattern.permute.xlu0 0
    %1713 = vperm.xlu0 %1712, %v1465
    %v1714 = vpop.permute.xlu0 %1713
    %vm1716 = vcmask 130048
    %v1718 = vsel %vm1716, %v1219, 0
    %v1721 = vsel %vm1716, %v1223, 0
    %v1724 = vsel %vm1716, %v1227, 0
    %v1727 = vsel %vm1716, %v1231, 0
    %v1730 = vsel %vm1716, %v1235, 0
    %v1733 = vsel %vm1716, %v1239, 0
    %v1736 = vsel %vm1716, %v1243, 0
    %v1739 = vsel %vm1716, %v1247, 0
    %v1742 = vsel %vm1716, %v1251, 0
    %v1745 = vsel %vm1716, %v1255, 0
    %v1748 = vsel %vm1716, %v1259, 0
    %v1751 = vsel %vm1716, %v1263, 0
    %v1754 = vsel %vm1716, %v1267, 0
    %v1757 = vsel %vm1716, %v1271, 0
    %v1760 = vsel %vm1716, %v1275, 0
    %v1763 = vsel %vm1716, %v1279, 0
    %v1766 = vsel %vm1716, %v1283, 0
    %v1769 = vsel %vm1716, %v1287, 0
    %v1772 = vsel %vm1716, %v1291, 0
    %v1775 = vsel %vm1716, %v1295, 0
    %v1778 = vsel %vm1716, %v1299, 0
    %v1781 = vsel %vm1716, %v1303, 0
    %v1784 = vsel %vm1716, %v1307, 0
    %v1787 = vsel %vm1716, %v1311, 0
    %v1790 = vsel %vm1716, %v1315, 0
    %v1793 = vsel %vm1716, %v1319, 0
    %v1796 = vsel %vm1716, %v1323, 0
    %v1799 = vsel %vm1716, %v1327, 0
    %v1802 = vsel %vm1716, %v1331, 0
    %v1805 = vsel %vm1716, %v1335, 0
    %v1808 = vsel %vm1716, %v1339, 0
    %v1811 = vsel %vm1716, %v1343, 0
    %v1814 = vsel %vm1716, %v1347, 0
    %v1817 = vsel %vm1716, %v1351, 0
    %v1820 = vsel %vm1716, %v1355, 0
    %v1823 = vsel %vm1716, %v1359, 0
    %v1826 = vsel %vm1716, %v1363, 0
    %v1829 = vsel %vm1716, %v1367, 0
    %v1832 = vsel %vm1716, %v1371, 0
    %v1835 = vsel %vm1716, %v1375, 0
    %v1838 = vsel %vm1716, %v1379, 0
    %v1841 = vsel %vm1716, %v1383, 0
    %v1844 = vsel %vm1716, %v1387, 0
    %v1847 = vsel %vm1716, %v1391, 0
    %v1850 = vsel %vm1716, %v1395, 0
    %v1853 = vsel %vm1716, %v1399, 0
    %v1856 = vsel %vm1716, %v1403, 0
    %v1859 = vsel %vm1716, %v1407, 0
    %v1862 = vsel %vm1716, %v1411, 0
    %v1865 = vsel %vm1716, %v1415, 0
    %1867 = vmatpush.msra.mxu0 %v1181
    %1868 = vmatpush.msra.mxu0 %v1180
    %1869 = vmatpush.msra.mxu0 %v1179
    %1870 = vmatpush.msra.mxu0 %v1178
    %1871 = vmatpush.msra.mxu0 %v1177
    %1872 = vmatpush.msra.mxu0 %v1176
    %1873 = vmatpush.msra.mxu0 %v1175
    %1874 = vmatpush.msra.mxu0 %v1174
    %1875 = vmatpush.msra.mxu0 %v1173
    %1876 = vmatpush.msra.mxu0 %v1172
    %1877 = vmatpush.msra.mxu0 %v1171
    %1878 = vmatpush.msra.mxu0 %v1170
    %1879 = vmatpush.msra.mxu0 %v1169
    %1880 = vmatpush.msra.mxu0 %v1168
    %1881 = vmatpush.msra.mxu0 %v1167
    %1882 = vmatpush.msra.mxu0 %v1166
    %1883 = vmatmul.f32.gmra.mxu0 %v1216
    %v1884 = vpop.f32.mrf.mxu0
    %v1885 = vadd.f32 %v1469, %v1884
    %1886 = vmatmul.f32.gmra.mxu0 %v1220
    %v1887 = vpop.f32.mrf.mxu0
    %v1888 = vadd.f32 %v1474, %v1887
    %1889 = vmatmul.f32.gmra.mxu0 %v1224
    %v1890 = vpop.f32.mrf.mxu0
    %v1891 = vadd.f32 %v1479, %v1890
    %1892 = vmatmul.f32.gmra.mxu0 %v1228
    %v1893 = vpop.f32.mrf.mxu0
    %v1894 = vadd.f32 %v1484, %v1893
    %1895 = vmatmul.f32.gmra.mxu0 %v1232
    %v1896 = vpop.f32.mrf.mxu0
    %v1897 = vadd.f32 %v1489, %v1896
    %1898 = vmatmul.f32.gmra.mxu0 %v1236
    %v1899 = vpop.f32.mrf.mxu0
    %v1900 = vadd.f32 %v1494, %v1899
    %1901 = vmatmul.f32.gmra.mxu0 %v1240
    %v1902 = vpop.f32.mrf.mxu0
    %v1903 = vadd.f32 %v1499, %v1902
    %1904 = vmatmul.f32.gmra.mxu0 %v1244
    %v1905 = vpop.f32.mrf.mxu0
    %v1906 = vadd.f32 %v1504, %v1905
    %1907 = vmatmul.f32.gmra.mxu0 %v1248
    %v1908 = vpop.f32.mrf.mxu0
    %v1909 = vadd.f32 %v1509, %v1908
    %1910 = vmatmul.f32.gmra.mxu0 %v1252
    %v1911 = vpop.f32.mrf.mxu0
    %v1912 = vadd.f32 %v1514, %v1911
    %1913 = vmatmul.f32.gmra.mxu0 %v1256
    %v1914 = vpop.f32.mrf.mxu0
    %v1915 = vadd.f32 %v1519, %v1914
    %1916 = vmatmul.f32.gmra.mxu0 %v1260
    %v1917 = vpop.f32.mrf.mxu0
    %v1918 = vadd.f32 %v1524, %v1917
    %1919 = vmatmul.f32.gmra.mxu0 %v1264
    %v1920 = vpop.f32.mrf.mxu0
    %v1921 = vadd.f32 %v1529, %v1920
    %1922 = vmatmul.f32.gmra.mxu0 %v1268
    %v1923 = vpop.f32.mrf.mxu0
    %v1924 = vadd.f32 %v1534, %v1923
    %1925 = vmatmul.f32.gmra.mxu0 %v1272
    %v1926 = vpop.f32.mrf.mxu0
    %v1927 = vadd.f32 %v1539, %v1926
    %1928 = vmatmul.f32.gmra.mxu0 %v1276
    %v1929 = vpop.f32.mrf.mxu0
    %v1930 = vadd.f32 %v1544, %v1929
    %1931 = vmatmul.f32.gmra.mxu0 %v1280
    %v1932 = vpop.f32.mrf.mxu0
    %v1933 = vadd.f32 %v1549, %v1932
    %1934 = vmatmul.f32.gmra.mxu0 %v1284
    %v1935 = vpop.f32.mrf.mxu0
    %v1936 = vadd.f32 %v1554, %v1935
    %1937 = vmatmul.f32.gmra.mxu0 %v1288
    %v1938 = vpop.f32.mrf.mxu0
    %v1939 = vadd.f32 %v1559, %v1938
    %1940 = vmatmul.f32.gmra.mxu0 %v1292
    %v1941 = vpop.f32.mrf.mxu0
    %v1942 = vadd.f32 %v1564, %v1941
    %1943 = vmatmul.f32.gmra.mxu0 %v1296
    %v1944 = vpop.f32.mrf.mxu0
    %v1945 = vadd.f32 %v1569, %v1944
    %1946 = vmatmul.f32.gmra.mxu0 %v1300
    %v1947 = vpop.f32.mrf.mxu0
    %v1948 = vadd.f32 %v1574, %v1947
    %1949 = vmatmul.f32.gmra.mxu0 %v1304
    %v1950 = vpop.f32.mrf.mxu0
    %v1951 = vadd.f32 %v1579, %v1950
    %1952 = vmatmul.f32.gmra.mxu0 %v1308
    %v1953 = vpop.f32.mrf.mxu0
    %v1954 = vadd.f32 %v1584, %v1953
    %1955 = vmatmul.f32.gmra.mxu0 %v1312
    %v1956 = vpop.f32.mrf.mxu0
    %v1957 = vadd.f32 %v1589, %v1956
    %1958 = vmatmul.f32.gmra.mxu0 %v1316
    %v1959 = vpop.f32.mrf.mxu0
    %v1960 = vadd.f32 %v1594, %v1959
    %1961 = vmatmul.f32.gmra.mxu0 %v1320
    %v1962 = vpop.f32.mrf.mxu0
    %v1963 = vadd.f32 %v1599, %v1962
    %1964 = vmatmul.f32.gmra.mxu0 %v1324
    %v1965 = vpop.f32.mrf.mxu0
    %v1966 = vadd.f32 %v1604, %v1965
    %1967 = vmatmul.f32.gmra.mxu0 %v1328
    %v1968 = vpop.f32.mrf.mxu0
    %v1969 = vadd.f32 %v1609, %v1968
    %1970 = vmatmul.f32.gmra.mxu0 %v1332
    %v1971 = vpop.f32.mrf.mxu0
    %v1972 = vadd.f32 %v1614, %v1971
    %1973 = vmatmul.f32.gmra.mxu0 %v1336
    %v1974 = vpop.f32.mrf.mxu0
    %v1975 = vadd.f32 %v1619, %v1974
    %1976 = vmatmul.f32.gmra.mxu0 %v1340
    %v1977 = vpop.f32.mrf.mxu0
    %v1978 = vadd.f32 %v1624, %v1977
    %1979 = vmatmul.f32.gmra.mxu0 %v1344
    %v1980 = vpop.f32.mrf.mxu0
    %v1981 = vadd.f32 %v1629, %v1980
    %1982 = vmatmul.f32.gmra.mxu0 %v1348
    %v1983 = vpop.f32.mrf.mxu0
    %v1984 = vadd.f32 %v1634, %v1983
    %1985 = vmatmul.f32.gmra.mxu0 %v1352
    %v1986 = vpop.f32.mrf.mxu0
    %v1987 = vadd.f32 %v1639, %v1986
    %1988 = vmatmul.f32.gmra.mxu0 %v1356
    %v1989 = vpop.f32.mrf.mxu0
    %v1990 = vadd.f32 %v1644, %v1989
    %1991 = vmatmul.f32.gmra.mxu0 %v1360
    %v1992 = vpop.f32.mrf.mxu0
    %v1993 = vadd.f32 %v1649, %v1992
    %1994 = vmatmul.f32.gmra.mxu0 %v1364
    %v1995 = vpop.f32.mrf.mxu0
    %v1996 = vadd.f32 %v1654, %v1995
    %1997 = vmatmul.f32.gmra.mxu0 %v1368
    %v1998 = vpop.f32.mrf.mxu0
    %v1999 = vadd.f32 %v1659, %v1998
    %2000 = vmatmul.f32.gmra.mxu0 %v1372
    %v2001 = vpop.f32.mrf.mxu0
    %v2002 = vadd.f32 %v1664, %v2001
    %2003 = vmatmul.f32.gmra.mxu0 %v1376
    %v2004 = vpop.f32.mrf.mxu0
    %v2005 = vadd.f32 %v1669, %v2004
    %2006 = vmatmul.f32.gmra.mxu0 %v1380
    %v2007 = vpop.f32.mrf.mxu0
    %v2008 = vadd.f32 %v1674, %v2007
    %2009 = vmatmul.f32.gmra.mxu0 %v1384
    %v2010 = vpop.f32.mrf.mxu0
    %v2011 = vadd.f32 %v1679, %v2010
    %2012 = vmatmul.f32.gmra.mxu0 %v1388
    %v2013 = vpop.f32.mrf.mxu0
    %v2014 = vadd.f32 %v1684, %v2013
    %2015 = vmatmul.f32.gmra.mxu0 %v1392
    %v2016 = vpop.f32.mrf.mxu0
    %v2017 = vadd.f32 %v1689, %v2016
    %2018 = vmatmul.f32.gmra.mxu0 %v1396
    %v2019 = vpop.f32.mrf.mxu0
    %v2020 = vadd.f32 %v1694, %v2019
    %2021 = vmatmul.f32.gmra.mxu0 %v1400
    %v2022 = vpop.f32.mrf.mxu0
    %v2023 = vadd.f32 %v1699, %v2022
    %2024 = vmatmul.f32.gmra.mxu0 %v1404
    %v2025 = vpop.f32.mrf.mxu0
    %v2026 = vadd.f32 %v1704, %v2025
    %2027 = vmatmul.f32.gmra.mxu0 %v1408
    %v2028 = vpop.f32.mrf.mxu0
    %v2029 = vadd.f32 %v1709, %v2028
    %2030 = vmatmul.f32.gmra.mxu0 %v1412
    %v2031 = vpop.f32.mrf.mxu0
    %v2032 = vadd.f32 %v1714, %v2031
    %2033 = vdwg.mxu0
    %2034 = vmatpush.msra.mxu0 %v1197
    %2035 = vmatpush.msra.mxu0 %v1196
    %2036 = vmatpush.msra.mxu0 %v1195
    %2037 = vmatpush.msra.mxu0 %v1194
    %2038 = vmatpush.msra.mxu0 %v1193
    %2039 = vmatpush.msra.mxu0 %v1192
    %2040 = vmatpush.msra.mxu0 %v1191
    %2041 = vmatpush.msra.mxu0 %v1190
    %2042 = vmatpush.msra.mxu0 %v1189
    %2043 = vmatpush.msra.mxu0 %v1188
    %2044 = vmatpush.msra.mxu0 %v1187
    %2045 = vmatpush.msra.mxu0 %v1186
    %2046 = vmatpush.msra.mxu0 %v1185
    %2047 = vmatpush.msra.mxu0 %v1184
    %2048 = vmatpush.msra.mxu0 %v1183
    %2049 = vmatpush.msra.mxu0 %v1182
    %2050 = vmatmul.f32.gmra.mxu0 %v1217
    %v2051 = vpop.f32.mrf.mxu0
    %v2052 = vadd.f32 %v1885, %v2051
    %2053 = vmatmul.f32.gmra.mxu0 %v1221
    %v2054 = vpop.f32.mrf.mxu0
    %v2055 = vadd.f32 %v1888, %v2054
    %2056 = vmatmul.f32.gmra.mxu0 %v1225
    %v2057 = vpop.f32.mrf.mxu0
    %v2058 = vadd.f32 %v1891, %v2057
    %2059 = vmatmul.f32.gmra.mxu0 %v1229
    %v2060 = vpop.f32.mrf.mxu0
    %v2061 = vadd.f32 %v1894, %v2060
    %2062 = vmatmul.f32.gmra.mxu0 %v1233
    %v2063 = vpop.f32.mrf.mxu0
    %v2064 = vadd.f32 %v1897, %v2063
    %2065 = vmatmul.f32.gmra.mxu0 %v1237
    %v2066 = vpop.f32.mrf.mxu0
    %v2067 = vadd.f32 %v1900, %v2066
    %2068 = vmatmul.f32.gmra.mxu0 %v1241
    %v2069 = vpop.f32.mrf.mxu0
    %v2070 = vadd.f32 %v1903, %v2069
    %2071 = vmatmul.f32.gmra.mxu0 %v1245
    %v2072 = vpop.f32.mrf.mxu0
    %v2073 = vadd.f32 %v1906, %v2072
    %2074 = vmatmul.f32.gmra.mxu0 %v1249
    %v2075 = vpop.f32.mrf.mxu0
    %v2076 = vadd.f32 %v1909, %v2075
    %2077 = vmatmul.f32.gmra.mxu0 %v1253
    %v2078 = vpop.f32.mrf.mxu0
    %v2079 = vadd.f32 %v1912, %v2078
    %2080 = vmatmul.f32.gmra.mxu0 %v1257
    %v2081 = vpop.f32.mrf.mxu0
    %v2082 = vadd.f32 %v1915, %v2081
    %2083 = vmatmul.f32.gmra.mxu0 %v1261
    %v2084 = vpop.f32.mrf.mxu0
    %v2085 = vadd.f32 %v1918, %v2084
    %2086 = vmatmul.f32.gmra.mxu0 %v1265
    %v2087 = vpop.f32.mrf.mxu0
    %v2088 = vadd.f32 %v1921, %v2087
    %2089 = vmatmul.f32.gmra.mxu0 %v1269
    %v2090 = vpop.f32.mrf.mxu0
    %v2091 = vadd.f32 %v1924, %v2090
    %2092 = vmatmul.f32.gmra.mxu0 %v1273
    %v2093 = vpop.f32.mrf.mxu0
    %v2094 = vadd.f32 %v1927, %v2093
    %2095 = vmatmul.f32.gmra.mxu0 %v1277
    %v2096 = vpop.f32.mrf.mxu0
    %v2097 = vadd.f32 %v1930, %v2096
    %2098 = vmatmul.f32.gmra.mxu0 %v1281
    %v2099 = vpop.f32.mrf.mxu0
    %v2100 = vadd.f32 %v1933, %v2099
    %2101 = vmatmul.f32.gmra.mxu0 %v1285
    %v2102 = vpop.f32.mrf.mxu0
    %v2103 = vadd.f32 %v1936, %v2102
    %2104 = vmatmul.f32.gmra.mxu0 %v1289
    %v2105 = vpop.f32.mrf.mxu0
    %v2106 = vadd.f32 %v1939, %v2105
    %2107 = vmatmul.f32.gmra.mxu0 %v1293
    %v2108 = vpop.f32.mrf.mxu0
    %v2109 = vadd.f32 %v1942, %v2108
    %2110 = vmatmul.f32.gmra.mxu0 %v1297
    %v2111 = vpop.f32.mrf.mxu0
    %v2112 = vadd.f32 %v1945, %v2111
    %2113 = vmatmul.f32.gmra.mxu0 %v1301
    %v2114 = vpop.f32.mrf.mxu0
    %v2115 = vadd.f32 %v1948, %v2114
    %2116 = vmatmul.f32.gmra.mxu0 %v1305
    %v2117 = vpop.f32.mrf.mxu0
    %v2118 = vadd.f32 %v1951, %v2117
    %2119 = vmatmul.f32.gmra.mxu0 %v1309
    %v2120 = vpop.f32.mrf.mxu0
    %v2121 = vadd.f32 %v1954, %v2120
    %2122 = vmatmul.f32.gmra.mxu0 %v1313
    %v2123 = vpop.f32.mrf.mxu0
    %v2124 = vadd.f32 %v1957, %v2123
    %2125 = vmatmul.f32.gmra.mxu0 %v1317
    %v2126 = vpop.f32.mrf.mxu0
    %v2127 = vadd.f32 %v1960, %v2126
    %2128 = vmatmul.f32.gmra.mxu0 %v1321
    %v2129 = vpop.f32.mrf.mxu0
    %v2130 = vadd.f32 %v1963, %v2129
    %2131 = vmatmul.f32.gmra.mxu0 %v1325
    %v2132 = vpop.f32.mrf.mxu0
    %v2133 = vadd.f32 %v1966, %v2132
    %2134 = vmatmul.f32.gmra.mxu0 %v1329
    %v2135 = vpop.f32.mrf.mxu0
    %v2136 = vadd.f32 %v1969, %v2135
    %2137 = vmatmul.f32.gmra.mxu0 %v1333
    %v2138 = vpop.f32.mrf.mxu0
    %v2139 = vadd.f32 %v1972, %v2138
    %2140 = vmatmul.f32.gmra.mxu0 %v1337
    %v2141 = vpop.f32.mrf.mxu0
    %v2142 = vadd.f32 %v1975, %v2141
    %2143 = vmatmul.f32.gmra.mxu0 %v1341
    %v2144 = vpop.f32.mrf.mxu0
    %v2145 = vadd.f32 %v1978, %v2144
    %2146 = vmatmul.f32.gmra.mxu0 %v1345
    %v2147 = vpop.f32.mrf.mxu0
    %v2148 = vadd.f32 %v1981, %v2147
    %2149 = vmatmul.f32.gmra.mxu0 %v1349
    %v2150 = vpop.f32.mrf.mxu0
    %v2151 = vadd.f32 %v1984, %v2150
    %2152 = vmatmul.f32.gmra.mxu0 %v1353
    %v2153 = vpop.f32.mrf.mxu0
    %v2154 = vadd.f32 %v1987, %v2153
    %2155 = vmatmul.f32.gmra.mxu0 %v1357
    %v2156 = vpop.f32.mrf.mxu0
    %v2157 = vadd.f32 %v1990, %v2156
    %2158 = vmatmul.f32.gmra.mxu0 %v1361
    %v2159 = vpop.f32.mrf.mxu0
    %v2160 = vadd.f32 %v1993, %v2159
    %2161 = vmatmul.f32.gmra.mxu0 %v1365
    %v2162 = vpop.f32.mrf.mxu0
    %v2163 = vadd.f32 %v1996, %v2162
    %2164 = vmatmul.f32.gmra.mxu0 %v1369
    %v2165 = vpop.f32.mrf.mxu0
    %v2166 = vadd.f32 %v1999, %v2165
    %2167 = vmatmul.f32.gmra.mxu0 %v1373
    %v2168 = vpop.f32.mrf.mxu0
    %v2169 = vadd.f32 %v2002, %v2168
    %2170 = vmatmul.f32.gmra.mxu0 %v1377
    %v2171 = vpop.f32.mrf.mxu0
    %v2172 = vadd.f32 %v2005, %v2171
    %2173 = vmatmul.f32.gmra.mxu0 %v1381
    %v2174 = vpop.f32.mrf.mxu0
    %v2175 = vadd.f32 %v2008, %v2174
    %2176 = vmatmul.f32.gmra.mxu0 %v1385
    %v2177 = vpop.f32.mrf.mxu0
    %v2178 = vadd.f32 %v2011, %v2177
    %2179 = vmatmul.f32.gmra.mxu0 %v1389
    %v2180 = vpop.f32.mrf.mxu0
    %v2181 = vadd.f32 %v2014, %v2180
    %2182 = vmatmul.f32.gmra.mxu0 %v1393
    %v2183 = vpop.f32.mrf.mxu0
    %v2184 = vadd.f32 %v2017, %v2183
    %2185 = vmatmul.f32.gmra.mxu0 %v1397
    %v2186 = vpop.f32.mrf.mxu0
    %v2187 = vadd.f32 %v2020, %v2186
    %2188 = vmatmul.f32.gmra.mxu0 %v1401
    %v2189 = vpop.f32.mrf.mxu0
    %v2190 = vadd.f32 %v2023, %v2189
    %2191 = vmatmul.f32.gmra.mxu0 %v1405
    %v2192 = vpop.f32.mrf.mxu0
    %v2193 = vadd.f32 %v2026, %v2192
    %2194 = vmatmul.f32.gmra.mxu0 %v1409
    %v2195 = vpop.f32.mrf.mxu0
    %v2196 = vadd.f32 %v2029, %v2195
    %2197 = vmatmul.f32.gmra.mxu0 %v1413
    %v2198 = vpop.f32.mrf.mxu0
    %v2199 = vadd.f32 %v2032, %v2198
    %2200 = vdwg.mxu0
    %2201 = vmatpush.msra.mxu0 %v1213
    %2202 = vmatpush.msra.mxu0 %v1212
    %2203 = vmatpush.msra.mxu0 %v1211
    %2204 = vmatpush.msra.mxu0 %v1210
    %2205 = vmatpush.msra.mxu0 %v1209
    %2206 = vmatpush.msra.mxu0 %v1208
    %2207 = vmatpush.msra.mxu0 %v1207
    %2208 = vmatpush.msra.mxu0 %v1206
    %2209 = vmatpush.msra.mxu0 %v1205
    %2210 = vmatpush.msra.mxu0 %v1204
    %2211 = vmatpush.msra.mxu0 %v1203
    %2212 = vmatpush.msra.mxu0 %v1202
    %2213 = vmatpush.msra.mxu0 %v1201
    %2214 = vmatpush.msra.mxu0 %v1200
    %2215 = vmatpush.msra.mxu0 %v1199
    %2216 = vmatpush.msra.mxu0 %v1198
    %2217 = vmatmul.f32.gmra.mxu0 %v1218
    %v2218 = vpop.f32.mrf.mxu0
    %v2219 = vadd.f32 %v2052, %v2218
    %2220 = vmatmul.f32.gmra.mxu0 %v1222
    %v2221 = vpop.f32.mrf.mxu0
    %v2222 = vadd.f32 %v2055, %v2221
    %2223 = vmatmul.f32.gmra.mxu0 %v1226
    %v2224 = vpop.f32.mrf.mxu0
    %v2225 = vadd.f32 %v2058, %v2224
    %2226 = vmatmul.f32.gmra.mxu0 %v1230
    %v2227 = vpop.f32.mrf.mxu0
    %v2228 = vadd.f32 %v2061, %v2227
    %2229 = vmatmul.f32.gmra.mxu0 %v1234
    %v2230 = vpop.f32.mrf.mxu0
    %v2231 = vadd.f32 %v2064, %v2230
    %2232 = vmatmul.f32.gmra.mxu0 %v1238
    %v2233 = vpop.f32.mrf.mxu0
    %v2234 = vadd.f32 %v2067, %v2233
    %2235 = vmatmul.f32.gmra.mxu0 %v1242
    %v2236 = vpop.f32.mrf.mxu0
    %v2237 = vadd.f32 %v2070, %v2236
    %2238 = vmatmul.f32.gmra.mxu0 %v1246
    %v2239 = vpop.f32.mrf.mxu0
    %v2240 = vadd.f32 %v2073, %v2239
    %2241 = vmatmul.f32.gmra.mxu0 %v1250
    %v2242 = vpop.f32.mrf.mxu0
    %v2243 = vadd.f32 %v2076, %v2242
    %2244 = vmatmul.f32.gmra.mxu0 %v1254
    %v2245 = vpop.f32.mrf.mxu0
    %v2246 = vadd.f32 %v2079, %v2245
    %2247 = vmatmul.f32.gmra.mxu0 %v1258
    %v2248 = vpop.f32.mrf.mxu0
    %v2249 = vadd.f32 %v2082, %v2248
    %2250 = vmatmul.f32.gmra.mxu0 %v1262
    %v2251 = vpop.f32.mrf.mxu0
    %v2252 = vadd.f32 %v2085, %v2251
    %2253 = vmatmul.f32.gmra.mxu0 %v1266
    %v2254 = vpop.f32.mrf.mxu0
    %v2255 = vadd.f32 %v2088, %v2254
    %2256 = vmatmul.f32.gmra.mxu0 %v1270
    %v2257 = vpop.f32.mrf.mxu0
    %v2258 = vadd.f32 %v2091, %v2257
    %2259 = vmatmul.f32.gmra.mxu0 %v1274
    %v2260 = vpop.f32.mrf.mxu0
    %v2261 = vadd.f32 %v2094, %v2260
    %2262 = vmatmul.f32.gmra.mxu0 %v1278
    %v2263 = vpop.f32.mrf.mxu0
    %v2264 = vadd.f32 %v2097, %v2263
    %2265 = vmatmul.f32.gmra.mxu0 %v1282
    %v2266 = vpop.f32.mrf.mxu0
    %v2267 = vadd.f32 %v2100, %v2266
    %2268 = vmatmul.f32.gmra.mxu0 %v1286
    %v2269 = vpop.f32.mrf.mxu0
    %v2270 = vadd.f32 %v2103, %v2269
    %2271 = vmatmul.f32.gmra.mxu0 %v1290
    %v2272 = vpop.f32.mrf.mxu0
    %v2273 = vadd.f32 %v2106, %v2272
    %2274 = vmatmul.f32.gmra.mxu0 %v1294
    %v2275 = vpop.f32.mrf.mxu0
    %v2276 = vadd.f32 %v2109, %v2275
    %2277 = vmatmul.f32.gmra.mxu0 %v1298
    %v2278 = vpop.f32.mrf.mxu0
    %v2279 = vadd.f32 %v2112, %v2278
    %2280 = vmatmul.f32.gmra.mxu0 %v1302
    %v2281 = vpop.f32.mrf.mxu0
    %v2282 = vadd.f32 %v2115, %v2281
    %2283 = vmatmul.f32.gmra.mxu0 %v1306
    %v2284 = vpop.f32.mrf.mxu0
    %v2285 = vadd.f32 %v2118, %v2284
    %2286 = vmatmul.f32.gmra.mxu0 %v1310
    %v2287 = vpop.f32.mrf.mxu0
    %v2288 = vadd.f32 %v2121, %v2287
    %2289 = vmatmul.f32.gmra.mxu0 %v1314
    %v2290 = vpop.f32.mrf.mxu0
    %v2291 = vadd.f32 %v2124, %v2290
    %2292 = vmatmul.f32.gmra.mxu0 %v1318
    %v2293 = vpop.f32.mrf.mxu0
    %v2294 = vadd.f32 %v2127, %v2293
    %2295 = vmatmul.f32.gmra.mxu0 %v1322
    %v2296 = vpop.f32.mrf.mxu0
    %v2297 = vadd.f32 %v2130, %v2296
    %2298 = vmatmul.f32.gmra.mxu0 %v1326
    %v2299 = vpop.f32.mrf.mxu0
    %v2300 = vadd.f32 %v2133, %v2299
    %2301 = vmatmul.f32.gmra.mxu0 %v1330
    %v2302 = vpop.f32.mrf.mxu0
    %v2303 = vadd.f32 %v2136, %v2302
    %2304 = vmatmul.f32.gmra.mxu0 %v1334
    %v2305 = vpop.f32.mrf.mxu0
    %v2306 = vadd.f32 %v2139, %v2305
    %2307 = vmatmul.f32.gmra.mxu0 %v1338
    %v2308 = vpop.f32.mrf.mxu0
    %v2309 = vadd.f32 %v2142, %v2308
    %2310 = vmatmul.f32.gmra.mxu0 %v1342
    %v2311 = vpop.f32.mrf.mxu0
    %v2312 = vadd.f32 %v2145, %v2311
    %2313 = vmatmul.f32.gmra.mxu0 %v1346
    %v2314 = vpop.f32.mrf.mxu0
    %v2315 = vadd.f32 %v2148, %v2314
    %2316 = vmatmul.f32.gmra.mxu0 %v1350
    %v2317 = vpop.f32.mrf.mxu0
    %v2318 = vadd.f32 %v2151, %v2317
    %2319 = vmatmul.f32.gmra.mxu0 %v1354
    %v2320 = vpop.f32.mrf.mxu0
    %v2321 = vadd.f32 %v2154, %v2320
    %2322 = vmatmul.f32.gmra.mxu0 %v1358
    %v2323 = vpop.f32.mrf.mxu0
    %v2324 = vadd.f32 %v2157, %v2323
    %2325 = vmatmul.f32.gmra.mxu0 %v1362
    %v2326 = vpop.f32.mrf.mxu0
    %v2327 = vadd.f32 %v2160, %v2326
    %2328 = vmatmul.f32.gmra.mxu0 %v1366
    %v2329 = vpop.f32.mrf.mxu0
    %v2330 = vadd.f32 %v2163, %v2329
    %2331 = vmatmul.f32.gmra.mxu0 %v1370
    %v2332 = vpop.f32.mrf.mxu0
    %v2333 = vadd.f32 %v2166, %v2332
    %2334 = vmatmul.f32.gmra.mxu0 %v1374
    %v2335 = vpop.f32.mrf.mxu0
    %v2336 = vadd.f32 %v2169, %v2335
    %2337 = vmatmul.f32.gmra.mxu0 %v1378
    %v2338 = vpop.f32.mrf.mxu0
    %v2339 = vadd.f32 %v2172, %v2338
    %2340 = vmatmul.f32.gmra.mxu0 %v1382
    %v2341 = vpop.f32.mrf.mxu0
    %v2342 = vadd.f32 %v2175, %v2341
    %2343 = vmatmul.f32.gmra.mxu0 %v1386
    %v2344 = vpop.f32.mrf.mxu0
    %v2345 = vadd.f32 %v2178, %v2344
    %2346 = vmatmul.f32.gmra.mxu0 %v1390
    %v2347 = vpop.f32.mrf.mxu0
    %v2348 = vadd.f32 %v2181, %v2347
    %2349 = vmatmul.f32.gmra.mxu0 %v1394
    %v2350 = vpop.f32.mrf.mxu0
    %v2351 = vadd.f32 %v2184, %v2350
    %2352 = vmatmul.f32.gmra.mxu0 %v1398
    %v2353 = vpop.f32.mrf.mxu0
    %v2354 = vadd.f32 %v2187, %v2353
    %2355 = vmatmul.f32.gmra.mxu0 %v1402
    %v2356 = vpop.f32.mrf.mxu0
    %v2357 = vadd.f32 %v2190, %v2356
    %2358 = vmatmul.f32.gmra.mxu0 %v1406
    %v2359 = vpop.f32.mrf.mxu0
    %v2360 = vadd.f32 %v2193, %v2359
    %2361 = vmatmul.f32.gmra.mxu0 %v1410
    %v2362 = vpop.f32.mrf.mxu0
    %v2363 = vadd.f32 %v2196, %v2362
    %2364 = vmatmul.f32.gmra.mxu0 %v1414
    %v2365 = vpop.f32.mrf.mxu0
    %v2366 = vadd.f32 %v2199, %v2365
    %2367 = vdwg.mxu0
    %2368 = vmatpush.msra.mxu0 0.0
    %2369 = vmatpush.msra.mxu0 0.0
    %2370 = vmatpush.msra.mxu0 0.0
    %2371 = vmatpush.msra.mxu0 0.0
    %2372 = vmatpush.msra.mxu0 0.0
    %2373 = vmatpush.msra.mxu0 0.0
    %2374 = vmatpush.msra.mxu0 0.0
    %2375 = vmatpush.msra.mxu0 0.0
    %2376 = vmatpush.msra.mxu0 0.0
    %2377 = vmatpush.msra.mxu0 0.0
    %2378 = vmatpush.msra.mxu0 0.0
    %2379 = vmatpush.msra.mxu0 0.0
    %2380 = vmatpush.msra.mxu0 0.0
    %2381 = vmatpush.msra.mxu0 0.0
    %2382 = vmatpush.msra.mxu0 %v1215
    %2383 = vmatpush.msra.mxu0 %v1214
    %2384 = vmatmul.f32.gmra.mxu0 %v1718
    %v2385 = vpop.f32.mrf.mxu0
    %v2386 = vadd.f32 %v2219, %v2385
    %2387 = vmatmul.f32.gmra.mxu0 %v1721
    %v2388 = vpop.f32.mrf.mxu0
    %v2389 = vadd.f32 %v2222, %v2388
    %2390 = vmatmul.f32.gmra.mxu0 %v1724
    %v2391 = vpop.f32.mrf.mxu0
    %v2392 = vadd.f32 %v2225, %v2391
    %2393 = vmatmul.f32.gmra.mxu0 %v1727
    %v2394 = vpop.f32.mrf.mxu0
    %v2395 = vadd.f32 %v2228, %v2394
    %2396 = vmatmul.f32.gmra.mxu0 %v1730
    %v2397 = vpop.f32.mrf.mxu0
    %v2398 = vadd.f32 %v2231, %v2397
    %2399 = vmatmul.f32.gmra.mxu0 %v1733
    %v2400 = vpop.f32.mrf.mxu0
    %v2401 = vadd.f32 %v2234, %v2400
    %2402 = vmatmul.f32.gmra.mxu0 %v1736
    %v2403 = vpop.f32.mrf.mxu0
    %v2404 = vadd.f32 %v2237, %v2403
    %2405 = vmatmul.f32.gmra.mxu0 %v1739
    %v2406 = vpop.f32.mrf.mxu0
    %v2407 = vadd.f32 %v2240, %v2406
    %2408 = vmatmul.f32.gmra.mxu0 %v1742
    %v2409 = vpop.f32.mrf.mxu0
    %v2410 = vadd.f32 %v2243, %v2409
    %2411 = vmatmul.f32.gmra.mxu0 %v1745
    %v2412 = vpop.f32.mrf.mxu0
    %v2413 = vadd.f32 %v2246, %v2412
    %2414 = vmatmul.f32.gmra.mxu0 %v1748
    %v2415 = vpop.f32.mrf.mxu0
    %v2416 = vadd.f32 %v2249, %v2415
    %2417 = vmatmul.f32.gmra.mxu0 %v1751
    %v2418 = vpop.f32.mrf.mxu0
    %v2419 = vadd.f32 %v2252, %v2418
    %2420 = vmatmul.f32.gmra.mxu0 %v1754
    %v2421 = vpop.f32.mrf.mxu0
    %v2422 = vadd.f32 %v2255, %v2421
    %2423 = vmatmul.f32.gmra.mxu0 %v1757
    %v2424 = vpop.f32.mrf.mxu0
    %v2425 = vadd.f32 %v2258, %v2424
    %2426 = vmatmul.f32.gmra.mxu0 %v1760
    %v2427 = vpop.f32.mrf.mxu0
    %v2428 = vadd.f32 %v2261, %v2427
    %2429 = vmatmul.f32.gmra.mxu0 %v1763
    %v2430 = vpop.f32.mrf.mxu0
    %v2431 = vadd.f32 %v2264, %v2430
    %2432 = vmatmul.f32.gmra.mxu0 %v1766
    %v2433 = vpop.f32.mrf.mxu0
    %v2434 = vadd.f32 %v2267, %v2433
    %2435 = vmatmul.f32.gmra.mxu0 %v1769
    %v2436 = vpop.f32.mrf.mxu0
    %v2437 = vadd.f32 %v2270, %v2436
    %2438 = vmatmul.f32.gmra.mxu0 %v1772
    %v2439 = vpop.f32.mrf.mxu0
    %v2440 = vadd.f32 %v2273, %v2439
    %2441 = vmatmul.f32.gmra.mxu0 %v1775
    %v2442 = vpop.f32.mrf.mxu0
    %v2443 = vadd.f32 %v2276, %v2442
    %2444 = vmatmul.f32.gmra.mxu0 %v1778
    %v2445 = vpop.f32.mrf.mxu0
    %v2446 = vadd.f32 %v2279, %v2445
    %2447 = vmatmul.f32.gmra.mxu0 %v1781
    %v2448 = vpop.f32.mrf.mxu0
    %v2449 = vadd.f32 %v2282, %v2448
    %2450 = vmatmul.f32.gmra.mxu0 %v1784
    %v2451 = vpop.f32.mrf.mxu0
    %v2452 = vadd.f32 %v2285, %v2451
    %2453 = vmatmul.f32.gmra.mxu0 %v1787
    %v2454 = vpop.f32.mrf.mxu0
    %v2455 = vadd.f32 %v2288, %v2454
    %2456 = vmatmul.f32.gmra.mxu0 %v1790
    %v2457 = vpop.f32.mrf.mxu0
    %v2458 = vadd.f32 %v2291, %v2457
    %2459 = vmatmul.f32.gmra.mxu0 %v1793
    %v2460 = vpop.f32.mrf.mxu0
    %v2461 = vadd.f32 %v2294, %v2460
    %2462 = vmatmul.f32.gmra.mxu0 %v1796
    %v2463 = vpop.f32.mrf.mxu0
    %v2464 = vadd.f32 %v2297, %v2463
    %2465 = vmatmul.f32.gmra.mxu0 %v1799
    %v2466 = vpop.f32.mrf.mxu0
    %v2467 = vadd.f32 %v2300, %v2466
    %2468 = vmatmul.f32.gmra.mxu0 %v1802
    %v2469 = vpop.f32.mrf.mxu0
    %v2470 = vadd.f32 %v2303, %v2469
    %2471 = vmatmul.f32.gmra.mxu0 %v1805
    %v2472 = vpop.f32.mrf.mxu0
    %v2473 = vadd.f32 %v2306, %v2472
    %2474 = vmatmul.f32.gmra.mxu0 %v1808
    %v2475 = vpop.f32.mrf.mxu0
    %v2476 = vadd.f32 %v2309, %v2475
    %2477 = vmatmul.f32.gmra.mxu0 %v1811
    %v2478 = vpop.f32.mrf.mxu0
    %v2479 = vadd.f32 %v2312, %v2478
    %2480 = vmatmul.f32.gmra.mxu0 %v1814
    %v2481 = vpop.f32.mrf.mxu0
    %v2482 = vadd.f32 %v2315, %v2481
    %2483 = vmatmul.f32.gmra.mxu0 %v1817
    %v2484 = vpop.f32.mrf.mxu0
    %v2485 = vadd.f32 %v2318, %v2484
    %2486 = vmatmul.f32.gmra.mxu0 %v1820
    %v2487 = vpop.f32.mrf.mxu0
    %v2488 = vadd.f32 %v2321, %v2487
    %2489 = vmatmul.f32.gmra.mxu0 %v1823
    %v2490 = vpop.f32.mrf.mxu0
    %v2491 = vadd.f32 %v2324, %v2490
    %2492 = vmatmul.f32.gmra.mxu0 %v1826
    %v2493 = vpop.f32.mrf.mxu0
    %v2494 = vadd.f32 %v2327, %v2493
    %2495 = vmatmul.f32.gmra.mxu0 %v1829
    %v2496 = vpop.f32.mrf.mxu0
    %v2497 = vadd.f32 %v2330, %v2496
    %2498 = vmatmul.f32.gmra.mxu0 %v1832
    %v2499 = vpop.f32.mrf.mxu0
    %v2500 = vadd.f32 %v2333, %v2499
    %2501 = vmatmul.f32.gmra.mxu0 %v1835
    %v2502 = vpop.f32.mrf.mxu0
    %v2503 = vadd.f32 %v2336, %v2502
    %2504 = vmatmul.f32.gmra.mxu0 %v1838
    %v2505 = vpop.f32.mrf.mxu0
    %v2506 = vadd.f32 %v2339, %v2505
    %2507 = vmatmul.f32.gmra.mxu0 %v1841
    %v2508 = vpop.f32.mrf.mxu0
    %v2509 = vadd.f32 %v2342, %v2508
    %2510 = vmatmul.f32.gmra.mxu0 %v1844
    %v2511 = vpop.f32.mrf.mxu0
    %v2512 = vadd.f32 %v2345, %v2511
    %2513 = vmatmul.f32.gmra.mxu0 %v1847
    %v2514 = vpop.f32.mrf.mxu0
    %v2515 = vadd.f32 %v2348, %v2514
    %2516 = vmatmul.f32.gmra.mxu0 %v1850
    %v2517 = vpop.f32.mrf.mxu0
    %v2518 = vadd.f32 %v2351, %v2517
    %2519 = vmatmul.f32.gmra.mxu0 %v1853
    %v2520 = vpop.f32.mrf.mxu0
    %v2521 = vadd.f32 %v2354, %v2520
    %2522 = vmatmul.f32.gmra.mxu0 %v1856
    %v2523 = vpop.f32.mrf.mxu0
    %v2524 = vadd.f32 %v2357, %v2523
    %2525 = vmatmul.f32.gmra.mxu0 %v1859
    %v2526 = vpop.f32.mrf.mxu0
    %v2527 = vadd.f32 %v2360, %v2526
    %2528 = vmatmul.f32.gmra.mxu0 %v1862
    %v2529 = vpop.f32.mrf.mxu0
    %v2530 = vadd.f32 %v2363, %v2529
    %2531 = vmatmul.f32.gmra.mxu0 %v1865
    %v2532 = vpop.f32.mrf.mxu0
    %v2533 = vadd.f32 %v2366, %v2532
    %2534 = vdwg.mxu0
    %v2535 = vmax.f32 %v2386, 0.0
    %v2536 = vmax.f32 %v2389, 0.0
    %v2537 = vmax.f32 %v2392, 0.0
    %v2538 = vmax.f32 %v2395, 0.0
    %v2539 = vmax.f32 %v2398, 0.0
    %v2540 = vmax.f32 %v2401, 0.0
    %v2541 = vmax.f32 %v2404, 0.0
    %v2542 = vmax.f32 %v2407, 0.0
    %v2543 = vmax.f32 %v2410, 0.0
    %v2544 = vmax.f32 %v2413, 0.0
    %v2545 = vmax.f32 %v2416, 0.0
    %v2546 = vmax.f32 %v2419, 0.0
    %v2547 = vmax.f32 %v2422, 0.0
    %v2548 = vmax.f32 %v2425, 0.0
    %v2549 = vmax.f32 %v2428, 0.0
    %v2550 = vmax.f32 %v2431, 0.0
    %v2551 = vmax.f32 %v2434, 0.0
    %v2552 = vmax.f32 %v2437, 0.0
    %v2553 = vmax.f32 %v2440, 0.0
    %v2554 = vmax.f32 %v2443, 0.0
    %v2555 = vmax.f32 %v2446, 0.0
    %v2556 = vmax.f32 %v2449, 0.0
    %v2557 = vmax.f32 %v2452, 0.0
    %v2558 = vmax.f32 %v2455, 0.0
    %v2559 = vmax.f32 %v2458, 0.0
    %v2560 = vmax.f32 %v2461, 0.0
    %v2561 = vmax.f32 %v2464, 0.0
    %v2562 = vmax.f32 %v2467, 0.0
    %v2563 = vmax.f32 %v2470, 0.0
    %v2564 = vmax.f32 %v2473, 0.0
    %v2565 = vmax.f32 %v2476, 0.0
    %v2566 = vmax.f32 %v2479, 0.0
    %v2567 = vmax.f32 %v2482, 0.0
    %v2568 = vmax.f32 %v2485, 0.0
    %v2569 = vmax.f32 %v2488, 0.0
    %v2570 = vmax.f32 %v2491, 0.0
    %v2571 = vmax.f32 %v2494, 0.0
    %v2572 = vmax.f32 %v2497, 0.0
    %v2573 = vmax.f32 %v2500, 0.0
    %v2574 = vmax.f32 %v2503, 0.0
    %v2575 = vmax.f32 %v2506, 0.0
    %v2576 = vmax.f32 %v2509, 0.0
    %v2577 = vmax.f32 %v2512, 0.0
    %v2578 = vmax.f32 %v2515, 0.0
    %v2579 = vmax.f32 %v2518, 0.0
    %v2580 = vmax.f32 %v2521, 0.0
    %v2581 = vmax.f32 %v2524, 0.0
    %v2582 = vmax.f32 %v2527, 0.0
    %v2583 = vmax.f32 %v2530, 0.0
    %v2584 = vmax.f32 %v2533, 0.0
    %v2585 = vld [vmem:[#allocation6] sm:$0xff]
    %v2586 = vld [vmem:[#allocation6 + $0x8] sm:$0xff]
    %v2587 = vld [vmem:[#allocation6 + $0x10] sm:$0xff]
    %v2588 = vld [vmem:[#allocation6 + $0x18] sm:$0xff]
    %v2589 = vld [vmem:[#allocation6 + $0x20] sm:$0xff]
    %v2590 = vld [vmem:[#allocation6 + $0x28] sm:$0xff]
    %v2591 = vld [vmem:[#allocation6 + $0x30] sm:$0xff]
    %v2592 = vld [vmem:[#allocation6 + $0x38] sm:$0xff]
    %v2593 = vld [vmem:[#allocation6 + $0x40] sm:$0xff]
    %v2594 = vld [vmem:[#allocation6 + $0x48] sm:$0xff]
    %v2595 = vld [vmem:[#allocation6 + $0x50] sm:$0xff]
    %v2596 = vld [vmem:[#allocation6 + $0x58] sm:$0xff]
    %v2597 = vld [vmem:[#allocation6 + $0x60] sm:$0xff]
    %v2598 = vld [vmem:[#allocation6 + $0x68] sm:$0xff]
    %v2599 = vld [vmem:[#allocation6 + $0x70] sm:$0xff]
    %v2600 = vld [vmem:[#allocation6 + $0x78] sm:$0xff]
    %v2601 = vld [vmem:[#allocation6 + $0x80] sm:$0xff]
    %v2602 = vld [vmem:[#allocation6 + $0x88] sm:$0xff]
    %v2603 = vld [vmem:[#allocation6 + $0x90] sm:$0xff]
    %v2604 = vld [vmem:[#allocation6 + $0x98] sm:$0xff]
    %v2605 = vld [vmem:[#allocation6 + $0xa0] sm:$0xff]
    %v2606 = vld [vmem:[#allocation6 + $0xa8] sm:$0xff]
    %v2607 = vld [vmem:[#allocation6 + $0xb0] sm:$0xff]
    %v2608 = vld [vmem:[#allocation6 + $0xb8] sm:$0xff]
    %v2609 = vld [vmem:[#allocation6 + $0xc0] sm:$0xff]
    %v2610 = vld [vmem:[#allocation6 + $0xc8] sm:$0xff]
    %v2611 = vld [vmem:[#allocation6 + $0xd0] sm:$0xff]
    %v2612 = vld [vmem:[#allocation6 + $0xd8] sm:$0xff]
    %v2613 = vld [vmem:[#allocation6 + $0xe0] sm:$0xff]
    %v2614 = vld [vmem:[#allocation6 + $0xe8] sm:$0xff]
    %v2615 = vld [vmem:[#allocation6 + $0xf0] sm:$0xff]
    %v2616 = vld [vmem:[#allocation6 + $0xf8] sm:$0xff]
    %v2617 = vld [vmem:[#allocation6 + $0x100] sm:$0xff]
    %v2618 = vld [vmem:[#allocation6 + $0x108] sm:$0xff]
    %v2619 = vld [vmem:[#allocation6 + $0x110] sm:$0xff]
    %v2620 = vld [vmem:[#allocation6 + $0x118] sm:$0xff]
    %v2621 = vld [vmem:[#allocation6 + $0x120] sm:$0xff]
    %v2622 = vld [vmem:[#allocation6 + $0x128] sm:$0xff]
    %v2623 = vld [vmem:[#allocation6 + $0x130] sm:$0xff]
    %v2624 = vld [vmem:[#allocation6 + $0x138] sm:$0xff]
    %v2625 = vld [vmem:[#allocation6 + $0x140] sm:$0xff]
    %v2626 = vld [vmem:[#allocation6 + $0x148] sm:$0xff]
    %v2627 = vld [vmem:[#allocation6 + $0x150] sm:$0xff]
    %v2628 = vld [vmem:[#allocation6 + $0x158] sm:$0xff]
    %v2629 = vld [vmem:[#allocation6 + $0x160] sm:$0xff]
    %v2630 = vld [vmem:[#allocation6 + $0x168] sm:$0xff]
    %v2631 = vld [vmem:[#allocation6 + $0x170] sm:$0xff]
    %v2632 = vld [vmem:[#allocation6 + $0x178] sm:$0xff]
    %v2633 = vld [vmem:[#allocation6 + $0x180] sm:$0xff]
    %v2634 = vld [vmem:[#allocation6 + $0x188] sm:$0xff]
    %v2635 = vld [vmem:[#allocation6 + $0x190] sm:$0xff]
    %v2636 = vld [vmem:[#allocation6 + $0x198] sm:$0xff]
    %v2637 = vld [vmem:[#allocation6 + $0x1a0] sm:$0xff]
    %v2638 = vld [vmem:[#allocation6 + $0x1a8] sm:$0xff]
    %v2639 = vld [vmem:[#allocation6 + $0x1b0] sm:$0xff]
    %v2640 = vld [vmem:[#allocation6 + $0x1b8] sm:$0xff]
    %v2641 = vld [vmem:[#allocation6 + $0x1c0] sm:$0xff]
    %v2642 = vld [vmem:[#allocation6 + $0x1c8] sm:$0xff]
    %v2643 = vld [vmem:[#allocation6 + $0x1d0] sm:$0xff]
    %v2644 = vld [vmem:[#allocation6 + $0x1d8] sm:$0xff]
    %v2645 = vld [vmem:[#allocation6 + $0x1e0] sm:$0xff]
    %v2646 = vld [vmem:[#allocation6 + $0x1e8] sm:$0xff]
    %v2647 = vld [vmem:[#allocation6 + $0x1f0] sm:$0xff]
    %v2648 = vld [vmem:[#allocation6 + $0x1f8] sm:$0xff]
    %v2649 = vld [vmem:[#allocation6 + $0x200] sm:$0xff]
    %v2650 = vld [vmem:[#allocation6 + $0x208] sm:$0xff]
    %v2651 = vld [vmem:[#allocation6 + $0x210] sm:$0xff]
    %v2652 = vld [vmem:[#allocation6 + $0x218] sm:$0xff]
    %v2653 = vld [vmem:[#allocation6 + $0x220] sm:$0xff]
    %v2654 = vld [vmem:[#allocation6 + $0x228] sm:$0xff]
    %v2655 = vld [vmem:[#allocation6 + $0x230] sm:$0xff]
    %v2656 = vld [vmem:[#allocation6 + $0x238] sm:$0xff]
    %v2657 = vld [vmem:[#allocation6 + $0x240] sm:$0xff]
    %v2658 = vld [vmem:[#allocation6 + $0x248] sm:$0xff]
    %v2659 = vld [vmem:[#allocation6 + $0x250] sm:$0xff]
    %v2660 = vld [vmem:[#allocation6 + $0x258] sm:$0xff]
    %v2661 = vld [vmem:[#allocation6 + $0x260] sm:$0xff]
    %v2662 = vld [vmem:[#allocation6 + $0x268] sm:$0xff]
    %v2663 = vld [vmem:[#allocation6 + $0x270] sm:$0xff]
    %v2664 = vld [vmem:[#allocation6 + $0x278] sm:$0xff]
    %v2665 = vld [vmem:[#allocation6 + $0x280] sm:$0xff]
    %v2666 = vld [vmem:[#allocation6 + $0x288] sm:$0xff]
    %v2667 = vld [vmem:[#allocation6 + $0x290] sm:$0xff]
    %v2668 = vld [vmem:[#allocation6 + $0x298] sm:$0xff]
    %v2669 = vld [vmem:[#allocation6 + $0x2a0] sm:$0xff]
    %v2670 = vld [vmem:[#allocation6 + $0x2a8] sm:$0xff]
    %v2671 = vld [vmem:[#allocation6 + $0x2b0] sm:$0xff]
    %v2672 = vld [vmem:[#allocation6 + $0x2b8] sm:$0xff]
    %v2673 = vld [vmem:[#allocation6 + $0x2c0] sm:$0xff]
    %v2674 = vld [vmem:[#allocation6 + $0x2c8] sm:$0xff]
    %v2675 = vld [vmem:[#allocation6 + $0x2d0] sm:$0xff]
    %v2676 = vld [vmem:[#allocation6 + $0x2d8] sm:$0xff]
    %v2677 = vld [vmem:[#allocation6 + $0x2e0] sm:$0xff]
    %v2678 = vld [vmem:[#allocation6 + $0x2e8] sm:$0xff]
    %v2679 = vld [vmem:[#allocation6 + $0x2f0] sm:$0xff]
    %v2680 = vld [vmem:[#allocation6 + $0x2f8] sm:$0xff]
    %v2681 = vld [vmem:[#allocation6 + $0x300] sm:$0xff]
    %v2682 = vld [vmem:[#allocation6 + $0x308] sm:$0xff]
    %v2683 = vld [vmem:[#allocation6 + $0x310] sm:$0xff]
    %v2684 = vld [vmem:[#allocation6 + $0x318] sm:$0xff]
    %v2685 = vld [vmem:[#allocation6 + $0x320] sm:$0xff]
    %v2686 = vld [vmem:[#allocation6 + $0x328] sm:$0xff]
    %v2687 = vld [vmem:[#allocation6 + $0x330] sm:$0xff]
    %v2688 = vld [vmem:[#allocation6 + $0x338] sm:$0xff]
    %v2689 = vld [vmem:[#allocation6 + $0x340] sm:$0xff]
    %v2690 = vld [vmem:[#allocation6 + $0x348] sm:$0xff]
    %v2691 = vld [vmem:[#allocation6 + $0x350] sm:$0xff]
    %v2692 = vld [vmem:[#allocation6 + $0x358] sm:$0xff]
    %v2693 = vld [vmem:[#allocation6 + $0x360] sm:$0xff]
    %v2694 = vld [vmem:[#allocation6 + $0x368] sm:$0xff]
    %v2695 = vld [vmem:[#allocation6 + $0x370] sm:$0xff]
    %v2696 = vld [vmem:[#allocation6 + $0x378] sm:$0xff]
    %v2697 = vld [vmem:[#allocation6 + $0x380] sm:$0xff]
    %v2698 = vld [vmem:[#allocation6 + $0x388] sm:$0xff]
    %v2699 = vld [vmem:[#allocation6 + $0x390] sm:$0xff]
    %v2700 = vld [vmem:[#allocation6 + $0x398] sm:$0xff]
    %v2701 = vld [vmem:[#allocation6 + $0x3a0] sm:$0xff]
    %v2702 = vld [vmem:[#allocation6 + $0x3a8] sm:$0xff]
    %v2703 = vld [vmem:[#allocation6 + $0x3b0] sm:$0xff]
    %v2704 = vld [vmem:[#allocation6 + $0x3b8] sm:$0xff]
    %v2705 = vld [vmem:[#allocation6 + $0x3c0] sm:$0xff]
    %v2706 = vld [vmem:[#allocation6 + $0x3c8] sm:$0xff]
    %v2707 = vld [vmem:[#allocation6 + $0x3d0] sm:$0xff]
    %v2708 = vld [vmem:[#allocation6 + $0x3d8] sm:$0xff]
    %v2709 = vld [vmem:[#allocation6 + $0x3e0] sm:$0xff]
    %v2710 = vld [vmem:[#allocation6 + $0x3e8] sm:$0xff]
    %v2711 = vld [vmem:[#allocation6 + $0x3f0] sm:$0xff]
    %v2712 = vld [vmem:[#allocation6 + $0x3f8] sm:$0xff]
    %v2713 = vld [vmem:[#allocation6 + $0x400] sm:$0xff]
    %v2714 = vld [vmem:[#allocation6 + $0x408] sm:$0xff]
    %v2715 = vld [vmem:[#allocation6 + $0x410] sm:$0xff]
    %v2716 = vld [vmem:[#allocation6 + $0x418] sm:$0xff]
    %v2717 = vld [vmem:[#allocation6 + $0x420] sm:$0xff]
    %v2718 = vld [vmem:[#allocation6 + $0x428] sm:$0xff]
    %v2719 = vld [vmem:[#allocation6 + $0x430] sm:$0xff]
    %v2720 = vld [vmem:[#allocation6 + $0x438] sm:$0xff]
    %v2721 = vld [vmem:[#allocation6 + $0x440] sm:$0xff]
    %v2722 = vld [vmem:[#allocation6 + $0x448] sm:$0xff]
    %v2723 = vld [vmem:[#allocation6 + $0x450] sm:$0xff]
    %v2724 = vld [vmem:[#allocation6 + $0x458] sm:$0xff]
    %v2725 = vld [vmem:[#allocation6 + $0x460] sm:$0xff]
    %v2726 = vld [vmem:[#allocation6 + $0x468] sm:$0xff]
    %v2727 = vld [vmem:[#allocation6 + $0x470] sm:$0xff]
    %v2728 = vld [vmem:[#allocation6 + $0x478] sm:$0xff]
    %v2729 = vld [vmem:[#allocation6 + $0x480] sm:$0xff]
    %v2730 = vld [vmem:[#allocation6 + $0x488] sm:$0xff]
    %v2731 = vld [vmem:[#allocation6 + $0x490] sm:$0xff]
    %v2732 = vld [vmem:[#allocation6 + $0x498] sm:$0xff]
    %v2733 = vld [vmem:[#allocation6 + $0x4a0] sm:$0xff]
    %v2734 = vld [vmem:[#allocation6 + $0x4a8] sm:$0xff]
    %v2735 = vld [vmem:[#allocation6 + $0x4b0] sm:$0xff]
    %v2736 = vld [vmem:[#allocation6 + $0x4b8] sm:$0xff]
    %v2737 = vld [vmem:[#allocation6 + $0x4c0] sm:$0xff]
    %v2738 = vld [vmem:[#allocation6 + $0x4c8] sm:$0xff]
    %v2739 = vld [vmem:[#allocation6 + $0x4d0] sm:$0xff]
    %v2740 = vld [vmem:[#allocation6 + $0x4d8] sm:$0xff]
    %v2741 = vld [vmem:[#allocation6 + $0x4e0] sm:$0xff]
    %v2742 = vld [vmem:[#allocation6 + $0x4e8] sm:$0xff]
    %v2743 = vld [vmem:[#allocation6 + $0x4f0] sm:$0xff]
    %v2744 = vld [vmem:[#allocation6 + $0x4f8] sm:$0xff]
    %v2745 = vld [vmem:[#allocation6 + $0x500] sm:$0xff]
    %v2746 = vld [vmem:[#allocation6 + $0x508] sm:$0xff]
    %v2747 = vld [vmem:[#allocation6 + $0x510] sm:$0xff]
    %v2748 = vld [vmem:[#allocation6 + $0x518] sm:$0xff]
    %v2749 = vld [vmem:[#allocation6 + $0x520] sm:$0xff]
    %v2750 = vld [vmem:[#allocation6 + $0x528] sm:$0xff]
    %v2751 = vld [vmem:[#allocation6 + $0x530] sm:$0xff]
    %v2752 = vld [vmem:[#allocation6 + $0x538] sm:$0xff]
    %v2753 = vld [vmem:[#allocation6 + $0x540] sm:$0xff]
    %v2754 = vld [vmem:[#allocation6 + $0x548] sm:$0xff]
    %v2755 = vld [vmem:[#allocation6 + $0x550] sm:$0xff]
    %v2756 = vld [vmem:[#allocation6 + $0x558] sm:$0xff]
    %v2757 = vld [vmem:[#allocation6 + $0x560] sm:$0xff]
    %v2758 = vld [vmem:[#allocation6 + $0x568] sm:$0xff]
    %v2759 = vld [vmem:[#allocation6 + $0x570] sm:$0xff]
    %v2760 = vld [vmem:[#allocation6 + $0x578] sm:$0xff]
    %v2761 = vld [vmem:[#allocation6 + $0x580] sm:$0xff]
    %v2762 = vld [vmem:[#allocation6 + $0x588] sm:$0xff]
    %v2763 = vld [vmem:[#allocation6 + $0x590] sm:$0xff]
    %v2764 = vld [vmem:[#allocation6 + $0x598] sm:$0xff]
    %v2765 = vld [vmem:[#allocation6 + $0x5a0] sm:$0xff]
    %v2766 = vld [vmem:[#allocation6 + $0x5a8] sm:$0xff]
    %v2767 = vld [vmem:[#allocation6 + $0x5b0] sm:$0xff]
    %v2768 = vld [vmem:[#allocation6 + $0x5b8] sm:$0xff]
    %v2769 = vld [vmem:[#allocation6 + $0x5c0] sm:$0xff]
    %v2770 = vld [vmem:[#allocation6 + $0x5c8] sm:$0xff]
    %v2771 = vld [vmem:[#allocation6 + $0x5d0] sm:$0xff]
    %v2772 = vld [vmem:[#allocation6 + $0x5d8] sm:$0xff]
    %v2773 = vld [vmem:[#allocation6 + $0x5e0] sm:$0xff]
    %v2774 = vld [vmem:[#allocation6 + $0x5e8] sm:$0xff]
    %v2775 = vld [vmem:[#allocation6 + $0x5f0] sm:$0xff]
    %v2776 = vld [vmem:[#allocation6 + $0x5f8] sm:$0xff]
    %v2777 = vld [vmem:[#allocation6 + $0x600] sm:$0xff]
    %v2778 = vld [vmem:[#allocation6 + $0x608] sm:$0xff]
    %v2779 = vld [vmem:[#allocation6 + $0x610] sm:$0xff]
    %v2780 = vld [vmem:[#allocation6 + $0x618] sm:$0xff]
    %v2781 = vld [vmem:[#allocation6 + $0x620] sm:$0xff]
    %v2782 = vld [vmem:[#allocation6 + $0x628] sm:$0xff]
    %v2783 = vld [vmem:[#allocation6 + $0x630] sm:$0xff]
    %v2784 = vld [vmem:[#allocation6 + $0x638] sm:$0xff]
    %v2785 = vld [vmem:[%s8] sm:$0xff]
    %v2786 = vld [vmem:[%s8 + $0x8] sm:$0xff]
    %v2787 = vld [vmem:[%s8 + $0x10] sm:$0xff]
    %v2788 = vld [vmem:[%s8 + $0x18] sm:$0xff]
    %v2789 = vld [vmem:[%s8 + $0x20] sm:$0xff]
    %v2790 = vld [vmem:[%s8 + $0x28] sm:$0xff]
    %v2791 = vld [vmem:[%s8 + $0x30] sm:$0xff]
    %v2792 = vld [vmem:[%s8 + $0x38] sm:$0xff]
    %v2793 = vld [vmem:[%s8 + $0x40] sm:$0xff]
    %v2794 = vld [vmem:[%s8 + $0x48] sm:$0xff]
    %v2795 = vld [vmem:[%s8 + $0x50] sm:$0xff]
    %v2796 = vld [vmem:[%s8 + $0x58] sm:$0xff]
    %v2797 = vld [vmem:[%s8 + $0x60] sm:$0xff]
    %v2798 = vld [vmem:[%s8 + $0x68] sm:$0xff]
    %v2799 = vld [vmem:[%s8 + $0x70] sm:$0xff]
    %v2800 = vld [vmem:[%s8 + $0x78] sm:$0xff]
    %v2801 = vld [vmem:[%s8 + $0x80] sm:$0xff]
    %v2802 = vld [vmem:[%s8 + $0x88] sm:$0xff]
    %v2803 = vld [vmem:[%s8 + $0x90] sm:$0xff]
    %v2804 = vld [vmem:[%s8 + $0x98] sm:$0xff]
    %v2805 = vld [vmem:[%s8 + $0xa0] sm:$0xff]
    %v2806 = vld [vmem:[%s8 + $0xa8] sm:$0xff]
    %v2807 = vld [vmem:[%s8 + $0xb0] sm:$0xff]
    %v2808 = vld [vmem:[%s8 + $0xb8] sm:$0xff]
    %v2809 = vld [vmem:[%s8 + $0xc0] sm:$0xff]
    %v2810 = vld [vmem:[%s8 + $0xc8] sm:$0xff]
    %v2811 = vld [vmem:[%s8 + $0xd0] sm:$0xff]
    %v2812 = vld [vmem:[%s8 + $0xd8] sm:$0xff]
    %v2813 = vld [vmem:[%s8 + $0xe0] sm:$0xff]
    %v2814 = vld [vmem:[%s8 + $0xe8] sm:$0xff]
    %v2815 = vld [vmem:[%s8 + $0xf0] sm:$0xff]
    %v2816 = vld [vmem:[%s8 + $0xf8] sm:$0xff]
    %v2817 = vld [vmem:[%s8 + $0x100] sm:$0xff]
    %v2818 = vld [vmem:[%s8 + $0x108] sm:$0xff]
    %v2819 = vld [vmem:[%s8 + $0x110] sm:$0xff]
    %v2820 = vld [vmem:[%s8 + $0x118] sm:$0xff]
    %v2821 = vld [vmem:[%s8 + $0x120] sm:$0xff]
    %v2822 = vld [vmem:[%s8 + $0x128] sm:$0xff]
    %v2823 = vld [vmem:[%s8 + $0x130] sm:$0xff]
    %v2824 = vld [vmem:[%s8 + $0x138] sm:$0xff]
    %v2825 = vld [vmem:[%s8 + $0x140] sm:$0xff]
    %v2826 = vld [vmem:[%s8 + $0x148] sm:$0xff]
    %v2827 = vld [vmem:[%s8 + $0x150] sm:$0xff]
    %v2828 = vld [vmem:[%s8 + $0x158] sm:$0xff]
    %v2829 = vld [vmem:[%s8 + $0x160] sm:$0xff]
    %v2830 = vld [vmem:[%s8 + $0x168] sm:$0xff]
    %v2831 = vld [vmem:[%s8 + $0x170] sm:$0xff]
    %v2832 = vld [vmem:[%s8 + $0x178] sm:$0xff]
    %v2833 = vld [vmem:[%s8 + $0x180] sm:$0xff]
    %v2834 = vld [vmem:[%s8 + $0x188] sm:$0xff]
    %2836 = vset.pattern.permute.xlu0 0
    %2837 = vperm.xlu0 %2836, %v2785
    %v2838 = vpop.permute.xlu0 %2837
    %2841 = vset.pattern.permute.xlu0 0
    %2842 = vperm.xlu0 %2841, %v2786
    %v2843 = vpop.permute.xlu0 %2842
    %2846 = vset.pattern.permute.xlu0 0
    %2847 = vperm.xlu0 %2846, %v2787
    %v2848 = vpop.permute.xlu0 %2847
    %2851 = vset.pattern.permute.xlu0 0
    %2852 = vperm.xlu0 %2851, %v2788
    %v2853 = vpop.permute.xlu0 %2852
    %2856 = vset.pattern.permute.xlu0 0
    %2857 = vperm.xlu0 %2856, %v2789
    %v2858 = vpop.permute.xlu0 %2857
    %2861 = vset.pattern.permute.xlu0 0
    %2862 = vperm.xlu0 %2861, %v2790
    %v2863 = vpop.permute.xlu0 %2862
    %2866 = vset.pattern.permute.xlu0 0
    %2867 = vperm.xlu0 %2866, %v2791
    %v2868 = vpop.permute.xlu0 %2867
    %2871 = vset.pattern.permute.xlu0 0
    %2872 = vperm.xlu0 %2871, %v2792
    %v2873 = vpop.permute.xlu0 %2872
    %2876 = vset.pattern.permute.xlu0 0
    %2877 = vperm.xlu0 %2876, %v2793
    %v2878 = vpop.permute.xlu0 %2877
    %2881 = vset.pattern.permute.xlu0 0
    %2882 = vperm.xlu0 %2881, %v2794
    %v2883 = vpop.permute.xlu0 %2882
    %2886 = vset.pattern.permute.xlu0 0
    %2887 = vperm.xlu0 %2886, %v2795
    %v2888 = vpop.permute.xlu0 %2887
    %2891 = vset.pattern.permute.xlu0 0
    %2892 = vperm.xlu0 %2891, %v2796
    %v2893 = vpop.permute.xlu0 %2892
    %2896 = vset.pattern.permute.xlu0 0
    %2897 = vperm.xlu0 %2896, %v2797
    %v2898 = vpop.permute.xlu0 %2897
    %2901 = vset.pattern.permute.xlu0 0
    %2902 = vperm.xlu0 %2901, %v2798
    %v2903 = vpop.permute.xlu0 %2902
    %2906 = vset.pattern.permute.xlu0 0
    %2907 = vperm.xlu0 %2906, %v2799
    %v2908 = vpop.permute.xlu0 %2907
    %2911 = vset.pattern.permute.xlu0 0
    %2912 = vperm.xlu0 %2911, %v2800
    %v2913 = vpop.permute.xlu0 %2912
    %2916 = vset.pattern.permute.xlu0 0
    %2917 = vperm.xlu0 %2916, %v2801
    %v2918 = vpop.permute.xlu0 %2917
    %2921 = vset.pattern.permute.xlu0 0
    %2922 = vperm.xlu0 %2921, %v2802
    %v2923 = vpop.permute.xlu0 %2922
    %2926 = vset.pattern.permute.xlu0 0
    %2927 = vperm.xlu0 %2926, %v2803
    %v2928 = vpop.permute.xlu0 %2927
    %2931 = vset.pattern.permute.xlu0 0
    %2932 = vperm.xlu0 %2931, %v2804
    %v2933 = vpop.permute.xlu0 %2932
    %2936 = vset.pattern.permute.xlu0 0
    %2937 = vperm.xlu0 %2936, %v2805
    %v2938 = vpop.permute.xlu0 %2937
    %2941 = vset.pattern.permute.xlu0 0
    %2942 = vperm.xlu0 %2941, %v2806
    %v2943 = vpop.permute.xlu0 %2942
    %2946 = vset.pattern.permute.xlu0 0
    %2947 = vperm.xlu0 %2946, %v2807
    %v2948 = vpop.permute.xlu0 %2947
    %2951 = vset.pattern.permute.xlu0 0
    %2952 = vperm.xlu0 %2951, %v2808
    %v2953 = vpop.permute.xlu0 %2952
    %2956 = vset.pattern.permute.xlu0 0
    %2957 = vperm.xlu0 %2956, %v2809
    %v2958 = vpop.permute.xlu0 %2957
    %2961 = vset.pattern.permute.xlu0 0
    %2962 = vperm.xlu0 %2961, %v2810
    %v2963 = vpop.permute.xlu0 %2962
    %2966 = vset.pattern.permute.xlu0 0
    %2967 = vperm.xlu0 %2966, %v2811
    %v2968 = vpop.permute.xlu0 %2967
    %2971 = vset.pattern.permute.xlu0 0
    %2972 = vperm.xlu0 %2971, %v2812
    %v2973 = vpop.permute.xlu0 %2972
    %2976 = vset.pattern.permute.xlu0 0
    %2977 = vperm.xlu0 %2976, %v2813
    %v2978 = vpop.permute.xlu0 %2977
    %2981 = vset.pattern.permute.xlu0 0
    %2982 = vperm.xlu0 %2981, %v2814
    %v2983 = vpop.permute.xlu0 %2982
    %2986 = vset.pattern.permute.xlu0 0
    %2987 = vperm.xlu0 %2986, %v2815
    %v2988 = vpop.permute.xlu0 %2987
    %2991 = vset.pattern.permute.xlu0 0
    %2992 = vperm.xlu0 %2991, %v2816
    %v2993 = vpop.permute.xlu0 %2992
    %2996 = vset.pattern.permute.xlu0 0
    %2997 = vperm.xlu0 %2996, %v2817
    %v2998 = vpop.permute.xlu0 %2997
    %3001 = vset.pattern.permute.xlu0 0
    %3002 = vperm.xlu0 %3001, %v2818
    %v3003 = vpop.permute.xlu0 %3002
    %3006 = vset.pattern.permute.xlu0 0
    %3007 = vperm.xlu0 %3006, %v2819
    %v3008 = vpop.permute.xlu0 %3007
    %3011 = vset.pattern.permute.xlu0 0
    %3012 = vperm.xlu0 %3011, %v2820
    %v3013 = vpop.permute.xlu0 %3012
    %3016 = vset.pattern.permute.xlu0 0
    %3017 = vperm.xlu0 %3016, %v2821
    %v3018 = vpop.permute.xlu0 %3017
    %3021 = vset.pattern.permute.xlu0 0
    %3022 = vperm.xlu0 %3021, %v2822
    %v3023 = vpop.permute.xlu0 %3022
    %3026 = vset.pattern.permute.xlu0 0
    %3027 = vperm.xlu0 %3026, %v2823
    %v3028 = vpop.permute.xlu0 %3027
    %3031 = vset.pattern.permute.xlu0 0
    %3032 = vperm.xlu0 %3031, %v2824
    %v3033 = vpop.permute.xlu0 %3032
    %3036 = vset.pattern.permute.xlu0 0
    %3037 = vperm.xlu0 %3036, %v2825
    %v3038 = vpop.permute.xlu0 %3037
    %3041 = vset.pattern.permute.xlu0 0
    %3042 = vperm.xlu0 %3041, %v2826
    %v3043 = vpop.permute.xlu0 %3042
    %3046 = vset.pattern.permute.xlu0 0
    %3047 = vperm.xlu0 %3046, %v2827
    %v3048 = vpop.permute.xlu0 %3047
    %3051 = vset.pattern.permute.xlu0 0
    %3052 = vperm.xlu0 %3051, %v2828
    %v3053 = vpop.permute.xlu0 %3052
    %3056 = vset.pattern.permute.xlu0 0
    %3057 = vperm.xlu0 %3056, %v2829
    %v3058 = vpop.permute.xlu0 %3057
    %3061 = vset.pattern.permute.xlu0 0
    %3062 = vperm.xlu0 %3061, %v2830
    %v3063 = vpop.permute.xlu0 %3062
    %3066 = vset.pattern.permute.xlu0 0
    %3067 = vperm.xlu0 %3066, %v2831
    %v3068 = vpop.permute.xlu0 %3067
    %3071 = vset.pattern.permute.xlu0 0
    %3072 = vperm.xlu0 %3071, %v2832
    %v3073 = vpop.permute.xlu0 %3072
    %3076 = vset.pattern.permute.xlu0 0
    %3077 = vperm.xlu0 %3076, %v2833
    %v3078 = vpop.permute.xlu0 %3077
    %3081 = vset.pattern.permute.xlu0 0
    %3082 = vperm.xlu0 %3081, %v2834
    %v3083 = vpop.permute.xlu0 %3082
    %v3086 = vsel %vm1716, %v2588, 0
    %v3089 = vsel %vm1716, %v2592, 0
    %v3092 = vsel %vm1716, %v2596, 0
    %v3095 = vsel %vm1716, %v2600, 0
    %v3098 = vsel %vm1716, %v2604, 0
    %v3101 = vsel %vm1716, %v2608, 0
    %v3104 = vsel %vm1716, %v2612, 0
    %v3107 = vsel %vm1716, %v2616, 0
    %v3110 = vsel %vm1716, %v2620, 0
    %v3113 = vsel %vm1716, %v2624, 0
    %v3116 = vsel %vm1716, %v2628, 0
    %v3119 = vsel %vm1716, %v2632, 0
    %v3122 = vsel %vm1716, %v2636, 0
    %v3125 = vsel %vm1716, %v2640, 0
    %v3128 = vsel %vm1716, %v2644, 0
    %v3131 = vsel %vm1716, %v2648, 0
    %v3134 = vsel %vm1716, %v2652, 0
    %v3137 = vsel %vm1716, %v2656, 0
    %v3140 = vsel %vm1716, %v2660, 0
    %v3143 = vsel %vm1716, %v2664, 0
    %v3146 = vsel %vm1716, %v2668, 0
    %v3149 = vsel %vm1716, %v2672, 0
    %v3152 = vsel %vm1716, %v2676, 0
    %v3155 = vsel %vm1716, %v2680, 0
    %v3158 = vsel %vm1716, %v2684, 0
    %v3161 = vsel %vm1716, %v2688, 0
    %v3164 = vsel %vm1716, %v2692, 0
    %v3167 = vsel %vm1716, %v2696, 0
    %v3170 = vsel %vm1716, %v2700, 0
    %v3173 = vsel %vm1716, %v2704, 0
    %v3176 = vsel %vm1716, %v2708, 0
    %v3179 = vsel %vm1716, %v2712, 0
    %v3182 = vsel %vm1716, %v2716, 0
    %v3185 = vsel %vm1716, %v2720, 0
    %v3188 = vsel %vm1716, %v2724, 0
    %v3191 = vsel %vm1716, %v2728, 0
    %v3194 = vsel %vm1716, %v2732, 0
    %v3197 = vsel %vm1716, %v2736, 0
    %v3200 = vsel %vm1716, %v2740, 0
    %v3203 = vsel %vm1716, %v2744, 0
    %v3206 = vsel %vm1716, %v2748, 0
    %v3209 = vsel %vm1716, %v2752, 0
    %v3212 = vsel %vm1716, %v2756, 0
    %v3215 = vsel %vm1716, %v2760, 0
    %v3218 = vsel %vm1716, %v2764, 0
    %v3221 = vsel %vm1716, %v2768, 0
    %v3224 = vsel %vm1716, %v2772, 0
    %v3227 = vsel %vm1716, %v2776, 0
    %v3230 = vsel %vm1716, %v2780, 0
    %v3233 = vsel %vm1716, %v2784, 0
    %3235 = vmatpush.msra.mxu0 %v2550
    %3236 = vmatpush.msra.mxu0 %v2549
    %3237 = vmatpush.msra.mxu0 %v2548
    %3238 = vmatpush.msra.mxu0 %v2547
    %3239 = vmatpush.msra.mxu0 %v2546
    %3240 = vmatpush.msra.mxu0 %v2545
    %3241 = vmatpush.msra.mxu0 %v2544
    %3242 = vmatpush.msra.mxu0 %v2543
    %3243 = vmatpush.msra.mxu0 %v2542
    %3244 = vmatpush.msra.mxu0 %v2541
    %3245 = vmatpush.msra.mxu0 %v2540
    %3246 = vmatpush.msra.mxu0 %v2539
    %3247 = vmatpush.msra.mxu0 %v2538
    %3248 = vmatpush.msra.mxu0 %v2537
    %3249 = vmatpush.msra.mxu0 %v2536
    %3250 = vmatpush.msra.mxu0 %v2535
    %3251 = vmatmul.f32.gmra.mxu0 %v2585
    %v3252 = vpop.f32.mrf.mxu0
    %v3253 = vadd.f32 %v2838, %v3252
    %3254 = vmatmul.f32.gmra.mxu0 %v2589
    %v3255 = vpop.f32.mrf.mxu0
    %v3256 = vadd.f32 %v2843, %v3255
    %3257 = vmatmul.f32.gmra.mxu0 %v2593
    %v3258 = vpop.f32.mrf.mxu0
    %v3259 = vadd.f32 %v2848, %v3258
    %3260 = vmatmul.f32.gmra.mxu0 %v2597
    %v3261 = vpop.f32.mrf.mxu0
    %v3262 = vadd.f32 %v2853, %v3261
    %3263 = vmatmul.f32.gmra.mxu0 %v2601
    %v3264 = vpop.f32.mrf.mxu0
    %v3265 = vadd.f32 %v2858, %v3264
    %3266 = vmatmul.f32.gmra.mxu0 %v2605
    %v3267 = vpop.f32.mrf.mxu0
    %v3268 = vadd.f32 %v2863, %v3267
    %3269 = vmatmul.f32.gmra.mxu0 %v2609
    %v3270 = vpop.f32.mrf.mxu0
    %v3271 = vadd.f32 %v2868, %v3270
    %3272 = vmatmul.f32.gmra.mxu0 %v2613
    %v3273 = vpop.f32.mrf.mxu0
    %v3274 = vadd.f32 %v2873, %v3273
    %3275 = vmatmul.f32.gmra.mxu0 %v2617
    %v3276 = vpop.f32.mrf.mxu0
    %v3277 = vadd.f32 %v2878, %v3276
    %3278 = vmatmul.f32.gmra.mxu0 %v2621
    %v3279 = vpop.f32.mrf.mxu0
    %v3280 = vadd.f32 %v2883, %v3279
    %3281 = vmatmul.f32.gmra.mxu0 %v2625
    %v3282 = vpop.f32.mrf.mxu0
    %v3283 = vadd.f32 %v2888, %v3282
    %3284 = vmatmul.f32.gmra.mxu0 %v2629
    %v3285 = vpop.f32.mrf.mxu0
    %v3286 = vadd.f32 %v2893, %v3285
    %3287 = vmatmul.f32.gmra.mxu0 %v2633
    %v3288 = vpop.f32.mrf.mxu0
    %v3289 = vadd.f32 %v2898, %v3288
    %3290 = vmatmul.f32.gmra.mxu0 %v2637
    %v3291 = vpop.f32.mrf.mxu0
    %v3292 = vadd.f32 %v2903, %v3291
    %3293 = vmatmul.f32.gmra.mxu0 %v2641
    %v3294 = vpop.f32.mrf.mxu0
    %v3295 = vadd.f32 %v2908, %v3294
    %3296 = vmatmul.f32.gmra.mxu0 %v2645
    %v3297 = vpop.f32.mrf.mxu0
    %v3298 = vadd.f32 %v2913, %v3297
    %3299 = vmatmul.f32.gmra.mxu0 %v2649
    %v3300 = vpop.f32.mrf.mxu0
    %v3301 = vadd.f32 %v2918, %v3300
    %3302 = vmatmul.f32.gmra.mxu0 %v2653
    %v3303 = vpop.f32.mrf.mxu0
    %v3304 = vadd.f32 %v2923, %v3303
    %3305 = vmatmul.f32.gmra.mxu0 %v2657
    %v3306 = vpop.f32.mrf.mxu0
    %v3307 = vadd.f32 %v2928, %v3306
    %3308 = vmatmul.f32.gmra.mxu0 %v2661
    %v3309 = vpop.f32.mrf.mxu0
    %v3310 = vadd.f32 %v2933, %v3309
    %3311 = vmatmul.f32.gmra.mxu0 %v2665
    %v3312 = vpop.f32.mrf.mxu0
    %v3313 = vadd.f32 %v2938, %v3312
    %3314 = vmatmul.f32.gmra.mxu0 %v2669
    %v3315 = vpop.f32.mrf.mxu0
    %v3316 = vadd.f32 %v2943, %v3315
    %3317 = vmatmul.f32.gmra.mxu0 %v2673
    %v3318 = vpop.f32.mrf.mxu0
    %v3319 = vadd.f32 %v2948, %v3318
    %3320 = vmatmul.f32.gmra.mxu0 %v2677
    %v3321 = vpop.f32.mrf.mxu0
    %v3322 = vadd.f32 %v2953, %v3321
    %3323 = vmatmul.f32.gmra.mxu0 %v2681
    %v3324 = vpop.f32.mrf.mxu0
    %v3325 = vadd.f32 %v2958, %v3324
    %3326 = vmatmul.f32.gmra.mxu0 %v2685
    %v3327 = vpop.f32.mrf.mxu0
    %v3328 = vadd.f32 %v2963, %v3327
    %3329 = vmatmul.f32.gmra.mxu0 %v2689
    %v3330 = vpop.f32.mrf.mxu0
    %v3331 = vadd.f32 %v2968, %v3330
    %3332 = vmatmul.f32.gmra.mxu0 %v2693
    %v3333 = vpop.f32.mrf.mxu0
    %v3334 = vadd.f32 %v2973, %v3333
    %3335 = vmatmul.f32.gmra.mxu0 %v2697
    %v3336 = vpop.f32.mrf.mxu0
    %v3337 = vadd.f32 %v2978, %v3336
    %3338 = vmatmul.f32.gmra.mxu0 %v2701
    %v3339 = vpop.f32.mrf.mxu0
    %v3340 = vadd.f32 %v2983, %v3339
    %3341 = vmatmul.f32.gmra.mxu0 %v2705
    %v3342 = vpop.f32.mrf.mxu0
    %v3343 = vadd.f32 %v2988, %v3342
    %3344 = vmatmul.f32.gmra.mxu0 %v2709
    %v3345 = vpop.f32.mrf.mxu0
    %v3346 = vadd.f32 %v2993, %v3345
    %3347 = vmatmul.f32.gmra.mxu0 %v2713
    %v3348 = vpop.f32.mrf.mxu0
    %v3349 = vadd.f32 %v2998, %v3348
    %3350 = vmatmul.f32.gmra.mxu0 %v2717
    %v3351 = vpop.f32.mrf.mxu0
    %v3352 = vadd.f32 %v3003, %v3351
    %3353 = vmatmul.f32.gmra.mxu0 %v2721
    %v3354 = vpop.f32.mrf.mxu0
    %v3355 = vadd.f32 %v3008, %v3354
    %3356 = vmatmul.f32.gmra.mxu0 %v2725
    %v3357 = vpop.f32.mrf.mxu0
    %v3358 = vadd.f32 %v3013, %v3357
    %3359 = vmatmul.f32.gmra.mxu0 %v2729
    %v3360 = vpop.f32.mrf.mxu0
    %v3361 = vadd.f32 %v3018, %v3360
    %3362 = vmatmul.f32.gmra.mxu0 %v2733
    %v3363 = vpop.f32.mrf.mxu0
    %v3364 = vadd.f32 %v3023, %v3363
    %3365 = vmatmul.f32.gmra.mxu0 %v2737
    %v3366 = vpop.f32.mrf.mxu0
    %v3367 = vadd.f32 %v3028, %v3366
    %3368 = vmatmul.f32.gmra.mxu0 %v2741
    %v3369 = vpop.f32.mrf.mxu0
    %v3370 = vadd.f32 %v3033, %v3369
    %3371 = vmatmul.f32.gmra.mxu0 %v2745
    %v3372 = vpop.f32.mrf.mxu0
    %v3373 = vadd.f32 %v3038, %v3372
    %3374 = vmatmul.f32.gmra.mxu0 %v2749
    %v3375 = vpop.f32.mrf.mxu0
    %v3376 = vadd.f32 %v3043, %v3375
    %3377 = vmatmul.f32.gmra.mxu0 %v2753
    %v3378 = vpop.f32.mrf.mxu0
    %v3379 = vadd.f32 %v3048, %v3378
    %3380 = vmatmul.f32.gmra.mxu0 %v2757
    %v3381 = vpop.f32.mrf.mxu0
    %v3382 = vadd.f32 %v3053, %v3381
    %3383 = vmatmul.f32.gmra.mxu0 %v2761
    %v3384 = vpop.f32.mrf.mxu0
    %v3385 = vadd.f32 %v3058, %v3384
    %3386 = vmatmul.f32.gmra.mxu0 %v2765
    %v3387 = vpop.f32.mrf.mxu0
    %v3388 = vadd.f32 %v3063, %v3387
    %3389 = vmatmul.f32.gmra.mxu0 %v2769
    %v3390 = vpop.f32.mrf.mxu0
    %v3391 = vadd.f32 %v3068, %v3390
    %3392 = vmatmul.f32.gmra.mxu0 %v2773
    %v3393 = vpop.f32.mrf.mxu0
    %v3394 = vadd.f32 %v3073, %v3393
    %3395 = vmatmul.f32.gmra.mxu0 %v2777
    %v3396 = vpop.f32.mrf.mxu0
    %v3397 = vadd.f32 %v3078, %v3396
    %3398 = vmatmul.f32.gmra.mxu0 %v2781
    %v3399 = vpop.f32.mrf.mxu0
    %v3400 = vadd.f32 %v3083, %v3399
    %3401 = vdwg.mxu0
    %3402 = vmatpush.msra.mxu0 %v2566
    %3403 = vmatpush.msra.mxu0 %v2565
    %3404 = vmatpush.msra.mxu0 %v2564
    %3405 = vmatpush.msra.mxu0 %v2563
    %3406 = vmatpush.msra.mxu0 %v2562
    %3407 = vmatpush.msra.mxu0 %v2561
    %3408 = vmatpush.msra.mxu0 %v2560
    %3409 = vmatpush.msra.mxu0 %v2559
    %3410 = vmatpush.msra.mxu0 %v2558
    %3411 = vmatpush.msra.mxu0 %v2557
    %3412 = vmatpush.msra.mxu0 %v2556
    %3413 = vmatpush.msra.mxu0 %v2555
    %3414 = vmatpush.msra.mxu0 %v2554
    %3415 = vmatpush.msra.mxu0 %v2553
    %3416 = vmatpush.msra.mxu0 %v2552
    %3417 = vmatpush.msra.mxu0 %v2551
    %3418 = vmatmul.f32.gmra.mxu0 %v2586
    %v3419 = vpop.f32.mrf.mxu0
    %v3420 = vadd.f32 %v3253, %v3419
    %3421 = vmatmul.f32.gmra.mxu0 %v2590
    %v3422 = vpop.f32.mrf.mxu0
    %v3423 = vadd.f32 %v3256, %v3422
    %3424 = vmatmul.f32.gmra.mxu0 %v2594
    %v3425 = vpop.f32.mrf.mxu0
    %v3426 = vadd.f32 %v3259, %v3425
    %3427 = vmatmul.f32.gmra.mxu0 %v2598
    %v3428 = vpop.f32.mrf.mxu0
    %v3429 = vadd.f32 %v3262, %v3428
    %3430 = vmatmul.f32.gmra.mxu0 %v2602
    %v3431 = vpop.f32.mrf.mxu0
    %v3432 = vadd.f32 %v3265, %v3431
    %3433 = vmatmul.f32.gmra.mxu0 %v2606
    %v3434 = vpop.f32.mrf.mxu0
    %v3435 = vadd.f32 %v3268, %v3434
    %3436 = vmatmul.f32.gmra.mxu0 %v2610
    %v3437 = vpop.f32.mrf.mxu0
    %v3438 = vadd.f32 %v3271, %v3437
    %3439 = vmatmul.f32.gmra.mxu0 %v2614
    %v3440 = vpop.f32.mrf.mxu0
    %v3441 = vadd.f32 %v3274, %v3440
    %3442 = vmatmul.f32.gmra.mxu0 %v2618
    %v3443 = vpop.f32.mrf.mxu0
    %v3444 = vadd.f32 %v3277, %v3443
    %3445 = vmatmul.f32.gmra.mxu0 %v2622
    %v3446 = vpop.f32.mrf.mxu0
    %v3447 = vadd.f32 %v3280, %v3446
    %3448 = vmatmul.f32.gmra.mxu0 %v2626
    %v3449 = vpop.f32.mrf.mxu0
    %v3450 = vadd.f32 %v3283, %v3449
    %3451 = vmatmul.f32.gmra.mxu0 %v2630
    %v3452 = vpop.f32.mrf.mxu0
    %v3453 = vadd.f32 %v3286, %v3452
    %3454 = vmatmul.f32.gmra.mxu0 %v2634
    %v3455 = vpop.f32.mrf.mxu0
    %v3456 = vadd.f32 %v3289, %v3455
    %3457 = vmatmul.f32.gmra.mxu0 %v2638
    %v3458 = vpop.f32.mrf.mxu0
    %v3459 = vadd.f32 %v3292, %v3458
    %3460 = vmatmul.f32.gmra.mxu0 %v2642
    %v3461 = vpop.f32.mrf.mxu0
    %v3462 = vadd.f32 %v3295, %v3461
    %3463 = vmatmul.f32.gmra.mxu0 %v2646
    %v3464 = vpop.f32.mrf.mxu0
    %v3465 = vadd.f32 %v3298, %v3464
    %3466 = vmatmul.f32.gmra.mxu0 %v2650
    %v3467 = vpop.f32.mrf.mxu0
    %v3468 = vadd.f32 %v3301, %v3467
    %3469 = vmatmul.f32.gmra.mxu0 %v2654
    %v3470 = vpop.f32.mrf.mxu0
    %v3471 = vadd.f32 %v3304, %v3470
    %3472 = vmatmul.f32.gmra.mxu0 %v2658
    %v3473 = vpop.f32.mrf.mxu0
    %v3474 = vadd.f32 %v3307, %v3473
    %3475 = vmatmul.f32.gmra.mxu0 %v2662
    %v3476 = vpop.f32.mrf.mxu0
    %v3477 = vadd.f32 %v3310, %v3476
    %3478 = vmatmul.f32.gmra.mxu0 %v2666
    %v3479 = vpop.f32.mrf.mxu0
    %v3480 = vadd.f32 %v3313, %v3479
    %3481 = vmatmul.f32.gmra.mxu0 %v2670
    %v3482 = vpop.f32.mrf.mxu0
    %v3483 = vadd.f32 %v3316, %v3482
    %3484 = vmatmul.f32.gmra.mxu0 %v2674
    %v3485 = vpop.f32.mrf.mxu0
    %v3486 = vadd.f32 %v3319, %v3485
    %3487 = vmatmul.f32.gmra.mxu0 %v2678
    %v3488 = vpop.f32.mrf.mxu0
    %v3489 = vadd.f32 %v3322, %v3488
    %3490 = vmatmul.f32.gmra.mxu0 %v2682
    %v3491 = vpop.f32.mrf.mxu0
    %v3492 = vadd.f32 %v3325, %v3491
    %3493 = vmatmul.f32.gmra.mxu0 %v2686
    %v3494 = vpop.f32.mrf.mxu0
    %v3495 = vadd.f32 %v3328, %v3494
    %3496 = vmatmul.f32.gmra.mxu0 %v2690
    %v3497 = vpop.f32.mrf.mxu0
    %v3498 = vadd.f32 %v3331, %v3497
    %3499 = vmatmul.f32.gmra.mxu0 %v2694
    %v3500 = vpop.f32.mrf.mxu0
    %v3501 = vadd.f32 %v3334, %v3500
    %3502 = vmatmul.f32.gmra.mxu0 %v2698
    %v3503 = vpop.f32.mrf.mxu0
    %v3504 = vadd.f32 %v3337, %v3503
    %3505 = vmatmul.f32.gmra.mxu0 %v2702
    %v3506 = vpop.f32.mrf.mxu0
    %v3507 = vadd.f32 %v3340, %v3506
    %3508 = vmatmul.f32.gmra.mxu0 %v2706
    %v3509 = vpop.f32.mrf.mxu0
    %v3510 = vadd.f32 %v3343, %v3509
    %3511 = vmatmul.f32.gmra.mxu0 %v2710
    %v3512 = vpop.f32.mrf.mxu0
    %v3513 = vadd.f32 %v3346, %v3512
    %3514 = vmatmul.f32.gmra.mxu0 %v2714
    %v3515 = vpop.f32.mrf.mxu0
    %v3516 = vadd.f32 %v3349, %v3515
    %3517 = vmatmul.f32.gmra.mxu0 %v2718
    %v3518 = vpop.f32.mrf.mxu0
    %v3519 = vadd.f32 %v3352, %v3518
    %3520 = vmatmul.f32.gmra.mxu0 %v2722
    %v3521 = vpop.f32.mrf.mxu0
    %v3522 = vadd.f32 %v3355, %v3521
    %3523 = vmatmul.f32.gmra.mxu0 %v2726
    %v3524 = vpop.f32.mrf.mxu0
    %v3525 = vadd.f32 %v3358, %v3524
    %3526 = vmatmul.f32.gmra.mxu0 %v2730
    %v3527 = vpop.f32.mrf.mxu0
    %v3528 = vadd.f32 %v3361, %v3527
    %3529 = vmatmul.f32.gmra.mxu0 %v2734
    %v3530 = vpop.f32.mrf.mxu0
    %v3531 = vadd.f32 %v3364, %v3530
    %3532 = vmatmul.f32.gmra.mxu0 %v2738
    %v3533 = vpop.f32.mrf.mxu0
    %v3534 = vadd.f32 %v3367, %v3533
    %3535 = vmatmul.f32.gmra.mxu0 %v2742
    %v3536 = vpop.f32.mrf.mxu0
    %v3537 = vadd.f32 %v3370, %v3536
    %3538 = vmatmul.f32.gmra.mxu0 %v2746
    %v3539 = vpop.f32.mrf.mxu0
    %v3540 = vadd.f32 %v3373, %v3539
    %3541 = vmatmul.f32.gmra.mxu0 %v2750
    %v3542 = vpop.f32.mrf.mxu0
    %v3543 = vadd.f32 %v3376, %v3542
    %3544 = vmatmul.f32.gmra.mxu0 %v2754
    %v3545 = vpop.f32.mrf.mxu0
    %v3546 = vadd.f32 %v3379, %v3545
    %3547 = vmatmul.f32.gmra.mxu0 %v2758
    %v3548 = vpop.f32.mrf.mxu0
    %v3549 = vadd.f32 %v3382, %v3548
    %3550 = vmatmul.f32.gmra.mxu0 %v2762
    %v3551 = vpop.f32.mrf.mxu0
    %v3552 = vadd.f32 %v3385, %v3551
    %3553 = vmatmul.f32.gmra.mxu0 %v2766
    %v3554 = vpop.f32.mrf.mxu0
    %v3555 = vadd.f32 %v3388, %v3554
    %3556 = vmatmul.f32.gmra.mxu0 %v2770
    %v3557 = vpop.f32.mrf.mxu0
    %v3558 = vadd.f32 %v3391, %v3557
    %3559 = vmatmul.f32.gmra.mxu0 %v2774
    %v3560 = vpop.f32.mrf.mxu0
    %v3561 = vadd.f32 %v3394, %v3560
    %3562 = vmatmul.f32.gmra.mxu0 %v2778
    %v3563 = vpop.f32.mrf.mxu0
    %v3564 = vadd.f32 %v3397, %v3563
    %3565 = vmatmul.f32.gmra.mxu0 %v2782
    %v3566 = vpop.f32.mrf.mxu0
    %v3567 = vadd.f32 %v3400, %v3566
    %3568 = vdwg.mxu0
    %3569 = vmatpush.msra.mxu0 %v2582
    %3570 = vmatpush.msra.mxu0 %v2581
    %3571 = vmatpush.msra.mxu0 %v2580
    %3572 = vmatpush.msra.mxu0 %v2579
    %3573 = vmatpush.msra.mxu0 %v2578
    %3574 = vmatpush.msra.mxu0 %v2577
    %3575 = vmatpush.msra.mxu0 %v2576
    %3576 = vmatpush.msra.mxu0 %v2575
    %3577 = vmatpush.msra.mxu0 %v2574
    %3578 = vmatpush.msra.mxu0 %v2573
    %3579 = vmatpush.msra.mxu0 %v2572
    %3580 = vmatpush.msra.mxu0 %v2571
    %3581 = vmatpush.msra.mxu0 %v2570
    %3582 = vmatpush.msra.mxu0 %v2569
    %3583 = vmatpush.msra.mxu0 %v2568
    %3584 = vmatpush.msra.mxu0 %v2567
    %3585 = vmatmul.f32.gmra.mxu0 %v2587
    %v3586 = vpop.f32.mrf.mxu0
    %v3587 = vadd.f32 %v3420, %v3586
    %3588 = vmatmul.f32.gmra.mxu0 %v2591
    %v3589 = vpop.f32.mrf.mxu0
    %v3590 = vadd.f32 %v3423, %v3589
    %3591 = vmatmul.f32.gmra.mxu0 %v2595
    %v3592 = vpop.f32.mrf.mxu0
    %v3593 = vadd.f32 %v3426, %v3592
    %3594 = vmatmul.f32.gmra.mxu0 %v2599
    %v3595 = vpop.f32.mrf.mxu0
    %v3596 = vadd.f32 %v3429, %v3595
    %3597 = vmatmul.f32.gmra.mxu0 %v2603
    %v3598 = vpop.f32.mrf.mxu0
    %v3599 = vadd.f32 %v3432, %v3598
    %3600 = vmatmul.f32.gmra.mxu0 %v2607
    %v3601 = vpop.f32.mrf.mxu0
    %v3602 = vadd.f32 %v3435, %v3601
    %3603 = vmatmul.f32.gmra.mxu0 %v2611
    %v3604 = vpop.f32.mrf.mxu0
    %v3605 = vadd.f32 %v3438, %v3604
    %3606 = vmatmul.f32.gmra.mxu0 %v2615
    %v3607 = vpop.f32.mrf.mxu0
    %v3608 = vadd.f32 %v3441, %v3607
    %3609 = vmatmul.f32.gmra.mxu0 %v2619
    %v3610 = vpop.f32.mrf.mxu0
    %v3611 = vadd.f32 %v3444, %v3610
    %3612 = vmatmul.f32.gmra.mxu0 %v2623
    %v3613 = vpop.f32.mrf.mxu0
    %v3614 = vadd.f32 %v3447, %v3613
    %3615 = vmatmul.f32.gmra.mxu0 %v2627
    %v3616 = vpop.f32.mrf.mxu0
    %v3617 = vadd.f32 %v3450, %v3616
    %3618 = vmatmul.f32.gmra.mxu0 %v2631
    %v3619 = vpop.f32.mrf.mxu0
    %v3620 = vadd.f32 %v3453, %v3619
    %3621 = vmatmul.f32.gmra.mxu0 %v2635
    %v3622 = vpop.f32.mrf.mxu0
    %v3623 = vadd.f32 %v3456, %v3622
    %3624 = vmatmul.f32.gmra.mxu0 %v2639
    %v3625 = vpop.f32.mrf.mxu0
    %v3626 = vadd.f32 %v3459, %v3625
    %3627 = vmatmul.f32.gmra.mxu0 %v2643
    %v3628 = vpop.f32.mrf.mxu0
    %v3629 = vadd.f32 %v3462, %v3628
    %3630 = vmatmul.f32.gmra.mxu0 %v2647
    %v3631 = vpop.f32.mrf.mxu0
    %v3632 = vadd.f32 %v3465, %v3631
    %3633 = vmatmul.f32.gmra.mxu0 %v2651
    %v3634 = vpop.f32.mrf.mxu0
    %v3635 = vadd.f32 %v3468, %v3634
    %3636 = vmatmul.f32.gmra.mxu0 %v2655
    %v3637 = vpop.f32.mrf.mxu0
    %v3638 = vadd.f32 %v3471, %v3637
    %3639 = vmatmul.f32.gmra.mxu0 %v2659
    %v3640 = vpop.f32.mrf.mxu0
    %v3641 = vadd.f32 %v3474, %v3640
    %3642 = vmatmul.f32.gmra.mxu0 %v2663
    %v3643 = vpop.f32.mrf.mxu0
    %v3644 = vadd.f32 %v3477, %v3643
    %3645 = vmatmul.f32.gmra.mxu0 %v2667
    %v3646 = vpop.f32.mrf.mxu0
    %v3647 = vadd.f32 %v3480, %v3646
    %3648 = vmatmul.f32.gmra.mxu0 %v2671
    %v3649 = vpop.f32.mrf.mxu0
    %v3650 = vadd.f32 %v3483, %v3649
    %3651 = vmatmul.f32.gmra.mxu0 %v2675
    %v3652 = vpop.f32.mrf.mxu0
    %v3653 = vadd.f32 %v3486, %v3652
    %3654 = vmatmul.f32.gmra.mxu0 %v2679
    %v3655 = vpop.f32.mrf.mxu0
    %v3656 = vadd.f32 %v3489, %v3655
    %3657 = vmatmul.f32.gmra.mxu0 %v2683
    %v3658 = vpop.f32.mrf.mxu0
    %v3659 = vadd.f32 %v3492, %v3658
    %3660 = vmatmul.f32.gmra.mxu0 %v2687
    %v3661 = vpop.f32.mrf.mxu0
    %v3662 = vadd.f32 %v3495, %v3661
    %3663 = vmatmul.f32.gmra.mxu0 %v2691
    %v3664 = vpop.f32.mrf.mxu0
    %v3665 = vadd.f32 %v3498, %v3664
    %3666 = vmatmul.f32.gmra.mxu0 %v2695
    %v3667 = vpop.f32.mrf.mxu0
    %v3668 = vadd.f32 %v3501, %v3667
    %3669 = vmatmul.f32.gmra.mxu0 %v2699
    %v3670 = vpop.f32.mrf.mxu0
    %v3671 = vadd.f32 %v3504, %v3670
    %3672 = vmatmul.f32.gmra.mxu0 %v2703
    %v3673 = vpop.f32.mrf.mxu0
    %v3674 = vadd.f32 %v3507, %v3673
    %3675 = vmatmul.f32.gmra.mxu0 %v2707
    %v3676 = vpop.f32.mrf.mxu0
    %v3677 = vadd.f32 %v3510, %v3676
    %3678 = vmatmul.f32.gmra.mxu0 %v2711
    %v3679 = vpop.f32.mrf.mxu0
    %v3680 = vadd.f32 %v3513, %v3679
    %3681 = vmatmul.f32.gmra.mxu0 %v2715
    %v3682 = vpop.f32.mrf.mxu0
    %v3683 = vadd.f32 %v3516, %v3682
    %3684 = vmatmul.f32.gmra.mxu0 %v2719
    %v3685 = vpop.f32.mrf.mxu0
    %v3686 = vadd.f32 %v3519, %v3685
    %3687 = vmatmul.f32.gmra.mxu0 %v2723
    %v3688 = vpop.f32.mrf.mxu0
    %v3689 = vadd.f32 %v3522, %v3688
    %3690 = vmatmul.f32.gmra.mxu0 %v2727
    %v3691 = vpop.f32.mrf.mxu0
    %v3692 = vadd.f32 %v3525, %v3691
    %3693 = vmatmul.f32.gmra.mxu0 %v2731
    %v3694 = vpop.f32.mrf.mxu0
    %v3695 = vadd.f32 %v3528, %v3694
    %3696 = vmatmul.f32.gmra.mxu0 %v2735
    %v3697 = vpop.f32.mrf.mxu0
    %v3698 = vadd.f32 %v3531, %v3697
    %3699 = vmatmul.f32.gmra.mxu0 %v2739
    %v3700 = vpop.f32.mrf.mxu0
    %v3701 = vadd.f32 %v3534, %v3700
    %3702 = vmatmul.f32.gmra.mxu0 %v2743
    %v3703 = vpop.f32.mrf.mxu0
    %v3704 = vadd.f32 %v3537, %v3703
    %3705 = vmatmul.f32.gmra.mxu0 %v2747
    %v3706 = vpop.f32.mrf.mxu0
    %v3707 = vadd.f32 %v3540, %v3706
    %3708 = vmatmul.f32.gmra.mxu0 %v2751
    %v3709 = vpop.f32.mrf.mxu0
    %v3710 = vadd.f32 %v3543, %v3709
    %3711 = vmatmul.f32.gmra.mxu0 %v2755
    %v3712 = vpop.f32.mrf.mxu0
    %v3713 = vadd.f32 %v3546, %v3712
    %3714 = vmatmul.f32.gmra.mxu0 %v2759
    %v3715 = vpop.f32.mrf.mxu0
    %v3716 = vadd.f32 %v3549, %v3715
    %3717 = vmatmul.f32.gmra.mxu0 %v2763
    %v3718 = vpop.f32.mrf.mxu0
    %v3719 = vadd.f32 %v3552, %v3718
    %3720 = vmatmul.f32.gmra.mxu0 %v2767
    %v3721 = vpop.f32.mrf.mxu0
    %v3722 = vadd.f32 %v3555, %v3721
    %3723 = vmatmul.f32.gmra.mxu0 %v2771
    %v3724 = vpop.f32.mrf.mxu0
    %v3725 = vadd.f32 %v3558, %v3724
    %3726 = vmatmul.f32.gmra.mxu0 %v2775
    %v3727 = vpop.f32.mrf.mxu0
    %v3728 = vadd.f32 %v3561, %v3727
    %3729 = vmatmul.f32.gmra.mxu0 %v2779
    %v3730 = vpop.f32.mrf.mxu0
    %v3731 = vadd.f32 %v3564, %v3730
    %3732 = vmatmul.f32.gmra.mxu0 %v2783
    %v3733 = vpop.f32.mrf.mxu0
    %v3734 = vadd.f32 %v3567, %v3733
    %3735 = vdwg.mxu0
    %3736 = vmatpush.msra.mxu0 0.0
    %3737 = vmatpush.msra.mxu0 0.0
    %3738 = vmatpush.msra.mxu0 0.0
    %3739 = vmatpush.msra.mxu0 0.0
    %3740 = vmatpush.msra.mxu0 0.0
    %3741 = vmatpush.msra.mxu0 0.0
    %3742 = vmatpush.msra.mxu0 0.0
    %3743 = vmatpush.msra.mxu0 0.0
    %3744 = vmatpush.msra.mxu0 0.0
    %3745 = vmatpush.msra.mxu0 0.0
    %3746 = vmatpush.msra.mxu0 0.0
    %3747 = vmatpush.msra.mxu0 0.0
    %3748 = vmatpush.msra.mxu0 0.0
    %3749 = vmatpush.msra.mxu0 0.0
    %3750 = vmatpush.msra.mxu0 %v2584
    %3751 = vmatpush.msra.mxu0 %v2583
    %3752 = vmatmul.f32.gmra.mxu0 %v3086
    %v3753 = vpop.f32.mrf.mxu0
    %v3754 = vadd.f32 %v3587, %v3753
    %3755 = vmatmul.f32.gmra.mxu0 %v3089
    %v3756 = vpop.f32.mrf.mxu0
    %v3757 = vadd.f32 %v3590, %v3756
    %3758 = vmatmul.f32.gmra.mxu0 %v3092
    %v3759 = vpop.f32.mrf.mxu0
    %v3760 = vadd.f32 %v3593, %v3759
    %3761 = vmatmul.f32.gmra.mxu0 %v3095
    %v3762 = vpop.f32.mrf.mxu0
    %v3763 = vadd.f32 %v3596, %v3762
    %3764 = vmatmul.f32.gmra.mxu0 %v3098
    %v3765 = vpop.f32.mrf.mxu0
    %v3766 = vadd.f32 %v3599, %v3765
    %3767 = vmatmul.f32.gmra.mxu0 %v3101
    %v3768 = vpop.f32.mrf.mxu0
    %v3769 = vadd.f32 %v3602, %v3768
    %3770 = vmatmul.f32.gmra.mxu0 %v3104
    %v3771 = vpop.f32.mrf.mxu0
    %v3772 = vadd.f32 %v3605, %v3771
    %3773 = vmatmul.f32.gmra.mxu0 %v3107
    %v3774 = vpop.f32.mrf.mxu0
    %v3775 = vadd.f32 %v3608, %v3774
    %3776 = vmatmul.f32.gmra.mxu0 %v3110
    %v3777 = vpop.f32.mrf.mxu0
    %v3778 = vadd.f32 %v3611, %v3777
    %3779 = vmatmul.f32.gmra.mxu0 %v3113
    %v3780 = vpop.f32.mrf.mxu0
    %v3781 = vadd.f32 %v3614, %v3780
    %3782 = vmatmul.f32.gmra.mxu0 %v3116
    %v3783 = vpop.f32.mrf.mxu0
    %v3784 = vadd.f32 %v3617, %v3783
    %3785 = vmatmul.f32.gmra.mxu0 %v3119
    %v3786 = vpop.f32.mrf.mxu0
    %v3787 = vadd.f32 %v3620, %v3786
    %3788 = vmatmul.f32.gmra.mxu0 %v3122
    %v3789 = vpop.f32.mrf.mxu0
    %v3790 = vadd.f32 %v3623, %v3789
    %3791 = vmatmul.f32.gmra.mxu0 %v3125
    %v3792 = vpop.f32.mrf.mxu0
    %v3793 = vadd.f32 %v3626, %v3792
    %3794 = vmatmul.f32.gmra.mxu0 %v3128
    %v3795 = vpop.f32.mrf.mxu0
    %v3796 = vadd.f32 %v3629, %v3795
    %3797 = vmatmul.f32.gmra.mxu0 %v3131
    %v3798 = vpop.f32.mrf.mxu0
    %v3799 = vadd.f32 %v3632, %v3798
    %3800 = vmatmul.f32.gmra.mxu0 %v3134
    %v3801 = vpop.f32.mrf.mxu0
    %v3802 = vadd.f32 %v3635, %v3801
    %3803 = vmatmul.f32.gmra.mxu0 %v3137
    %v3804 = vpop.f32.mrf.mxu0
    %v3805 = vadd.f32 %v3638, %v3804
    %3806 = vmatmul.f32.gmra.mxu0 %v3140
    %v3807 = vpop.f32.mrf.mxu0
    %v3808 = vadd.f32 %v3641, %v3807
    %3809 = vmatmul.f32.gmra.mxu0 %v3143
    %v3810 = vpop.f32.mrf.mxu0
    %v3811 = vadd.f32 %v3644, %v3810
    %3812 = vmatmul.f32.gmra.mxu0 %v3146
    %v3813 = vpop.f32.mrf.mxu0
    %v3814 = vadd.f32 %v3647, %v3813
    %3815 = vmatmul.f32.gmra.mxu0 %v3149
    %v3816 = vpop.f32.mrf.mxu0
    %v3817 = vadd.f32 %v3650, %v3816
    %3818 = vmatmul.f32.gmra.mxu0 %v3152
    %v3819 = vpop.f32.mrf.mxu0
    %v3820 = vadd.f32 %v3653, %v3819
    %3821 = vmatmul.f32.gmra.mxu0 %v3155
    %v3822 = vpop.f32.mrf.mxu0
    %v3823 = vadd.f32 %v3656, %v3822
    %3824 = vmatmul.f32.gmra.mxu0 %v3158
    %v3825 = vpop.f32.mrf.mxu0
    %v3826 = vadd.f32 %v3659, %v3825
    %3827 = vmatmul.f32.gmra.mxu0 %v3161
    %v3828 = vpop.f32.mrf.mxu0
    %v3829 = vadd.f32 %v3662, %v3828
    %3830 = vmatmul.f32.gmra.mxu0 %v3164
    %v3831 = vpop.f32.mrf.mxu0
    %v3832 = vadd.f32 %v3665, %v3831
    %3833 = vmatmul.f32.gmra.mxu0 %v3167
    %v3834 = vpop.f32.mrf.mxu0
    %v3835 = vadd.f32 %v3668, %v3834
    %3836 = vmatmul.f32.gmra.mxu0 %v3170
    %v3837 = vpop.f32.mrf.mxu0
    %v3838 = vadd.f32 %v3671, %v3837
    %3839 = vmatmul.f32.gmra.mxu0 %v3173
    %v3840 = vpop.f32.mrf.mxu0
    %v3841 = vadd.f32 %v3674, %v3840
    %3842 = vmatmul.f32.gmra.mxu0 %v3176
    %v3843 = vpop.f32.mrf.mxu0
    %v3844 = vadd.f32 %v3677, %v3843
    %3845 = vmatmul.f32.gmra.mxu0 %v3179
    %v3846 = vpop.f32.mrf.mxu0
    %v3847 = vadd.f32 %v3680, %v3846
    %3848 = vmatmul.f32.gmra.mxu0 %v3182
    %v3849 = vpop.f32.mrf.mxu0
    %v3850 = vadd.f32 %v3683, %v3849
    %3851 = vmatmul.f32.gmra.mxu0 %v3185
    %v3852 = vpop.f32.mrf.mxu0
    %v3853 = vadd.f32 %v3686, %v3852
    %3854 = vmatmul.f32.gmra.mxu0 %v3188
    %v3855 = vpop.f32.mrf.mxu0
    %v3856 = vadd.f32 %v3689, %v3855
    %3857 = vmatmul.f32.gmra.mxu0 %v3191
    %v3858 = vpop.f32.mrf.mxu0
    %v3859 = vadd.f32 %v3692, %v3858
    %3860 = vmatmul.f32.gmra.mxu0 %v3194
    %v3861 = vpop.f32.mrf.mxu0
    %v3862 = vadd.f32 %v3695, %v3861
    %3863 = vmatmul.f32.gmra.mxu0 %v3197
    %v3864 = vpop.f32.mrf.mxu0
    %v3865 = vadd.f32 %v3698, %v3864
    %3866 = vmatmul.f32.gmra.mxu0 %v3200
    %v3867 = vpop.f32.mrf.mxu0
    %v3868 = vadd.f32 %v3701, %v3867
    %3869 = vmatmul.f32.gmra.mxu0 %v3203
    %v3870 = vpop.f32.mrf.mxu0
    %v3871 = vadd.f32 %v3704, %v3870
    %3872 = vmatmul.f32.gmra.mxu0 %v3206
    %v3873 = vpop.f32.mrf.mxu0
    %v3874 = vadd.f32 %v3707, %v3873
    %3875 = vmatmul.f32.gmra.mxu0 %v3209
    %v3876 = vpop.f32.mrf.mxu0
    %v3877 = vadd.f32 %v3710, %v3876
    %3878 = vmatmul.f32.gmra.mxu0 %v3212
    %v3879 = vpop.f32.mrf.mxu0
    %v3880 = vadd.f32 %v3713, %v3879
    %3881 = vmatmul.f32.gmra.mxu0 %v3215
    %v3882 = vpop.f32.mrf.mxu0
    %v3883 = vadd.f32 %v3716, %v3882
    %3884 = vmatmul.f32.gmra.mxu0 %v3218
    %v3885 = vpop.f32.mrf.mxu0
    %v3886 = vadd.f32 %v3719, %v3885
    %3887 = vmatmul.f32.gmra.mxu0 %v3221
    %v3888 = vpop.f32.mrf.mxu0
    %v3889 = vadd.f32 %v3722, %v3888
    %3890 = vmatmul.f32.gmra.mxu0 %v3224
    %v3891 = vpop.f32.mrf.mxu0
    %v3892 = vadd.f32 %v3725, %v3891
    %3893 = vmatmul.f32.gmra.mxu0 %v3227
    %v3894 = vpop.f32.mrf.mxu0
    %v3895 = vadd.f32 %v3728, %v3894
    %3896 = vmatmul.f32.gmra.mxu0 %v3230
    %v3897 = vpop.f32.mrf.mxu0
    %v3898 = vadd.f32 %v3731, %v3897
    %3899 = vmatmul.f32.gmra.mxu0 %v3233
    %v3900 = vpop.f32.mrf.mxu0
    %v3901 = vadd.f32 %v3734, %v3900
    %3902 = vdwg.mxu0
    %v3903 = vmax.f32 %v3754, 0.0
    %v3904 = vmax.f32 %v3757, 0.0
    %v3905 = vmax.f32 %v3760, 0.0
    %v3906 = vmax.f32 %v3763, 0.0
    %v3907 = vmax.f32 %v3766, 0.0
    %v3908 = vmax.f32 %v3769, 0.0
    %v3909 = vmax.f32 %v3772, 0.0
    %v3910 = vmax.f32 %v3775, 0.0
    %v3911 = vmax.f32 %v3778, 0.0
    %v3912 = vmax.f32 %v3781, 0.0
    %v3913 = vmax.f32 %v3784, 0.0
    %v3914 = vmax.f32 %v3787, 0.0
    %v3915 = vmax.f32 %v3790, 0.0
    %v3916 = vmax.f32 %v3793, 0.0
    %v3917 = vmax.f32 %v3796, 0.0
    %v3918 = vmax.f32 %v3799, 0.0
    %v3919 = vmax.f32 %v3802, 0.0
    %v3920 = vmax.f32 %v3805, 0.0
    %v3921 = vmax.f32 %v3808, 0.0
    %v3922 = vmax.f32 %v3811, 0.0
    %v3923 = vmax.f32 %v3814, 0.0
    %v3924 = vmax.f32 %v3817, 0.0
    %v3925 = vmax.f32 %v3820, 0.0
    %v3926 = vmax.f32 %v3823, 0.0
    %v3927 = vmax.f32 %v3826, 0.0
    %v3928 = vmax.f32 %v3829, 0.0
    %v3929 = vmax.f32 %v3832, 0.0
    %v3930 = vmax.f32 %v3835, 0.0
    %v3931 = vmax.f32 %v3838, 0.0
    %v3932 = vmax.f32 %v3841, 0.0
    %v3933 = vmax.f32 %v3844, 0.0
    %v3934 = vmax.f32 %v3847, 0.0
    %v3935 = vmax.f32 %v3850, 0.0
    %v3936 = vmax.f32 %v3853, 0.0
    %v3937 = vmax.f32 %v3856, 0.0
    %v3938 = vmax.f32 %v3859, 0.0
    %v3939 = vmax.f32 %v3862, 0.0
    %v3940 = vmax.f32 %v3865, 0.0
    %v3941 = vmax.f32 %v3868, 0.0
    %v3942 = vmax.f32 %v3871, 0.0
    %v3943 = vmax.f32 %v3874, 0.0
    %v3944 = vmax.f32 %v3877, 0.0
    %v3945 = vmax.f32 %v3880, 0.0
    %v3946 = vmax.f32 %v3883, 0.0
    %v3947 = vmax.f32 %v3886, 0.0
    %v3948 = vmax.f32 %v3889, 0.0
    %v3949 = vmax.f32 %v3892, 0.0
    %v3950 = vmax.f32 %v3895, 0.0
    %v3951 = vmax.f32 %v3898, 0.0
    %v3952 = vmax.f32 %v3901, 0.0
    %v3953 = vld [vmem:[%s9] sm:$0xff]
    %v3954 = vld [vmem:[%s9 + $0x8] sm:$0xff]
    %v3955 = vld [vmem:[%s9 + $0x10] sm:$0xff]
    %v3956 = vld [vmem:[%s9 + $0x18] sm:$0xff]
    %v3957 = vld [vmem:[%s9 + $0x20] sm:$0xff]
    %v3958 = vld [vmem:[%s9 + $0x28] sm:$0xff]
    %v3959 = vld [vmem:[%s9 + $0x30] sm:$0xff]
    %v3960 = vld [vmem:[%s9 + $0x38] sm:$0xff]
    %v3961 = vld [vmem:[%s9 + $0x40] sm:$0xff]
    %v3962 = vld [vmem:[%s9 + $0x48] sm:$0xff]
    %v3963 = vld [vmem:[%s9 + $0x50] sm:$0xff]
    %v3964 = vld [vmem:[%s9 + $0x58] sm:$0xff]
    %v3965 = vld [vmem:[%s9 + $0x60] sm:$0xff]
    %v3966 = vld [vmem:[%s9 + $0x68] sm:$0xff]
    %v3967 = vld [vmem:[%s9 + $0x70] sm:$0xff]
    %v3968 = vld [vmem:[%s9 + $0x78] sm:$0xff]
    %v3969 = vld [vmem:[%s9 + $0x80] sm:$0xff]
    %v3970 = vld [vmem:[%s9 + $0x88] sm:$0xff]
    %v3971 = vld [vmem:[%s9 + $0x90] sm:$0xff]
    %v3972 = vld [vmem:[%s9 + $0x98] sm:$0xff]
    %v3973 = vld [vmem:[%s9 + $0xa0] sm:$0xff]
    %v3974 = vld [vmem:[%s9 + $0xa8] sm:$0xff]
    %v3975 = vld [vmem:[%s9 + $0xb0] sm:$0xff]
    %v3976 = vld [vmem:[%s9 + $0xb8] sm:$0xff]
    %v3977 = vld [vmem:[%s9 + $0xc0] sm:$0xff]
    %v3978 = vld [vmem:[%s9 + $0xc8] sm:$0xff]
    %v3979 = vld [vmem:[%s9 + $0xd0] sm:$0xff]
    %v3980 = vld [vmem:[%s9 + $0xd8] sm:$0xff]
    %v3981 = vld [vmem:[%s9 + $0xe0] sm:$0xff]
    %v3982 = vld [vmem:[%s9 + $0xe8] sm:$0xff]
    %v3983 = vld [vmem:[%s9 + $0xf0] sm:$0xff]
    %v3984 = vld [vmem:[%s9 + $0xf8] sm:$0xff]
    %v3985 = vld [vmem:[%s9 + $0x100] sm:$0xff]
    %v3986 = vld [vmem:[%s9 + $0x108] sm:$0xff]
    %v3987 = vld [vmem:[%s9 + $0x110] sm:$0xff]
    %v3988 = vld [vmem:[%s9 + $0x118] sm:$0xff]
    %v3989 = vld [vmem:[%s9 + $0x120] sm:$0xff]
    %v3990 = vld [vmem:[%s9 + $0x128] sm:$0xff]
    %v3991 = vld [vmem:[%s9 + $0x130] sm:$0xff]
    %v3992 = vld [vmem:[%s9 + $0x138] sm:$0xff]
    %v3993 = vld [vmem:[%s9 + $0x140] sm:$0xff]
    %v3994 = vld [vmem:[%s9 + $0x148] sm:$0xff]
    %v3995 = vld [vmem:[%s9 + $0x150] sm:$0xff]
    %v3996 = vld [vmem:[%s9 + $0x158] sm:$0xff]
    %v3997 = vld [vmem:[%s9 + $0x160] sm:$0xff]
    %v3998 = vld [vmem:[%s9 + $0x168] sm:$0xff]
    %v3999 = vld [vmem:[%s9 + $0x170] sm:$0xff]
    %v4000 = vld [vmem:[%s9 + $0x178] sm:$0xff]
    %v4001 = vld [vmem:[%s9 + $0x180] sm:$0xff]
    %v4002 = vld [vmem:[%s9 + $0x188] sm:$0xff]
    %4004 = vset.pattern.permute.xlu0 0
    %4005 = vperm.xlu0 %4004, %v3953
    %v4006 = vpop.permute.xlu0 %4005
    %4009 = vset.pattern.permute.xlu0 0
    %4010 = vperm.xlu0 %4009, %v3954
    %v4011 = vpop.permute.xlu0 %4010
    %4014 = vset.pattern.permute.xlu0 0
    %4015 = vperm.xlu0 %4014, %v3955
    %v4016 = vpop.permute.xlu0 %4015
    %4019 = vset.pattern.permute.xlu0 0
    %4020 = vperm.xlu0 %4019, %v3956
    %v4021 = vpop.permute.xlu0 %4020
    %4024 = vset.pattern.permute.xlu0 0
    %4025 = vperm.xlu0 %4024, %v3957
    %v4026 = vpop.permute.xlu0 %4025
    %4029 = vset.pattern.permute.xlu0 0
    %4030 = vperm.xlu0 %4029, %v3958
    %v4031 = vpop.permute.xlu0 %4030
    %4034 = vset.pattern.permute.xlu0 0
    %4035 = vperm.xlu0 %4034, %v3959
    %v4036 = vpop.permute.xlu0 %4035
    %4039 = vset.pattern.permute.xlu0 0
    %4040 = vperm.xlu0 %4039, %v3960
    %v4041 = vpop.permute.xlu0 %4040
    %4044 = vset.pattern.permute.xlu0 0
    %4045 = vperm.xlu0 %4044, %v3961
    %v4046 = vpop.permute.xlu0 %4045
    %4049 = vset.pattern.permute.xlu0 0
    %4050 = vperm.xlu0 %4049, %v3962
    %v4051 = vpop.permute.xlu0 %4050
    %4054 = vset.pattern.permute.xlu0 0
    %4055 = vperm.xlu0 %4054, %v3963
    %v4056 = vpop.permute.xlu0 %4055
    %4059 = vset.pattern.permute.xlu0 0
    %4060 = vperm.xlu0 %4059, %v3964
    %v4061 = vpop.permute.xlu0 %4060
    %4064 = vset.pattern.permute.xlu0 0
    %4065 = vperm.xlu0 %4064, %v3965
    %v4066 = vpop.permute.xlu0 %4065
    %4069 = vset.pattern.permute.xlu0 0
    %4070 = vperm.xlu0 %4069, %v3966
    %v4071 = vpop.permute.xlu0 %4070
    %4074 = vset.pattern.permute.xlu0 0
    %4075 = vperm.xlu0 %4074, %v3967
    %v4076 = vpop.permute.xlu0 %4075
    %4079 = vset.pattern.permute.xlu0 0
    %4080 = vperm.xlu0 %4079, %v3968
    %v4081 = vpop.permute.xlu0 %4080
    %4084 = vset.pattern.permute.xlu0 0
    %4085 = vperm.xlu0 %4084, %v3969
    %v4086 = vpop.permute.xlu0 %4085
    %4089 = vset.pattern.permute.xlu0 0
    %4090 = vperm.xlu0 %4089, %v3970
    %v4091 = vpop.permute.xlu0 %4090
    %4094 = vset.pattern.permute.xlu0 0
    %4095 = vperm.xlu0 %4094, %v3971
    %v4096 = vpop.permute.xlu0 %4095
    %4099 = vset.pattern.permute.xlu0 0
    %4100 = vperm.xlu0 %4099, %v3972
    %v4101 = vpop.permute.xlu0 %4100
    %4104 = vset.pattern.permute.xlu0 0
    %4105 = vperm.xlu0 %4104, %v3973
    %v4106 = vpop.permute.xlu0 %4105
    %4109 = vset.pattern.permute.xlu0 0
    %4110 = vperm.xlu0 %4109, %v3974
    %v4111 = vpop.permute.xlu0 %4110
    %4114 = vset.pattern.permute.xlu0 0
    %4115 = vperm.xlu0 %4114, %v3975
    %v4116 = vpop.permute.xlu0 %4115
    %4119 = vset.pattern.permute.xlu0 0
    %4120 = vperm.xlu0 %4119, %v3976
    %v4121 = vpop.permute.xlu0 %4120
    %4124 = vset.pattern.permute.xlu0 0
    %4125 = vperm.xlu0 %4124, %v3977
    %v4126 = vpop.permute.xlu0 %4125
    %4129 = vset.pattern.permute.xlu0 0
    %4130 = vperm.xlu0 %4129, %v3978
    %v4131 = vpop.permute.xlu0 %4130
    %4134 = vset.pattern.permute.xlu0 0
    %4135 = vperm.xlu0 %4134, %v3979
    %v4136 = vpop.permute.xlu0 %4135
    %4139 = vset.pattern.permute.xlu0 0
    %4140 = vperm.xlu0 %4139, %v3980
    %v4141 = vpop.permute.xlu0 %4140
    %4144 = vset.pattern.permute.xlu0 0
    %4145 = vperm.xlu0 %4144, %v3981
    %v4146 = vpop.permute.xlu0 %4145
    %4149 = vset.pattern.permute.xlu0 0
    %4150 = vperm.xlu0 %4149, %v3982
    %v4151 = vpop.permute.xlu0 %4150
    %4154 = vset.pattern.permute.xlu0 0
    %4155 = vperm.xlu0 %4154, %v3983
    %v4156 = vpop.permute.xlu0 %4155
    %4159 = vset.pattern.permute.xlu0 0
    %4160 = vperm.xlu0 %4159, %v3984
    %v4161 = vpop.permute.xlu0 %4160
    %4164 = vset.pattern.permute.xlu0 0
    %4165 = vperm.xlu0 %4164, %v3985
    %v4166 = vpop.permute.xlu0 %4165
    %4169 = vset.pattern.permute.xlu0 0
    %4170 = vperm.xlu0 %4169, %v3986
    %v4171 = vpop.permute.xlu0 %4170
    %4174 = vset.pattern.permute.xlu0 0
    %4175 = vperm.xlu0 %4174, %v3987
    %v4176 = vpop.permute.xlu0 %4175
    %4179 = vset.pattern.permute.xlu0 0
    %4180 = vperm.xlu0 %4179, %v3988
    %v4181 = vpop.permute.xlu0 %4180
    %4184 = vset.pattern.permute.xlu0 0
    %4185 = vperm.xlu0 %4184, %v3989
    %v4186 = vpop.permute.xlu0 %4185
    %4189 = vset.pattern.permute.xlu0 0
    %4190 = vperm.xlu0 %4189, %v3990
    %v4191 = vpop.permute.xlu0 %4190
    %4194 = vset.pattern.permute.xlu0 0
    %4195 = vperm.xlu0 %4194, %v3991
    %v4196 = vpop.permute.xlu0 %4195
    %4199 = vset.pattern.permute.xlu0 0
    %4200 = vperm.xlu0 %4199, %v3992
    %v4201 = vpop.permute.xlu0 %4200
    %4204 = vset.pattern.permute.xlu0 0
    %4205 = vperm.xlu0 %4204, %v3993
    %v4206 = vpop.permute.xlu0 %4205
    %4209 = vset.pattern.permute.xlu0 0
    %4210 = vperm.xlu0 %4209, %v3994
    %v4211 = vpop.permute.xlu0 %4210
    %4214 = vset.pattern.permute.xlu0 0
    %4215 = vperm.xlu0 %4214, %v3995
    %v4216 = vpop.permute.xlu0 %4215
    %4219 = vset.pattern.permute.xlu0 0
    %4220 = vperm.xlu0 %4219, %v3996
    %v4221 = vpop.permute.xlu0 %4220
    %4224 = vset.pattern.permute.xlu0 0
    %4225 = vperm.xlu0 %4224, %v3997
    %v4226 = vpop.permute.xlu0 %4225
    %4229 = vset.pattern.permute.xlu0 0
    %4230 = vperm.xlu0 %4229, %v3998
    %v4231 = vpop.permute.xlu0 %4230
    %4234 = vset.pattern.permute.xlu0 0
    %4235 = vperm.xlu0 %4234, %v3999
    %v4236 = vpop.permute.xlu0 %4235
    %4239 = vset.pattern.permute.xlu0 0
    %4240 = vperm.xlu0 %4239, %v4000
    %v4241 = vpop.permute.xlu0 %4240
    %4244 = vset.pattern.permute.xlu0 0
    %4245 = vperm.xlu0 %4244, %v4001
    %v4246 = vpop.permute.xlu0 %4245
    %4249 = vset.pattern.permute.xlu0 0
    %4250 = vperm.xlu0 %4249, %v4002
    %v4251 = vpop.permute.xlu0 %4250
    %v4253 = vmul.f32 %v3903, %v4006
    %v4254 = vmul.f32 %v3904, %v4011
    %v4255 = vmul.f32 %v3905, %v4016
    %v4256 = vmul.f32 %v3906, %v4021
    %v4257 = vmul.f32 %v3907, %v4026
    %v4258 = vmul.f32 %v3908, %v4031
    %v4259 = vmul.f32 %v3909, %v4036
    %v4260 = vmul.f32 %v3910, %v4041
    %v4261 = vmul.f32 %v3911, %v4046
    %v4262 = vmul.f32 %v3912, %v4051
    %v4263 = vmul.f32 %v3913, %v4056
    %v4264 = vmul.f32 %v3914, %v4061
    %v4265 = vmul.f32 %v3915, %v4066
    %v4266 = vmul.f32 %v3916, %v4071
    %v4267 = vmul.f32 %v3917, %v4076
    %v4268 = vmul.f32 %v3918, %v4081
    %v4269 = vmul.f32 %v3919, %v4086
    %v4270 = vmul.f32 %v3920, %v4091
    %v4271 = vmul.f32 %v3921, %v4096
    %v4272 = vmul.f32 %v3922, %v4101
    %v4273 = vmul.f32 %v3923, %v4106
    %v4274 = vmul.f32 %v3924, %v4111
    %v4275 = vmul.f32 %v3925, %v4116
    %v4276 = vmul.f32 %v3926, %v4121
    %v4277 = vmul.f32 %v3927, %v4126
    %v4278 = vmul.f32 %v3928, %v4131
    %v4279 = vmul.f32 %v3929, %v4136
    %v4280 = vmul.f32 %v3930, %v4141
    %v4281 = vmul.f32 %v3931, %v4146
    %v4282 = vmul.f32 %v3932, %v4151
    %v4283 = vmul.f32 %v3933, %v4156
    %v4284 = vmul.f32 %v3934, %v4161
    %v4285 = vmul.f32 %v3935, %v4166
    %v4286 = vmul.f32 %v3936, %v4171
    %v4287 = vmul.f32 %v3937, %v4176
    %v4288 = vmul.f32 %v3938, %v4181
    %v4289 = vmul.f32 %v3939, %v4186
    %v4290 = vmul.f32 %v3940, %v4191
    %v4291 = vmul.f32 %v3941, %v4196
    %v4292 = vmul.f32 %v3942, %v4201
    %v4293 = vmul.f32 %v3943, %v4206
    %v4294 = vmul.f32 %v3944, %v4211
    %v4295 = vmul.f32 %v3945, %v4216
    %v4296 = vmul.f32 %v3946, %v4221
    %v4297 = vmul.f32 %v3947, %v4226
    %v4298 = vmul.f32 %v3948, %v4231
    %v4299 = vmul.f32 %v3949, %v4236
    %v4300 = vmul.f32 %v3950, %v4241
    %v4301 = vmul.f32 %v3951, %v4246
    %v4302 = vmul.f32 %v3952, %v4251
    %vm4303 = vcmask 64512
    %v4304 = vsel %vm4303, %v4253, 0.0
    %v4305 = vsel %vm4303, %v4254, 0.0
    %v4306 = vadd.f32 %v4304, %v4305
    %v4307 = vsel %vm4303, %v4255, 0.0
    %v4308 = vadd.f32 %v4306, %v4307
    %v4309 = vsel %vm4303, %v4256, 0.0
    %v4310 = vadd.f32 %v4308, %v4309
    %v4311 = vsel %vm4303, %v4257, 0.0
    %v4312 = vadd.f32 %v4310, %v4311
    %v4313 = vsel %vm4303, %v4258, 0.0
    %v4314 = vadd.f32 %v4312, %v4313
    %v4315 = vsel %vm4303, %v4259, 0.0
    %v4316 = vadd.f32 %v4314, %v4315
    %v4317 = vsel %vm4303, %v4260, 0.0
    %v4318 = vadd.f32 %v4316, %v4317
    %v4319 = vsel %vm4303, %v4261, 0.0
    %v4320 = vadd.f32 %v4318, %v4319
    %v4321 = vsel %vm4303, %v4262, 0.0
    %v4322 = vadd.f32 %v4320, %v4321
    %v4323 = vsel %vm4303, %v4263, 0.0
    %v4324 = vadd.f32 %v4322, %v4323
    %v4325 = vsel %vm4303, %v4264, 0.0
    %v4326 = vadd.f32 %v4324, %v4325
    %v4327 = vsel %vm4303, %v4265, 0.0
    %v4328 = vadd.f32 %v4326, %v4327
    %v4329 = vsel %vm4303, %v4266, 0.0
    %v4330 = vadd.f32 %v4328, %v4329
    %v4331 = vsel %vm4303, %v4267, 0.0
    %v4332 = vadd.f32 %v4330, %v4331
    %v4333 = vsel %vm4303, %v4268, 0.0
    %v4334 = vadd.f32 %v4332, %v4333
    %v4335 = vsel %vm4303, %v4269, 0.0
    %v4336 = vadd.f32 %v4334, %v4335
    %v4337 = vsel %vm4303, %v4270, 0.0
    %v4338 = vadd.f32 %v4336, %v4337
    %v4339 = vsel %vm4303, %v4271, 0.0
    %v4340 = vadd.f32 %v4338, %v4339
    %v4341 = vsel %vm4303, %v4272, 0.0
    %v4342 = vadd.f32 %v4340, %v4341
    %v4343 = vsel %vm4303, %v4273, 0.0
    %v4344 = vadd.f32 %v4342, %v4343
    %v4345 = vsel %vm4303, %v4274, 0.0
    %v4346 = vadd.f32 %v4344, %v4345
    %v4347 = vsel %vm4303, %v4275, 0.0
    %v4348 = vadd.f32 %v4346, %v4347
    %v4349 = vsel %vm4303, %v4276, 0.0
    %v4350 = vadd.f32 %v4348, %v4349
    %v4351 = vsel %vm4303, %v4277, 0.0
    %v4352 = vadd.f32 %v4350, %v4351
    %v4353 = vsel %vm4303, %v4278, 0.0
    %v4354 = vadd.f32 %v4352, %v4353
    %v4355 = vsel %vm4303, %v4279, 0.0
    %v4356 = vadd.f32 %v4354, %v4355
    %v4357 = vsel %vm4303, %v4280, 0.0
    %v4358 = vadd.f32 %v4356, %v4357
    %v4359 = vsel %vm4303, %v4281, 0.0
    %v4360 = vadd.f32 %v4358, %v4359
    %v4361 = vsel %vm4303, %v4282, 0.0
    %v4362 = vadd.f32 %v4360, %v4361
    %v4363 = vsel %vm4303, %v4283, 0.0
    %v4364 = vadd.f32 %v4362, %v4363
    %v4365 = vsel %vm4303, %v4284, 0.0
    %v4366 = vadd.f32 %v4364, %v4365
    %v4367 = vsel %vm4303, %v4285, 0.0
    %v4368 = vadd.f32 %v4366, %v4367
    %v4369 = vsel %vm4303, %v4286, 0.0
    %v4370 = vadd.f32 %v4368, %v4369
    %v4371 = vsel %vm4303, %v4287, 0.0
    %v4372 = vadd.f32 %v4370, %v4371
    %v4373 = vsel %vm4303, %v4288, 0.0
    %v4374 = vadd.f32 %v4372, %v4373
    %v4375 = vsel %vm4303, %v4289, 0.0
    %v4376 = vadd.f32 %v4374, %v4375
    %v4377 = vsel %vm4303, %v4290, 0.0
    %v4378 = vadd.f32 %v4376, %v4377
    %v4379 = vsel %vm4303, %v4291, 0.0
    %v4380 = vadd.f32 %v4378, %v4379
    %v4381 = vsel %vm4303, %v4292, 0.0
    %v4382 = vadd.f32 %v4380, %v4381
    %v4383 = vsel %vm4303, %v4293, 0.0
    %v4384 = vadd.f32 %v4382, %v4383
    %v4385 = vsel %vm4303, %v4294, 0.0
    %v4386 = vadd.f32 %v4384, %v4385
    %v4387 = vsel %vm4303, %v4295, 0.0
    %v4388 = vadd.f32 %v4386, %v4387
    %v4389 = vsel %vm4303, %v4296, 0.0
    %v4390 = vadd.f32 %v4388, %v4389
    %v4391 = vsel %vm4303, %v4297, 0.0
    %v4392 = vadd.f32 %v4390, %v4391
    %v4393 = vsel %vm4303, %v4298, 0.0
    %v4394 = vadd.f32 %v4392, %v4393
    %v4395 = vsel %vm4303, %v4299, 0.0
    %v4396 = vadd.f32 %v4394, %v4395
    %v4397 = vsel %vm4303, %v4300, 0.0
    %v4398 = vadd.f32 %v4396, %v4397
    %v4399 = vsel %vm4303, %v4301, 0.0
    %v4400 = vadd.f32 %v4398, %v4399
    %v4401 = vsel %vm4303, %v4302, 0.0
    %v4402 = vadd.f32 %v4400, %v4401
    %v4403 = vrot.slane %v4402, 4
    %v4404 = vadd.f32 %v4402, %v4403
    %v4405 = vrot.slane %v4404, 2
    %v4406 = vadd.f32 %v4404, %v4405
    %v4407 = vrot.slane %v4406, 1
    %v4408 = vadd.f32 %v4406, %v4407
    %v4409 = vld [vmem:[#allocation2] sm:$0x1]
    %4411 = vset.pattern.permute.xlu0 0
    %4412 = vperm.xlu0 %4411, %v4409
    %v4413 = vpop.permute.xlu0 %4412
    %v4415 = vperm.slane %v4413, 0
    %v4416 = vadd.f32 %v4408, %v4415
    %vm4417 = vcmask 57344
    %4418 = vst.msk [vmem:[#allocation8] sm:$0x1] %vm4417, %v4416
    // Predicated region
    $region54: #{t_forward.1} parent=1 // pred_check
      _
    $region55: #{t_forward.1} parent=1 // pred_check_branch
      %4420 = sbr.rel (0) target = $region57
    $region56: #{t_forward.1} parent=1 // pred_region
      %4422 = vsyncadd [#allocation5], 0
      %s4424 = sshll.u32 [#allocation8], 4
      %s4425 = int_to_ptr.vmem [resolvable:$true] %s4424
      %s4426 = sshll.u32 %s11, 4
      %s4427 = int_to_ptr.hbm [resolvable:$true] %s4426
      %4429 = dma.vmem_to_hbm [thread:$0]  %s4425, 16, %s4427, [#allocation5]
    $region57: #{t_forward.1} parent=1 // pred_fallthru
      _
    // Predicated region
    $region58: #{t_forward.1} parent=1 // pred_check
      _
    $region59: #{t_forward.1} parent=1 // pred_check_branch
      %4431 = sbr.rel (0) target = $region61
    $region60: #{t_forward.1} parent=1 // pred_region
      %4433 = dma.done [#allocation5], 16
    $region61: #{t_forward.1} parent=1 // pred_fallthru
      _
    %4434 = vsyncpa [#allocation4], 1
    %4435 = vsyncpa [#allocation7], 1
    %4436 = vsyncpa [#allocation5], 1

</llo_original>
